<compile_context>
chip_gen: v7x
topology: tpu7x:2x2x1
jax: 0.10.0
libtpu: 0.0.40
codegen_flags: <defaults>
</compile_context>

<pallas_src>
import functools

import jax
import jax.numpy as jnp
from jax import lax
from jax.experimental import pallas as pl
from jax.experimental.pallas import tpu as pltpu

EPS = 1e-5


def _tile_plan(L, target):
    """Split the point axis into the fewest tiles <= target, each a multiple of 8."""
    n_tiles = max(1, -(-L // target))
    tile = -(-L // n_tiles)
    tile = ((tile + 7) // 8) * 8
    return tile, n_tiles, tile * n_tiles


def _make_kernel(L, tile_L, count, needs_mask):
    inv_count = 1.0 / float(count)

    def kernel(x_ref,
               w1_ref, b1_ref,
               w2_ref, b2_ref, g2_ref, be2_ref,
               w3_ref, b3_ref, g3_ref, be3_ref,
               wf1_ref, bf1_ref, g4_ref, be4_ref,
               wf2_ref, bf2_ref, g5_ref, be5_ref,
               wt_ref, bt_ref,
               out_ref,
               s2, q2, s3, q3, mx, mn):
        p = pl.program_id(0)
        b = pl.program_id(1)
        t = pl.program_id(2)
        last_bt = ((b == pl.num_programs(1) - 1) &
                   (t == pl.num_programs(2) - 1))

        # -- one-time init of the cross-step accumulators --------------------
        @pl.when((p == 0) & (b == 0) & (t == 0))
        def _init():
            s2[...] = jnp.zeros_like(s2)
            q2[...] = jnp.zeros_like(q2)
            s3[...] = jnp.zeros_like(s3)
            q3[...] = jnp.zeros_like(q3)
            mx[...] = jnp.full(mx.shape, -jnp.inf, mx.dtype)
            mn[...] = jnp.full(mn.shape, jnp.inf, mn.dtype)

        # valid-row mask only when the point axis is actually zero-padded
        if needs_mask:
            row = t * tile_L + lax.broadcasted_iota(jnp.int32, (tile_L, 1), 0)
            mask = row < L
        else:
            mask = None

        def masked(z, fill):
            if mask is None:
                return z
            return jnp.where(mask, z, fill)

        # -- layer 1 (3 -> 64): BN1 pre-folded, K=3 stays off the MXU ---------
        xt = x_ref[...]                      # (tile_L, 8) f32, lanes 3..7 zero
        w1 = w1_ref[...]                     # (3, 64) f32 (already BN1-scaled)
        h1 = jnp.maximum(b1_ref[...]
                         + xt[:, 0:1] * w1[0:1, :]
                         + xt[:, 1:2] * w1[1:2, :]
                         + xt[:, 2:3] * w1[2:3, :], 0.0)     # (tile_L, 64)

        # z2 is needed by both passes
        z2 = (jnp.dot(h1.astype(jnp.bfloat16), w2_ref[...],
                      preferred_element_type=jnp.float32) + b2_ref[...])

        def bn_affine(mean_ref, rstd_ref, g_ref, be_ref):
            scale = rstd_ref[...] * g_ref[...]
            shift = be_ref[...] - mean_ref[...] * scale
            return scale, shift

        def accum(z, s_ref, q_ref):
            zm = masked(z, 0.0)
            s_ref[...] += jnp.sum(zm, axis=0, keepdims=True)
            q_ref[...] += jnp.sum(zm * zm, axis=0, keepdims=True)

        def finalize(s_ref, q_ref):
            mean = s_ref[...] * inv_count
            var = jnp.maximum(q_ref[...] * inv_count - mean * mean, 0.0)
            s_ref[...] = mean                      # buffer becomes: mean
            q_ref[...] = lax.rsqrt(var + EPS)      # buffer becomes: 1/sqrt(var+eps)

        # -- pass 0: BN2 statistics -------------------------------------------
        @pl.when(p == 0)
        def _pass0():
            accum(z2, s2, q2)

        @pl.when((p == 0) & last_bt)
        def _fin0():
            finalize(s2, q2)

        # -- pass 1: BN3 statistics + per-sample max/min of pre-BN mlp3 --------
        @pl.when(p == 1)
        def _pass1():
            sc2, sh2 = bn_affine(s2, q2, g2_ref, be2_ref)
            h2 = jnp.maximum(z2 * sc2 + sh2, 0.0)
            z3 = (jnp.dot(h2.astype(jnp.bfloat16), w3_ref[...],
                          preferred_element_type=jnp.float32) + b3_ref[...])
            accum(z3, s3, q3)
            tmax = jnp.max(masked(z3, -jnp.inf), axis=0, keepdims=True)
            tmin = jnp.min(masked(z3, jnp.inf), axis=0, keepdims=True)
            mx[pl.ds(b, 1), :] = jnp.maximum(mx[pl.ds(b, 1), :], tmax)
            mn[pl.ds(b, 1), :] = jnp.minimum(mn[pl.ds(b, 1), :], tmin)

        # -- epilogue (very last step): pooled BN3+ReLU, then fused FC head ----
        @pl.when((p == 1) & last_bt)
        def _epilogue():
            finalize(s3, q3)
            sc3, sh3 = bn_affine(s3, q3, g3_ref, be3_ref)
            # per-channel affine is monotone: pick max (scale>=0) or min (<0)
            pooled = jnp.where(sc3 >= 0.0, mx[...], mn[...])        # (bn, 1024)
            feat = jnp.maximum(pooled * sc3 + sh3, 0.0)

            def bn_rows(y, g, be):          # BatchNorm1d over the sample axis
                m = jnp.mean(y, axis=0, keepdims=True)
                v = jnp.mean((y - m) ** 2, axis=0, keepdims=True)
                return (y - m) * lax.rsqrt(v + EPS) * g + be

            y = (jnp.dot(feat.astype(jnp.bfloat16), wf1_ref[...],
                         preferred_element_type=jnp.float32) + bf1_ref[...])
            y = bn_rows(y, g4_ref[...], be4_ref[...])                # no relu
            y = (jnp.dot(y.astype(jnp.bfloat16), wf2_ref[...],
                         preferred_element_type=jnp.float32) + bf2_ref[...])
            y = bn_rows(y, g5_ref[...], be5_ref[...])                # no relu
            out_ref[...] = (jnp.dot(y, wt_ref[...],
                                    preferred_element_type=jnp.float32)
                            + bt_ref[...])

    return kernel


def init_params(key, k=3):
    ks = jax.random.split(key, 5)
    f32 = jnp.float32

    def rnd(k_, shape, scale=0.1):
        return (scale * jax.random.normal(k_, shape)).astype(f32)

    p = {}
    # Conv1d(k=1)/Linear weights stored as (C_in, C_out); biases as (1, C_out)
    p["w1"], p["b1"] = rnd(ks[0], (3, 64)), jnp.zeros((1, 64), f32)
    p["w2"], p["b2"] = rnd(ks[1], (64, 128)), jnp.zeros((1, 128), f32)
    p["w3"], p["b3"] = rnd(ks[2], (128, 1024)), jnp.zeros((1, 1024), f32)
    p["wf1"], p["bf1"] = rnd(ks[3], (1024, 512)), jnp.zeros((1, 512), f32)
    p["wf2"], p["bf2"] = rnd(ks[4], (512, 256)), jnp.zeros((1, 256), f32)
    # BatchNorm affine params at their PyTorch defaults (gamma=1, beta=0)
    for name, c in (("1", 64), ("2", 128), ("3", 1024), ("4", 512), ("5", 256)):
        p["g" + name] = jnp.ones((1, c), f32)
        p["be" + name] = jnp.zeros((1, c), f32)
    # Final transform: zero weights + flattened-identity bias (as in the module)
    p["wt"] = jnp.zeros((256, 3 * k), f32)
    p["bt"] = jnp.eye(k, dtype=f32).reshape(1, k * k)
    return p


@functools.partial(jax.jit, static_argnames=("k", "tile_target"))
def input_transform_net_alt_forward(x, params, k=3, tile_target=1024):
    bn, inpt, pts = x.shape            # torch: bn, inpt, pts = x.shape
    assert pts == 3, "Conv1d(3, ...) requires the viewed channel dim to be 3"
    assert 3 * k <= 128
    L = inpt                           # conv length after the torch view

    # torch: x.view(bn, pts, inpt) is a memory reinterpretation (not a
    # transpose) that is then treated as NCL.  Reproduce it, then go
    # channels-last so per-point convs become row-tiled matmuls.
    x_ncl = x.astype(jnp.float32).reshape(bn, pts, L)        # (N, C=3, L)
    x_nlc = jnp.transpose(x_ncl, (0, 2, 1))                  # (N, L, 3)

    # ---- BN1 batch statistics computed analytically in the wrapper --------
    # z1 = x @ w1 + b1 is linear in x, so its per-channel batch moments only
    # need Σx (3-vec) and the 3x3 gram Σ x xᵀ.  This removes one streaming
    # pass from the kernel; BN1's affine is then folded into (w1, b1).
    w1, b1 = params["w1"], params["b1"]
    g1, be1 = params["g1"], params["be1"]
    N = bn * L
    x_flat = x_nlc.reshape(N, pts)
    sx = jnp.sum(x_flat, axis=0, keepdims=True)              # (1, 3)
    G = x_flat.T @ x_flat                                    # (3, 3)
    sxw = sx @ w1                                            # (1, 64)
    mean1 = sxw / N + b1
    quad = jnp.sum((G @ w1) * w1, axis=0, keepdims=True)     # Σ (x·w_c)^2
    m2 = (quad + 2.0 * b1 * sxw) / N + b1 * b1
    var1 = jnp.maximum(m2 - mean1 * mean1, 0.0)
    sc1 = g1 * lax.rsqrt(var1 + EPS)
    w1f = w1 * sc1                                           # (3, 64)
    b1f = (b1 - mean1) * sc1 + be1                           # (1, 64)

    tile_L, n_tiles, L_pad = _tile_plan(L, tile_target)
    x_pad = jnp.pad(x_nlc, ((0, 0), (0, L_pad - L), (0, 8 - pts)))   # (N, L_pad, 8)

    bf16 = jnp.bfloat16
    w2 = params["w2"].astype(bf16)
    w3 = params["w3"].astype(bf16)
    wf1 = params["wf1"].astype(bf16)
    wf2 = params["wf2"].astype(bf16)
    # lane-dense (128-wide) final transform weights / bias
    wt_pad = jnp.zeros((256, 128), jnp.float32).at[:, :3 * k].set(params["wt"])
    bt_pad = jnp.zeros((1, 128), jnp.float32).at[:, :3 * k].set(params["bt"])

    kernel = _make_kernel(L=L, tile_L=tile_L, count=bn * L,
                          needs_mask=(L_pad != L))

    def const_spec(shape):
        n = len(shape)
        return pl.BlockSpec(shape, lambda p_, b_, t_, n=n: (0,) * n)

    operands = (
        x_pad,
        w1f, b1f,
        w2, params["b2"], params["g2"], params["be2"],
        w3, params["b3"], params["g3"], params["be3"],
        wf1, params["bf1"], params["g4"], params["be4"],
        wf2, params["bf2"], params["g5"], params["be5"],
        wt_pad, bt_pad,
    )
    in_specs = [pl.BlockSpec((None, tile_L, 8), lambda p_, b_, t_: (b_, t_, 0))]
    in_specs += [const_spec(op.shape) for op in operands[1:]]

    out = pl.pallas_call(
        kernel,
        out_shape=jax.ShapeDtypeStruct((bn, 128), jnp.float32),
        grid_spec=pltpu.PrefetchScalarGridSpec(
            num_scalar_prefetch=0,
            grid=(2, bn, n_tiles),                 # (pass, sample, point tile)
            in_specs=in_specs,
            out_specs=pl.BlockSpec((bn, 128), lambda p_, b_, t_: (0, 0)),
            scratch_shapes=[
                pltpu.VMEM((1, 128), jnp.float32), pltpu.VMEM((1, 128), jnp.float32),
                pltpu.VMEM((1, 1024), jnp.float32), pltpu.VMEM((1, 1024), jnp.float32),
                pltpu.VMEM((bn, 1024), jnp.float32), pltpu.VMEM((bn, 1024), jnp.float32),
            ],
        ),
        compiler_params=pltpu.CompilerParams(
            # BN statistics and the pooled max/min accumulate across every grid
            # axis, so all axes must run sequentially on one core.
            dimension_semantics=("arbitrary", "arbitrary", "arbitrary"),
            vmem_limit_bytes=48 * 1024 * 1024,
        ),
    )(*operands)

    return out[:, :3 * k].reshape(bn, k, k)


def reference_forward(x, params, k=3):
    """Pure-JAX reference mirroring the kernel's dtype strategy (bf16 matmuls,
    f32 BN statistics); used for numerical validation."""
    bn, inpt, pts = x.shape
    L = inpt
    xl = jnp.transpose(x.astype(jnp.float32).reshape(bn, pts, L),
                       (0, 2, 1)).reshape(bn * L, pts)

    def bn_train(z, g, be):
        m = jnp.mean(z, axis=0, keepdims=True)
        v = jnp.mean((z - m) ** 2, axis=0, keepdims=True)
        return (z - m) * lax.rsqrt(v + EPS) * g + be

    def mm(a, w):
        return jnp.dot(a.astype(jnp.bfloat16), w.astype(jnp.bfloat16),
                       preferred_element_type=jnp.float32)

    z1 = xl @ params["w1"] + params["b1"]
    h1 = jnp.maximum(bn_train(z1, params["g1"], params["be1"]), 0.0)
    h2 = jnp.maximum(bn_train(mm(h1, params["w2"]) + params["b2"],
                              params["g2"], params["be2"]), 0.0)
    h3 = jnp.maximum(bn_train(mm(h2, params["w3"]) + params["b3"],
                              params["g3"], params["be3"]), 0.0)
    feat = jnp.max(h3.reshape(bn, L, -1), axis=1)
    y = bn_train(mm(feat, params["wf1"]) + params["bf1"],
                 params["g4"], params["be4"])
    y = bn_train(mm(y, params["wf2"]) + params["bf2"],
                 params["g5"], params["be5"])
    t = y @ params["wt"] + params["bt"]
    return t.reshape(bn, k, k)


if __name__ == "__main__":
    key = jax.random.PRNGKey(0)
    k_x, k_p, k_x2, k_wt = jax.random.split(key, 4)

    bn, n_points, k = 2, 16, 3
    # input shape (bn, inpt, pts) with pts == 3, as the torch forward requires
    x = jax.random.normal(k_x, (bn, n_points, 3), dtype=jnp.float32)
    params = init_params(k_p, k=k)

    out = input_transform_net_alt_forward(x, params, k=k)
    out = jax.block_until_ready(out)
    assert out.shape == (bn, k, k), out.shape
    # With the module's zero transform weights the result is identity matrices.
    expected = jnp.broadcast_to(jnp.eye(k, dtype=jnp.float32), (bn, k, k))
    assert jnp.allclose(out, expected, atol=1e-5), out

    # Secondary check: nonzero final weights, multi-tile + padded point axis,
    # validated against the pure-JAX reference with the same dtype strategy.
    bn2, n_points2 = 4, 20
    x2 = jax.random.normal(k_x2, (bn2, n_points2, 3), dtype=jnp.float32)
    params2 = dict(params)
    params2["wt"] = 0.1 * jax.random.normal(k_wt, (256, 3 * k), dtype=jnp.float32)
    out2 = input_transform_net_alt_forward(x2, params2, k=k, tile_target=8)
    ref2 = reference_forward(x2, params2, k=k)
    out2, ref2 = jax.block_until_ready((out2, ref2))
    assert out2.shape == ref2.shape == (bn2, k, k)
    assert jnp.allclose(out2, ref2, atol=0.1, rtol=0.1), (out2, ref2)

    print("KERNEL_OK")
</pallas_src>

<mosaic_0001>
module attributes {stable_mosaic.version = 11 : i64} {
  func.func @kernel(%arg0: i32, %arg1: i32, %arg2: i32, %arg3: memref<1x16x8xf32, #tpu.memory_space<vmem>>, %arg4: memref<3x64xf32, #tpu.memory_space<vmem>>, %arg5: memref<1x64xf32, #tpu.memory_space<vmem>>, %arg6: memref<64x128xbf16, #tpu.memory_space<vmem>>, %arg7: memref<1x128xf32, #tpu.memory_space<vmem>>, %arg8: memref<1x128xf32, #tpu.memory_space<vmem>>, %arg9: memref<1x128xf32, #tpu.memory_space<vmem>>, %arg10: memref<128x1024xbf16, #tpu.memory_space<vmem>>, %arg11: memref<1x1024xf32, #tpu.memory_space<vmem>>, %arg12: memref<1x1024xf32, #tpu.memory_space<vmem>>, %arg13: memref<1x1024xf32, #tpu.memory_space<vmem>>, %arg14: memref<1024x512xbf16, #tpu.memory_space<vmem>>, %arg15: memref<1x512xf32, #tpu.memory_space<vmem>>, %arg16: memref<1x512xf32, #tpu.memory_space<vmem>>, %arg17: memref<1x512xf32, #tpu.memory_space<vmem>>, %arg18: memref<512x256xbf16, #tpu.memory_space<vmem>>, %arg19: memref<1x256xf32, #tpu.memory_space<vmem>>, %arg20: memref<1x256xf32, #tpu.memory_space<vmem>>, %arg21: memref<1x256xf32, #tpu.memory_space<vmem>>, %arg22: memref<256x128xf32, #tpu.memory_space<vmem>>, %arg23: memref<1x128xf32, #tpu.memory_space<vmem>>, %arg24: memref<2x128xf32, #tpu.memory_space<vmem>>, %arg25: memref<1x128xf32, #tpu.memory_space<vmem>>, %arg26: memref<1x128xf32, #tpu.memory_space<vmem>>, %arg27: memref<1x1024xf32, #tpu.memory_space<vmem>>, %arg28: memref<1x1024xf32, #tpu.memory_space<vmem>>, %arg29: memref<2x1024xf32, #tpu.memory_space<vmem>>, %arg30: memref<2x1024xf32, #tpu.memory_space<vmem>>) attributes {dimension_semantics = [#tpu.dimension_semantics<arbitrary>, #tpu.dimension_semantics<arbitrary>, #tpu.dimension_semantics<arbitrary>], iteration_bounds = array<i64: 2, 2, 1>, scalar_prefetch = 0 : i64, scratch_operands = 6 : i64, tpu.core_type = #tpu.core_type<tc>, window_params = [{transform_indices = @transform_0, window_bounds = array<i64: 1, 16, 8>}, {pipeline_mode = #tpu.pipeline_mode<synchronous>, transform_indices = @transform_1, window_bounds = array<i64: 3, 64>}, {pipeline_mode = #tpu.pipeline_mode<synchronous>, transform_indices = @transform_2, window_bounds = array<i64: 1, 64>}, {pipeline_mode = #tpu.pipeline_mode<synchronous>, transform_indices = @transform_3, window_bounds = array<i64: 64, 128>}, {pipeline_mode = #tpu.pipeline_mode<synchronous>, transform_indices = @transform_4, window_bounds = array<i64: 1, 128>}, {pipeline_mode = #tpu.pipeline_mode<synchronous>, transform_indices = @transform_5, window_bounds = array<i64: 1, 128>}, {pipeline_mode = #tpu.pipeline_mode<synchronous>, transform_indices = @transform_6, window_bounds = array<i64: 1, 128>}, {pipeline_mode = #tpu.pipeline_mode<synchronous>, transform_indices = @transform_7, window_bounds = array<i64: 128, 1024>}, {pipeline_mode = #tpu.pipeline_mode<synchronous>, transform_indices = @transform_8, window_bounds = array<i64: 1, 1024>}, {pipeline_mode = #tpu.pipeline_mode<synchronous>, transform_indices = @transform_9, window_bounds = array<i64: 1, 1024>}, {pipeline_mode = #tpu.pipeline_mode<synchronous>, transform_indices = @transform_10, window_bounds = array<i64: 1, 1024>}, {pipeline_mode = #tpu.pipeline_mode<synchronous>, transform_indices = @transform_11, window_bounds = array<i64: 1024, 512>}, {pipeline_mode = #tpu.pipeline_mode<synchronous>, transform_indices = @transform_12, window_bounds = array<i64: 1, 512>}, {pipeline_mode = #tpu.pipeline_mode<synchronous>, transform_indices = @transform_13, window_bounds = array<i64: 1, 512>}, {pipeline_mode = #tpu.pipeline_mode<synchronous>, transform_indices = @transform_14, window_bounds = array<i64: 1, 512>}, {pipeline_mode = #tpu.pipeline_mode<synchronous>, transform_indices = @transform_15, window_bounds = array<i64: 512, 256>}, {pipeline_mode = #tpu.pipeline_mode<synchronous>, transform_indices = @transform_16, window_bounds = array<i64: 1, 256>}, {pipeline_mode = #tpu.pipeline_mode<synchronous>, transform_indices = @transform_17, window_bounds = array<i64: 1, 256>}, {pipeline_mode = #tpu.pipeline_mode<synchronous>, transform_indices = @transform_18, window_bounds = array<i64: 1, 256>}, {pipeline_mode = #tpu.pipeline_mode<synchronous>, transform_indices = @transform_19, window_bounds = array<i64: 256, 128>}, {pipeline_mode = #tpu.pipeline_mode<synchronous>, transform_indices = @transform_20, window_bounds = array<i64: 1, 128>}, {pipeline_mode = #tpu.pipeline_mode<synchronous>, transform_indices = @transform_21, window_bounds = array<i64: 2, 128>}]} {
    %c1_i32 = arith.constant 1 : i32
    %0 = arith.cmpi eq, %arg1, %c1_i32 : i32
    %c0_i32 = arith.constant 0 : i32
    %1 = arith.cmpi eq, %arg2, %c0_i32 : i32
    %2 = arith.andi %0, %1 : i1
    %c0_i32_0 = arith.constant 0 : i32
    %3 = arith.cmpi eq, %arg0, %c0_i32_0 : i32
    %c0_i32_1 = arith.constant 0 : i32
    %4 = arith.cmpi eq, %arg1, %c0_i32_1 : i32
    %5 = arith.andi %3, %4 : i1
    %c0_i32_2 = arith.constant 0 : i32
    %6 = arith.cmpi eq, %arg2, %c0_i32_2 : i32
    %7 = arith.andi %5, %6 : i1
    %8 = arith.extui %7 : i1 to i32
    %c0_i32_3 = arith.constant 0 : i32
    %9 = arith.cmpi ne, %8, %c0_i32_3 : i32
    scf.if %9 {
      %cst_23 = arith.constant 0.000000e+00 : f32
      %55 = vector.broadcast %cst_23 : f32 to vector<1x128xf32>
      %c0_24 = arith.constant 0 : index
      %c0_25 = arith.constant 0 : index
      %56 = vector.load %arg25[%c0_24, %c0_25] : memref<1x128xf32, #tpu.memory_space<vmem>>, vector<1x128xf32>
      tpu.vector_store %arg25[%c0_24, %c0_25], %55 {strides = array<i32>} : memref<1x128xf32, #tpu.memory_space<vmem>>, vector<1x128xf32>,
      %cst_26 = arith.constant 0.000000e+00 : f32
      %57 = vector.broadcast %cst_26 : f32 to vector<1x128xf32>
      %c0_27 = arith.constant 0 : index
      %c0_28 = arith.constant 0 : index
      %58 = vector.load %arg26[%c0_27, %c0_28] : memref<1x128xf32, #tpu.memory_space<vmem>>, vector<1x128xf32>
      tpu.vector_store %arg26[%c0_27, %c0_28], %57 {strides = array<i32>} : memref<1x128xf32, #tpu.memory_space<vmem>>, vector<1x128xf32>,
      %cst_29 = arith.constant 0.000000e+00 : f32
      %59 = vector.broadcast %cst_29 : f32 to vector<1x1024xf32>
      %c0_30 = arith.constant 0 : index
      %c0_31 = arith.constant 0 : index
      %60 = vector.load %arg27[%c0_30, %c0_31] : memref<1x1024xf32, #tpu.memory_space<vmem>>, vector<1x1024xf32>
      tpu.vector_store %arg27[%c0_30, %c0_31], %59 {strides = array<i32>} : memref<1x1024xf32, #tpu.memory_space<vmem>>, vector<1x1024xf32>,
      %cst_32 = arith.constant 0.000000e+00 : f32
      %61 = vector.broadcast %cst_32 : f32 to vector<1x1024xf32>
      %c0_33 = arith.constant 0 : index
      %c0_34 = arith.constant 0 : index
      %62 = vector.load %arg28[%c0_33, %c0_34] : memref<1x1024xf32, #tpu.memory_space<vmem>>, vector<1x1024xf32>
      tpu.vector_store %arg28[%c0_33, %c0_34], %61 {strides = array<i32>} : memref<1x1024xf32, #tpu.memory_space<vmem>>, vector<1x1024xf32>,
      %cst_35 = arith.constant 0xFF800000 : f32
      %63 = vector.broadcast %cst_35 : f32 to vector<2x1024xf32>
      %c0_36 = arith.constant 0 : index
      %c0_37 = arith.constant 0 : index
      %64 = vector.load %arg29[%c0_36, %c0_37] : memref<2x1024xf32, #tpu.memory_space<vmem>>, vector<2x1024xf32>
      tpu.vector_store %arg29[%c0_36, %c0_37], %63 {strides = array<i32>} : memref<2x1024xf32, #tpu.memory_space<vmem>>, vector<2x1024xf32>,
      %cst_38 = arith.constant 0x7F800000 : f32
      %65 = vector.broadcast %cst_38 : f32 to vector<2x1024xf32>
      %c0_39 = arith.constant 0 : index
      %c0_40 = arith.constant 0 : index
      %66 = vector.load %arg30[%c0_39, %c0_40] : memref<2x1024xf32, #tpu.memory_space<vmem>>, vector<2x1024xf32>
      tpu.vector_store %arg30[%c0_39, %c0_40], %65 {strides = array<i32>} : memref<2x1024xf32, #tpu.memory_space<vmem>>, vector<2x1024xf32>,
    } else {
    }
    %c0 = arith.constant 0 : index
    %c0_4 = arith.constant 0 : index
    %c0_5 = arith.constant 0 : index
    %10 = vector.load %arg3[%c0, %c0_4, %c0_5] : memref<1x16x8xf32, #tpu.memory_space<vmem>>, vector<1x16x8xf32>
    %11 = vector.shape_cast %10 : vector<1x16x8xf32> to vector<16x8xf32>
    %c0_6 = arith.constant 0 : index
    %c0_7 = arith.constant 0 : index
    %12 = vector.load %arg4[%c0_6, %c0_7] : memref<3x64xf32, #tpu.memory_space<vmem>>, vector<3x64xf32>
    %c0_8 = arith.constant 0 : index
    %c0_9 = arith.constant 0 : index
    %13 = vector.load %arg5[%c0_8, %c0_9] : memref<1x64xf32, #tpu.memory_space<vmem>>, vector<1x64xf32>
    %14 = vector.extract_strided_slice %11 {offsets = [0, 0], sizes = [16, 1], strides = [1, 1]} : vector<16x8xf32> to vector<16x1xf32>
    %15 = vector.extract_strided_slice %12 {offsets = [0, 0], sizes = [1, 64], strides = [1, 1]} : vector<3x64xf32> to vector<1x64xf32>
    %16 = vector.broadcast %14 : vector<16x1xf32> to vector<16x64xf32>
    %17 = vector.broadcast %15 : vector<1x64xf32> to vector<16x64xf32>
    %18 = arith.mulf %16, %17 : vector<16x64xf32>
    %19 = vector.broadcast %13 : vector<1x64xf32> to vector<16x64xf32>
    %20 = arith.addf %19, %18 : vector<16x64xf32>
    %21 = vector.extract_strided_slice %11 {offsets = [0, 1], sizes = [16, 1], strides = [1, 1]} : vector<16x8xf32> to vector<16x1xf32>
    %22 = vector.extract_strided_slice %12 {offsets = [1, 0], sizes = [1, 64], strides = [1, 1]} : vector<3x64xf32> to vector<1x64xf32>
    %23 = vector.broadcast %21 : vector<16x1xf32> to vector<16x64xf32>
    %24 = vector.broadcast %22 : vector<1x64xf32> to vector<16x64xf32>
    %25 = arith.mulf %23, %24 : vector<16x64xf32>
    %26 = arith.addf %20, %25 : vector<16x64xf32>
    %27 = vector.extract_strided_slice %11 {offsets = [0, 2], sizes = [16, 1], strides = [1, 1]} : vector<16x8xf32> to vector<16x1xf32>
    %28 = vector.extract_strided_slice %12 {offsets = [2, 0], sizes = [1, 64], strides = [1, 1]} : vector<3x64xf32> to vector<1x64xf32>
    %29 = vector.broadcast %27 : vector<16x1xf32> to vector<16x64xf32>
    %30 = vector.broadcast %28 : vector<1x64xf32> to vector<16x64xf32>
    %31 = arith.mulf %29, %30 : vector<16x64xf32>
    %32 = arith.addf %26, %31 : vector<16x64xf32>
    %cst = arith.constant 0.000000e+00 : f32
    %33 = vector.broadcast %cst : f32 to vector<16x64xf32>
    %34 = arith.maximumf %32, %33 : vector<16x64xf32>
    %35 = arith.truncf %34 : vector<16x64xf32> to vector<16x64xbf16>
    %c0_10 = arith.constant 0 : index
    %c0_11 = arith.constant 0 : index
    %36 = vector.load %arg6[%c0_10, %c0_11] : memref<64x128xbf16, #tpu.memory_space<vmem>>, vector<64x128xbf16>
    %cst_12 = arith.constant dense<0.000000e+00> : vector<16x128xf32>
    %37 = tpu.matmul %35, %36, %cst_12 {dimension_numbers = #tpu.dot_dimension_numbers<[1], [0], [0], [1], [0, 0, 1, 1], [], []>} : vector<16x64xbf16>, vector<64x128xbf16>, vector<16x128xf32> -> vector<16x128xf32>
    %c0_13 = arith.constant 0 : index
    %c0_14 = arith.constant 0 : index
    %38 = vector.load %arg7[%c0_13, %c0_14] : memref<1x128xf32, #tpu.memory_space<vmem>>, vector<1x128xf32>
    %39 = vector.broadcast %38 : vector<1x128xf32> to vector<16x128xf32>
    %40 = arith.addf %37, %39 : vector<16x128xf32>
    %c0_i32_15 = arith.constant 0 : i32
    %41 = arith.cmpi eq, %arg0, %c0_i32_15 : i32
    %42 = arith.extui %41 : i1 to i32
    %c0_i32_16 = arith.constant 0 : i32
    %43 = arith.cmpi ne, %42, %c0_i32_16 : i32
    scf.if %43 {
      %c0_23 = arith.constant 0 : index
      %c0_24 = arith.constant 0 : index
      %55 = vector.load %arg25[%c0_23, %c0_24] : memref<1x128xf32, #tpu.memory_space<vmem>>, vector<1x128xf32>
      %cst_25 = arith.constant dense<0.000000e+00> : vector<128xf32>
      %56 = vector.multi_reduction <add>, %40, %cst_25 [0] : vector<16x128xf32> to vector<128xf32>
      %57 = vector.shape_cast %56 : vector<128xf32> to vector<1x128xf32>
      %58 = arith.addf %55, %57 : vector<1x128xf32>
      %c0_26 = arith.constant 0 : index
      %c0_27 = arith.constant 0 : index
      %59 = vector.load %arg25[%c0_26, %c0_27] : memref<1x128xf32, #tpu.memory_space<vmem>>, vector<1x128xf32>
      tpu.vector_store %arg25[%c0_26, %c0_27], %58 {strides = array<i32>} : memref<1x128xf32, #tpu.memory_space<vmem>>, vector<1x128xf32>,
      %c0_28 = arith.constant 0 : index
      %c0_29 = arith.constant 0 : index
      %60 = vector.load %arg26[%c0_28, %c0_29] : memref<1x128xf32, #tpu.memory_space<vmem>>, vector<1x128xf32>
      %61 = arith.mulf %40, %40 : vector<16x128xf32>
      %cst_30 = arith.constant dense<0.000000e+00> : vector<128xf32>
      %62 = vector.multi_reduction <add>, %61, %cst_30 [0] : vector<16x128xf32> to vector<128xf32>
      %63 = vector.shape_cast %62 : vector<128xf32> to vector<1x128xf32>
      %64 = arith.addf %60, %63 : vector<1x128xf32>
      %c0_31 = arith.constant 0 : index
      %c0_32 = arith.constant 0 : index
      %65 = vector.load %arg26[%c0_31, %c0_32] : memref<1x128xf32, #tpu.memory_space<vmem>>, vector<1x128xf32>
      tpu.vector_store %arg26[%c0_31, %c0_32], %64 {strides = array<i32>} : memref<1x128xf32, #tpu.memory_space<vmem>>, vector<1x128xf32>,
    } else {
    }
    %c0_i32_17 = arith.constant 0 : i32
    %44 = arith.cmpi eq, %arg0, %c0_i32_17 : i32
    %45 = arith.andi %44, %2 : i1
    %46 = arith.extui %45 : i1 to i32
    %c0_i32_18 = arith.constant 0 : i32
    %47 = arith.cmpi ne, %46, %c0_i32_18 : i32
    scf.if %47 {
      %c0_23 = arith.constant 0 : index
      %c0_24 = arith.constant 0 : index
      %55 = vector.load %arg25[%c0_23, %c0_24] : memref<1x128xf32, #tpu.memory_space<vmem>>, vector<1x128xf32>
      %cst_25 = arith.constant 3.125000e-02 : f32
      %56 = vector.broadcast %cst_25 : f32 to vector<1x128xf32>
      %57 = arith.mulf %55, %56 : vector<1x128xf32>
      %c0_26 = arith.constant 0 : index
      %c0_27 = arith.constant 0 : index
      %58 = vector.load %arg26[%c0_26, %c0_27] : memref<1x128xf32, #tpu.memory_space<vmem>>, vector<1x128xf32>
      %cst_28 = arith.constant 3.125000e-02 : f32
      %59 = vector.broadcast %cst_28 : f32 to vector<1x128xf32>
      %60 = arith.mulf %58, %59 : vector<1x128xf32>
      %61 = arith.mulf %57, %57 : vector<1x128xf32>
      %62 = arith.subf %60, %61 : vector<1x128xf32>
      %cst_29 = arith.constant 0.000000e+00 : f32
      %63 = vector.broadcast %cst_29 : f32 to vector<1x128xf32>
      %64 = arith.maximumf %62, %63 : vector<1x128xf32>
      %c0_30 = arith.constant 0 : index
      %c0_31 = arith.constant 0 : index
      %65 = vector.load %arg25[%c0_30, %c0_31] : memref<1x128xf32, #tpu.memory_space<vmem>>, vector<1x128xf32>
      tpu.vector_store %arg25[%c0_30, %c0_31], %57 {strides = array<i32>} : memref<1x128xf32, #tpu.memory_space<vmem>>, vector<1x128xf32>,
      %cst_32 = arith.constant 9.99999974E-6 : f32
      %66 = vector.broadcast %cst_32 : f32 to vector<1x128xf32>
      %67 = arith.addf %64, %66 : vector<1x128xf32>
      %68 = math.rsqrt %67 : vector<1x128xf32>
      %c0_33 = arith.constant 0 : index
      %c0_34 = arith.constant 0 : index
      %69 = vector.load %arg26[%c0_33, %c0_34] : memref<1x128xf32, #tpu.memory_space<vmem>>, vector<1x128xf32>
      tpu.vector_store %arg26[%c0_33, %c0_34], %68 {strides = array<i32>} : memref<1x128xf32, #tpu.memory_space<vmem>>, vector<1x128xf32>,
    } else {
    }
    %c1_i32_19 = arith.constant 1 : i32
    %48 = arith.cmpi eq, %arg0, %c1_i32_19 : i32
    %49 = arith.extui %48 : i1 to i32
    %c0_i32_20 = arith.constant 0 : i32
    %50 = arith.cmpi ne, %49, %c0_i32_20 : i32
    scf.if %50 {
      %c0_23 = arith.constant 0 : index
      %c0_24 = arith.constant 0 : index
      %55 = vector.load %arg26[%c0_23, %c0_24] : memref<1x128xf32, #tpu.memory_space<vmem>>, vector<1x128xf32>
      %c0_25 = arith.constant 0 : index
      %c0_26 = arith.constant 0 : index
      %56 = vector.load %arg8[%c0_25, %c0_26] : memref<1x128xf32, #tpu.memory_space<vmem>>, vector<1x128xf32>
      %57 = arith.mulf %55, %56 : vector<1x128xf32>
      %c0_27 = arith.constant 0 : index
      %c0_28 = arith.constant 0 : index
      %58 = vector.load %arg9[%c0_27, %c0_28] : memref<1x128xf32, #tpu.memory_space<vmem>>, vector<1x128xf32>
      %c0_29 = arith.constant 0 : index
      %c0_30 = arith.constant 0 : index
      %59 = vector.load %arg25[%c0_29, %c0_30] : memref<1x128xf32, #tpu.memory_space<vmem>>, vector<1x128xf32>
      %60 = arith.mulf %59, %57 : vector<1x128xf32>
      %61 = arith.subf %58, %60 : vector<1x128xf32>
      %62 = vector.broadcast %57 : vector<1x128xf32> to vector<16x128xf32>
      %63 = arith.mulf %40, %62 : vector<16x128xf32>
      %64 = vector.broadcast %61 : vector<1x128xf32> to vector<16x128xf32>
      %65 = arith.addf %63, %64 : vector<16x128xf32>
      %cst_31 = arith.constant 0.000000e+00 : f32
      %66 = vector.broadcast %cst_31 : f32 to vector<16x128xf32>
      %67 = arith.maximumf %65, %66 : vector<16x128xf32>
      %68 = arith.truncf %67 : vector<16x128xf32> to vector<16x128xbf16>
      %c0_32 = arith.constant 0 : index
      %c0_33 = arith.constant 0 : index
      %69 = vector.load %arg10[%c0_32, %c0_33] : memref<128x1024xbf16, #tpu.memory_space<vmem>>, vector<128x1024xbf16>
      %cst_34 = arith.constant dense<0.000000e+00> : vector<16x1024xf32>
      %70 = tpu.matmul %68, %69, %cst_34 {dimension_numbers = #tpu.dot_dimension_numbers<[1], [0], [0], [1], [0, 0, 1, 1], [], []>} : vector<16x128xbf16>, vector<128x1024xbf16>, vector<16x1024xf32> -> vector<16x1024xf32>
      %c0_35 = arith.constant 0 : index
      %c0_36 = arith.constant 0 : index
      %71 = vector.load %arg11[%c0_35, %c0_36] : memref<1x1024xf32, #tpu.memory_space<vmem>>, vector<1x1024xf32>
      %72 = vector.broadcast %71 : vector<1x1024xf32> to vector<16x1024xf32>
      %73 = arith.addf %70, %72 : vector<16x1024xf32>
      %c0_37 = arith.constant 0 : index
      %c0_38 = arith.constant 0 : index
      %74 = vector.load %arg27[%c0_37, %c0_38] : memref<1x1024xf32, #tpu.memory_space<vmem>>, vector<1x1024xf32>
      %cst_39 = arith.constant dense<0.000000e+00> : vector<1024xf32>
      %75 = vector.multi_reduction <add>, %73, %cst_39 [0] : vector<16x1024xf32> to vector<1024xf32>
      %76 = vector.shape_cast %75 : vector<1024xf32> to vector<1x1024xf32>
      %77 = arith.addf %74, %76 : vector<1x1024xf32>
      %c0_40 = arith.constant 0 : index
      %c0_41 = arith.constant 0 : index
      %78 = vector.load %arg27[%c0_40, %c0_41] : memref<1x1024xf32, #tpu.memory_space<vmem>>, vector<1x1024xf32>
      tpu.vector_store %arg27[%c0_40, %c0_41], %77 {strides = array<i32>} : memref<1x1024xf32, #tpu.memory_space<vmem>>, vector<1x1024xf32>,
      %c0_42 = arith.constant 0 : index
      %c0_43 = arith.constant 0 : index
      %79 = vector.load %arg28[%c0_42, %c0_43] : memref<1x1024xf32, #tpu.memory_space<vmem>>, vector<1x1024xf32>
      %80 = arith.mulf %73, %73 : vector<16x1024xf32>
      %cst_44 = arith.constant dense<0.000000e+00> : vector<1024xf32>
      %81 = vector.multi_reduction <add>, %80, %cst_44 [0] : vector<16x1024xf32> to vector<1024xf32>
      %82 = vector.shape_cast %81 : vector<1024xf32> to vector<1x1024xf32>
      %83 = arith.addf %79, %82 : vector<1x1024xf32>
      %c0_45 = arith.constant 0 : index
      %c0_46 = arith.constant 0 : index
      %84 = vector.load %arg28[%c0_45, %c0_46] : memref<1x1024xf32, #tpu.memory_space<vmem>>, vector<1x1024xf32>
      tpu.vector_store %arg28[%c0_45, %c0_46], %83 {strides = array<i32>} : memref<1x1024xf32, #tpu.memory_space<vmem>>, vector<1x1024xf32>,
      %cst_47 = arith.constant dense<0xFF800000> : vector<1024xf32>
      %85 = vector.multi_reduction <maximumf>, %73, %cst_47 [0] : vector<16x1024xf32> to vector<1024xf32>
      %86 = vector.shape_cast %85 : vector<1024xf32> to vector<1x1024xf32>
      %cst_48 = arith.constant dense<0x7F800000> : vector<1024xf32>
      %87 = vector.multi_reduction <minimumf>, %73, %cst_48 [0] : vector<16x1024xf32> to vector<1024xf32>
      %88 = vector.shape_cast %87 : vector<1024xf32> to vector<1x1024xf32>
      %89 = arith.index_cast %arg1 : i32 to index
      %c0_49 = arith.constant 0 : index
      %90 = vector.load %arg29[%89, %c0_49] : memref<2x1024xf32, #tpu.memory_space<vmem>>, vector<1x1024xf32>
      %91 = arith.maximumf %90, %86 : vector<1x1024xf32>
      %92 = arith.index_cast %arg1 : i32 to index
      %c0_50 = arith.constant 0 : index
      %93 = vector.load %arg29[%92, %c0_50] : memref<2x1024xf32, #tpu.memory_space<vmem>>, vector<1x1024xf32>
      tpu.vector_store %arg29[%92, %c0_50], %91 {strides = array<i32>} : memref<2x1024xf32, #tpu.memory_space<vmem>>, vector<1x1024xf32>,
      %94 = arith.index_cast %arg1 : i32 to index
      %c0_51 = arith.constant 0 : index
      %95 = vector.load %arg30[%94, %c0_51] : memref<2x1024xf32, #tpu.memory_space<vmem>>, vector<1x1024xf32>
      %96 = arith.minimumf %95, %88 : vector<1x1024xf32>
      %97 = arith.index_cast %arg1 : i32 to index
      %c0_52 = arith.constant 0 : index
      %98 = vector.load %arg30[%97, %c0_52] : memref<2x1024xf32, #tpu.memory_space<vmem>>, vector<1x1024xf32>
      tpu.vector_store %arg30[%97, %c0_52], %96 {strides = array<i32>} : memref<2x1024xf32, #tpu.memory_space<vmem>>, vector<1x1024xf32>,
    } else {
    }
    %c1_i32_21 = arith.constant 1 : i32
    %51 = arith.cmpi eq, %arg0, %c1_i32_21 : i32
    %52 = arith.andi %51, %2 : i1
    %53 = arith.extui %52 : i1 to i32
    %c0_i32_22 = arith.constant 0 : i32
    %54 = arith.cmpi ne, %53, %c0_i32_22 : i32
    scf.if %54 {
      %c0_23 = arith.constant 0 : index
      %c0_24 = arith.constant 0 : index
      %55 = vector.load %arg27[%c0_23, %c0_24] : memref<1x1024xf32, #tpu.memory_space<vmem>>, vector<1x1024xf32>
      %cst_25 = arith.constant 3.125000e-02 : f32
      %56 = vector.broadcast %cst_25 : f32 to vector<1x1024xf32>
      %57 = arith.mulf %55, %56 : vector<1x1024xf32>
      %c0_26 = arith.constant 0 : index
      %c0_27 = arith.constant 0 : index
      %58 = vector.load %arg28[%c0_26, %c0_27] : memref<1x1024xf32, #tpu.memory_space<vmem>>, vector<1x1024xf32>
      %cst_28 = arith.constant 3.125000e-02 : f32
      %59 = vector.broadcast %cst_28 : f32 to vector<1x1024xf32>
      %60 = arith.mulf %58, %59 : vector<1x1024xf32>
      %61 = arith.mulf %57, %57 : vector<1x1024xf32>
      %62 = arith.subf %60, %61 : vector<1x1024xf32>
      %cst_29 = arith.constant 0.000000e+00 : f32
      %63 = vector.broadcast %cst_29 : f32 to vector<1x1024xf32>
      %64 = arith.maximumf %62, %63 : vector<1x1024xf32>
      %c0_30 = arith.constant 0 : index
      %c0_31 = arith.constant 0 : index
      %65 = vector.load %arg27[%c0_30, %c0_31] : memref<1x1024xf32, #tpu.memory_space<vmem>>, vector<1x1024xf32>
      tpu.vector_store %arg27[%c0_30, %c0_31], %57 {strides = array<i32>} : memref<1x1024xf32, #tpu.memory_space<vmem>>, vector<1x1024xf32>,
      %cst_32 = arith.constant 9.99999974E-6 : f32
      %66 = vector.broadcast %cst_32 : f32 to vector<1x1024xf32>
      %67 = arith.addf %64, %66 : vector<1x1024xf32>
      %68 = math.rsqrt %67 : vector<1x1024xf32>
      %c0_33 = arith.constant 0 : index
      %c0_34 = arith.constant 0 : index
      %69 = vector.load %arg28[%c0_33, %c0_34] : memref<1x1024xf32, #tpu.memory_space<vmem>>, vector<1x1024xf32>
      tpu.vector_store %arg28[%c0_33, %c0_34], %68 {strides = array<i32>} : memref<1x1024xf32, #tpu.memory_space<vmem>>, vector<1x1024xf32>,
      %c0_35 = arith.constant 0 : index
      %c0_36 = arith.constant 0 : index
      %70 = vector.load %arg28[%c0_35, %c0_36] : memref<1x1024xf32, #tpu.memory_space<vmem>>, vector<1x1024xf32>
      %c0_37 = arith.constant 0 : index
      %c0_38 = arith.constant 0 : index
      %71 = vector.load %arg12[%c0_37, %c0_38] : memref<1x1024xf32, #tpu.memory_space<vmem>>, vector<1x1024xf32>
      %72 = arith.mulf %70, %71 : vector<1x1024xf32>
      %c0_39 = arith.constant 0 : index
      %c0_40 = arith.constant 0 : index
      %73 = vector.load %arg13[%c0_39, %c0_40] : memref<1x1024xf32, #tpu.memory_space<vmem>>, vector<1x1024xf32>
      %c0_41 = arith.constant 0 : index
      %c0_42 = arith.constant 0 : index
      %74 = vector.load %arg27[%c0_41, %c0_42] : memref<1x1024xf32, #tpu.memory_space<vmem>>, vector<1x1024xf32>
      %75 = arith.mulf %74, %72 : vector<1x1024xf32>
      %76 = arith.subf %73, %75 : vector<1x1024xf32>
      %cst_43 = arith.constant 0.000000e+00 : f32
      %77 = vector.broadcast %cst_43 : f32 to vector<1x1024xf32>
      %78 = arith.cmpf oge, %72, %77 : vector<1x1024xf32>
      %c0_44 = arith.constant 0 : index
      %c0_45 = arith.constant 0 : index
      %79 = vector.load %arg29[%c0_44, %c0_45] : memref<2x1024xf32, #tpu.memory_space<vmem>>, vector<2x1024xf32>
      %c0_46 = arith.constant 0 : index
      %c0_47 = arith.constant 0 : index
      %80 = vector.load %arg30[%c0_46, %c0_47] : memref<2x1024xf32, #tpu.memory_space<vmem>>, vector<2x1024xf32>
      %81 = vector.shape_cast %78 : vector<1x1024xi1> to vector<1x1024xi1>
      %82 = vector.broadcast %81 : vector<1x1024xi1> to vector<2x1024xi1>
      %83 = arith.select %82, %79, %80 : vector<2x1024xi1>, vector<2x1024xf32>
      %84 = vector.broadcast %72 : vector<1x1024xf32> to vector<2x1024xf32>
      %85 = arith.mulf %83, %84 : vector<2x1024xf32>
      %86 = vector.broadcast %76 : vector<1x1024xf32> to vector<2x1024xf32>
      %87 = arith.addf %85, %86 : vector<2x1024xf32>
      %cst_48 = arith.constant 0.000000e+00 : f32
      %88 = vector.broadcast %cst_48 : f32 to vector<2x1024xf32>
      %89 = arith.maximumf %87, %88 : vector<2x1024xf32>
      %90 = arith.truncf %89 : vector<2x1024xf32> to vector<2x1024xbf16>
      %c0_49 = arith.constant 0 : index
      %c0_50 = arith.constant 0 : index
      %91 = vector.load %arg14[%c0_49, %c0_50] : memref<1024x512xbf16, #tpu.memory_space<vmem>>, vector<1024x512xbf16>
      %cst_51 = arith.constant dense<0.000000e+00> : vector<2x512xf32>
      %92 = tpu.matmul %90, %91, %cst_51 {dimension_numbers = #tpu.dot_dimension_numbers<[1], [0], [0], [1], [0, 0, 1, 1], [], []>} : vector<2x1024xbf16>, vector<1024x512xbf16>, vector<2x512xf32> -> vector<2x512xf32>
      %c0_52 = arith.constant 0 : index
      %c0_53 = arith.constant 0 : index
      %93 = vector.load %arg15[%c0_52, %c0_53] : memref<1x512xf32, #tpu.memory_space<vmem>>, vector<1x512xf32>
      %94 = vector.broadcast %93 : vector<1x512xf32> to vector<2x512xf32>
      %95 = arith.addf %92, %94 : vector<2x512xf32>
      %c0_54 = arith.constant 0 : index
      %c0_55 = arith.constant 0 : index
      %96 = vector.load %arg16[%c0_54, %c0_55] : memref<1x512xf32, #tpu.memory_space<vmem>>, vector<1x512xf32>
      %c0_56 = arith.constant 0 : index
      %c0_57 = arith.constant 0 : index
      %97 = vector.load %arg17[%c0_56, %c0_57] : memref<1x512xf32, #tpu.memory_space<vmem>>, vector<1x512xf32>
      %cst_58 = arith.constant dense<0.000000e+00> : vector<512xf32>
      %98 = vector.multi_reduction <add>, %95, %cst_58 [0] : vector<2x512xf32> to vector<512xf32>
      %99 = vector.shape_cast %98 : vector<512xf32> to vector<1x512xf32>
      %cst_59 = arith.constant 2.000000e+00 : f32
      %100 = vector.broadcast %cst_59 : f32 to vector<1x512xf32>
      %101 = arith.divf %99, %100 : vector<1x512xf32>
      %102 = vector.broadcast %101 : vector<1x512xf32> to vector<2x512xf32>
      %103 = arith.subf %95, %102 : vector<2x512xf32>
      %104 = arith.mulf %103, %103 : vector<2x512xf32>
      %cst_60 = arith.constant dense<0.000000e+00> : vector<512xf32>
      %105 = vector.multi_reduction <add>, %104, %cst_60 [0] : vector<2x512xf32> to vector<512xf32>
      %106 = vector.shape_cast %105 : vector<512xf32> to vector<1x512xf32>
      %cst_61 = arith.constant 2.000000e+00 : f32
      %107 = vector.broadcast %cst_61 : f32 to vector<1x512xf32>
      %108 = arith.divf %106, %107 : vector<1x512xf32>
      %109 = vector.broadcast %101 : vector<1x512xf32> to vector<2x512xf32>
      %110 = arith.subf %95, %109 : vector<2x512xf32>
      %cst_62 = arith.constant 9.99999974E-6 : f32
      %111 = vector.broadcast %cst_62 : f32 to vector<1x512xf32>
      %112 = arith.addf %108, %111 : vector<1x512xf32>
      %113 = math.rsqrt %112 : vector<1x512xf32>
      %114 = vector.broadcast %113 : vector<1x512xf32> to vector<2x512xf32>
      %115 = arith.mulf %110, %114 : vector<2x512xf32>
      %116 = vector.broadcast %96 : vector<1x512xf32> to vector<2x512xf32>
      %117 = arith.mulf %115, %116 : vector<2x512xf32>
      %118 = vector.broadcast %97 : vector<1x512xf32> to vector<2x512xf32>
      %119 = arith.addf %117, %118 : vector<2x512xf32>
      %120 = arith.truncf %119 : vector<2x512xf32> to vector<2x512xbf16>
      %c0_63 = arith.constant 0 : index
      %c0_64 = arith.constant 0 : index
      %121 = vector.load %arg18[%c0_63, %c0_64] : memref<512x256xbf16, #tpu.memory_space<vmem>>, vector<512x256xbf16>
      %cst_65 = arith.constant dense<0.000000e+00> : vector<2x256xf32>
      %122 = tpu.matmul %120, %121, %cst_65 {dimension_numbers = #tpu.dot_dimension_numbers<[1], [0], [0], [1], [0, 0, 1, 1], [], []>} : vector<2x512xbf16>, vector<512x256xbf16>, vector<2x256xf32> -> vector<2x256xf32>
      %c0_66 = arith.constant 0 : index
      %c0_67 = arith.constant 0 : index
      %123 = vector.load %arg19[%c0_66, %c0_67] : memref<1x256xf32, #tpu.memory_space<vmem>>, vector<1x256xf32>
      %124 = vector.broadcast %123 : vector<1x256xf32> to vector<2x256xf32>
      %125 = arith.addf %122, %124 : vector<2x256xf32>
      %c0_68 = arith.constant 0 : index
      %c0_69 = arith.constant 0 : index
      %126 = vector.load %arg20[%c0_68, %c0_69] : memref<1x256xf32, #tpu.memory_space<vmem>>, vector<1x256xf32>
      %c0_70 = arith.constant 0 : index
      %c0_71 = arith.constant 0 : index
      %127 = vector.load %arg21[%c0_70, %c0_71] : memref<1x256xf32, #tpu.memory_space<vmem>>, vector<1x256xf32>
      %cst_72 = arith.constant dense<0.000000e+00> : vector<256xf32>
      %128 = vector.multi_reduction <add>, %125, %cst_72 [0] : vector<2x256xf32> to vector<256xf32>
      %129 = vector.shape_cast %128 : vector<256xf32> to vector<1x256xf32>
      %cst_73 = arith.constant 2.000000e+00 : f32
      %130 = vector.broadcast %cst_73 : f32 to vector<1x256xf32>
      %131 = arith.divf %129, %130 : vector<1x256xf32>
      %132 = vector.broadcast %131 : vector<1x256xf32> to vector<2x256xf32>
      %133 = arith.subf %125, %132 : vector<2x256xf32>
      %134 = arith.mulf %133, %133 : vector<2x256xf32>
      %cst_74 = arith.constant dense<0.000000e+00> : vector<256xf32>
      %135 = vector.multi_reduction <add>, %134, %cst_74 [0] : vector<2x256xf32> to vector<256xf32>
      %136 = vector.shape_cast %135 : vector<256xf32> to vector<1x256xf32>
      %cst_75 = arith.constant 2.000000e+00 : f32
      %137 = vector.broadcast %cst_75 : f32 to vector<1x256xf32>
      %138 = arith.divf %136, %137 : vector<1x256xf32>
      %139 = vector.broadcast %131 : vector<1x256xf32> to vector<2x256xf32>
      %140 = arith.subf %125, %139 : vector<2x256xf32>
      %cst_76 = arith.constant 9.99999974E-6 : f32
      %141 = vector.broadcast %cst_76 : f32 to vector<1x256xf32>
      %142 = arith.addf %138, %141 : vector<1x256xf32>
      %143 = math.rsqrt %142 : vector<1x256xf32>
      %144 = vector.broadcast %143 : vector<1x256xf32> to vector<2x256xf32>
      %145 = arith.mulf %140, %144 : vector<2x256xf32>
      %146 = vector.broadcast %126 : vector<1x256xf32> to vector<2x256xf32>
      %147 = arith.mulf %145, %146 : vector<2x256xf32>
      %148 = vector.broadcast %127 : vector<1x256xf32> to vector<2x256xf32>
      %149 = arith.addf %147, %148 : vector<2x256xf32>
      %c0_77 = arith.constant 0 : index
      %c0_78 = arith.constant 0 : index
      %150 = vector.load %arg22[%c0_77, %c0_78] : memref<256x128xf32, #tpu.memory_space<vmem>>, vector<256x128xf32>
      %cst_79 = arith.constant dense<0.000000e+00> : vector<2x128xf32>
      %151 = tpu.matmul %149, %150, %cst_79 {dimension_numbers = #tpu.dot_dimension_numbers<[1], [0], [0], [1], [0, 0, 1, 1], [], []>} : vector<2x256xf32>, vector<256x128xf32>, vector<2x128xf32> -> vector<2x128xf32>
      %c0_80 = arith.constant 0 : index
      %c0_81 = arith.constant 0 : index
      %152 = vector.load %arg23[%c0_80, %c0_81] : memref<1x128xf32, #tpu.memory_space<vmem>>, vector<1x128xf32>
      %153 = vector.broadcast %152 : vector<1x128xf32> to vector<2x128xf32>
      %154 = arith.addf %151, %153 : vector<2x128xf32>
      %c0_82 = arith.constant 0 : index
      %c0_83 = arith.constant 0 : index
      %155 = vector.load %arg24[%c0_82, %c0_83] : memref<2x128xf32, #tpu.memory_space<vmem>>, vector<2x128xf32>
      tpu.vector_store %arg24[%c0_82, %c0_83], %154 {strides = array<i32>} : memref<2x128xf32, #tpu.memory_space<vmem>>, vector<2x128xf32>,
    } else {
    }
    return
  }
  func.func @transform_0(%arg0: i32, %arg1: i32, %arg2: i32) -> (i32, i32, i32) {
    %c0_i32 = arith.constant 0 : i32
    %c0_i32_0 = arith.constant 0 : i32
    return %arg1, %arg2, %c0_i32 : i32, i32, i32
  }
  func.func @transform_1(%arg0: i32, %arg1: i32, %arg2: i32) -> (i32, i32) {
    %c0_i32 = arith.constant 0 : i32
    %c0_i32_0 = arith.constant 0 : i32
    %c0_i32_1 = arith.constant 0 : i32
    return %c0_i32, %c0_i32_0 : i32, i32
  }
  func.func @transform_2(%arg0: i32, %arg1: i32, %arg2: i32) -> (i32, i32) {
    %c0_i32 = arith.constant 0 : i32
    %c0_i32_0 = arith.constant 0 : i32
    %c0_i32_1 = arith.constant 0 : i32
    return %c0_i32, %c0_i32_0 : i32, i32
  }
  func.func @transform_3(%arg0: i32, %arg1: i32, %arg2: i32) -> (i32, i32) {
    %c0_i32 = arith.constant 0 : i32
    %c0_i32_0 = arith.constant 0 : i32
    %c0_i32_1 = arith.constant 0 : i32
    return %c0_i32, %c0_i32_0 : i32, i32
  }
  func.func @transform_4(%arg0: i32, %arg1: i32, %arg2: i32) -> (i32, i32) {
    %c0_i32 = arith.constant 0 : i32
    %c0_i32_0 = arith.constant 0 : i32
    %c0_i32_1 = arith.constant 0 : i32
    return %c0_i32, %c0_i32_0 : i32, i32
  }
  func.func @transform_5(%arg0: i32, %arg1: i32, %arg2: i32) -> (i32, i32) {
    %c0_i32 = arith.constant 0 : i32
    %c0_i32_0 = arith.constant 0 : i32
    %c0_i32_1 = arith.constant 0 : i32
    return %c0_i32, %c0_i32_0 : i32, i32
  }
  func.func @transform_6(%arg0: i32, %arg1: i32, %arg2: i32) -> (i32, i32) {
    %c0_i32 = arith.constant 0 : i32
    %c0_i32_0 = arith.constant 0 : i32
    %c0_i32_1 = arith.constant 0 : i32
    return %c0_i32, %c0_i32_0 : i32, i32
  }
  func.func @transform_7(%arg0: i32, %arg1: i32, %arg2: i32) -> (i32, i32) {
    %c0_i32 = arith.constant 0 : i32
    %c0_i32_0 = arith.constant 0 : i32
    %c0_i32_1 = arith.constant 0 : i32
    return %c0_i32, %c0_i32_0 : i32, i32
  }
  func.func @transform_8(%arg0: i32, %arg1: i32, %arg2: i32) -> (i32, i32) {
    %c0_i32 = arith.constant 0 : i32
    %c0_i32_0 = arith.constant 0 : i32
    %c0_i32_1 = arith.constant 0 : i32
    return %c0_i32, %c0_i32_0 : i32, i32
  }
  func.func @transform_9(%arg0: i32, %arg1: i32, %arg2: i32) -> (i32, i32) {
    %c0_i32 = arith.constant 0 : i32
    %c0_i32_0 = arith.constant 0 : i32
    %c0_i32_1 = arith.constant 0 : i32
    return %c0_i32, %c0_i32_0 : i32, i32
  }
  func.func @transform_10(%arg0: i32, %arg1: i32, %arg2: i32) -> (i32, i32) {
    %c0_i32 = arith.constant 0 : i32
    %c0_i32_0 = arith.constant 0 : i32
    %c0_i32_1 = arith.constant 0 : i32
    return %c0_i32, %c0_i32_0 : i32, i32
  }
  func.func @transform_11(%arg0: i32, %arg1: i32, %arg2: i32) -> (i32, i32) {
    %c0_i32 = arith.constant 0 : i32
    %c0_i32_0 = arith.constant 0 : i32
    %c0_i32_1 = arith.constant 0 : i32
    return %c0_i32, %c0_i32_0 : i32, i32
  }
  func.func @transform_12(%arg0: i32, %arg1: i32, %arg2: i32) -> (i32, i32) {
    %c0_i32 = arith.constant 0 : i32
    %c0_i32_0 = arith.constant 0 : i32
    %c0_i32_1 = arith.constant 0 : i32
    return %c0_i32, %c0_i32_0 : i32, i32
  }
  func.func @transform_13(%arg0: i32, %arg1: i32, %arg2: i32) -> (i32, i32) {
    %c0_i32 = arith.constant 0 : i32
    %c0_i32_0 = arith.constant 0 : i32
    %c0_i32_1 = arith.constant 0 : i32
    return %c0_i32, %c0_i32_0 : i32, i32
  }
  func.func @transform_14(%arg0: i32, %arg1: i32, %arg2: i32) -> (i32, i32) {
    %c0_i32 = arith.constant 0 : i32
    %c0_i32_0 = arith.constant 0 : i32
    %c0_i32_1 = arith.constant 0 : i32
    return %c0_i32, %c0_i32_0 : i32, i32
  }
  func.func @transform_15(%arg0: i32, %arg1: i32, %arg2: i32) -> (i32, i32) {
    %c0_i32 = arith.constant 0 : i32
    %c0_i32_0 = arith.constant 0 : i32
    %c0_i32_1 = arith.constant 0 : i32
    return %c0_i32, %c0_i32_0 : i32, i32
  }
  func.func @transform_16(%arg0: i32, %arg1: i32, %arg2: i32) -> (i32, i32) {
    %c0_i32 = arith.constant 0 : i32
    %c0_i32_0 = arith.constant 0 : i32
    %c0_i32_1 = arith.constant 0 : i32
    return %c0_i32, %c0_i32_0 : i32, i32
  }
  func.func @transform_17(%arg0: i32, %arg1: i32, %arg2: i32) -> (i32, i32) {
    %c0_i32 = arith.constant 0 : i32
    %c0_i32_0 = arith.constant 0 : i32
    %c0_i32_1 = arith.constant 0 : i32
    return %c0_i32, %c0_i32_0 : i32, i32
  }
  func.func @transform_18(%arg0: i32, %arg1: i32, %arg2: i32) -> (i32, i32) {
    %c0_i32 = arith.constant 0 : i32
    %c0_i32_0 = arith.constant 0 : i32
    %c0_i32_1 = arith.constant 0 : i32
    return %c0_i32, %c0_i32_0 : i32, i32
  }
  func.func @transform_19(%arg0: i32, %arg1: i32, %arg2: i32) -> (i32, i32) {
    %c0_i32 = arith.constant 0 : i32
    %c0_i32_0 = arith.constant 0 : i32
    %c0_i32_1 = arith.constant 0 : i32
    return %c0_i32, %c0_i32_0 : i32, i32
  }
  func.func @transform_20(%arg0: i32, %arg1: i32, %arg2: i32) -> (i32, i32) {
    %c0_i32 = arith.constant 0 : i32
    %c0_i32_0 = arith.constant 0 : i32
    %c0_i32_1 = arith.constant 0 : i32
    return %c0_i32, %c0_i32_0 : i32, i32
  }
  func.func @transform_21(%arg0: i32, %arg1: i32, %arg2: i32) -> (i32, i32) {
    %c0_i32 = arith.constant 0 : i32
    %c0_i32_0 = arith.constant 0 : i32
    %c0_i32_1 = arith.constant 0 : i32
    return %c0_i32, %c0_i32_0 : i32, i32
  }
}

</mosaic_0001>

<llo_original>
// kernel: input_transform_net_alt_forward.1
$region0: #{input_transform_net_alt_forward.1}
  #allocation0 [shape = 'u32[]', space=smem, size = 0x4, offset = 0x4, fixed_abs, tag = 'smem constant byte address 0x4 - core index']
  #allocation1 [shape = 'u32[144,128]{1,0:T(1,128)}', space=vmem, size = 0x12000, scoped, tag = 'internal scratch']
  #allocation2 [shape = 'f32[1,128]{1,0:T(1,128)}', space=vmem, size = 0x200, scoped, tag = 'scratch operand']
  #allocation3 [shape = 'f32[1,128]{1,0:T(1,128)}', space=vmem, size = 0x200, scoped, tag = 'scratch operand']
  #allocation4 [shape = 'f32[1,1024]{1,0:T(1,128)}', space=vmem, size = 0x1000, scoped, tag = 'scratch operand']
  #allocation5 [shape = 'f32[1,1024]{1,0:T(1,128)}', space=vmem, size = 0x1000, scoped, tag = 'scratch operand']
  #allocation6 [shape = 'f32[2,1024]{1,0:T(2,128)}', space=vmem, size = 0x2000, scoped, tag = 'scratch operand']
  #allocation7 [shape = 'f32[2,1024]{1,0:T(2,128)}', space=vmem, size = 0x2000, scoped, tag = 'scratch operand']
  %s0 = inlined_call_operand.vmem [shape: f32[2,16,8], index: 0, kind: input, shape index: {}]
  %s1 = inlined_call_operand.vmem [shape: f32[3,64], index: 1, kind: input, shape index: {}]
  %s2 = inlined_call_operand.vmem [shape: f32[1,64], index: 2, kind: input, shape index: {}]
  %s3 = inlined_call_operand.vmem [shape: bf16[64,128], index: 3, kind: input, shape index: {}]
  %s4 = inlined_call_operand.vmem [shape: f32[1,128], index: 4, kind: input, shape index: {}]
  %s5 = inlined_call_operand.vmem [shape: f32[1,128], index: 5, kind: input, shape index: {}]
  %s6 = inlined_call_operand.vmem [shape: f32[1,128], index: 6, kind: input, shape index: {}]
  %s7 = inlined_call_operand.vmem [shape: bf16[128,1024], index: 7, kind: input, shape index: {}]
  %s8 = inlined_call_operand.vmem [shape: f32[1,1024], index: 8, kind: input, shape index: {}]
  %s9 = inlined_call_operand.vmem [shape: f32[1,1024], index: 9, kind: input, shape index: {}]
  %s10 = inlined_call_operand.vmem [shape: f32[1,1024], index: 10, kind: input, shape index: {}]
  %s11 = inlined_call_operand.vmem [shape: bf16[1024,512], index: 11, kind: input, shape index: {}]
  %s12 = inlined_call_operand.vmem [shape: f32[1,512], index: 12, kind: input, shape index: {}]
  %s13 = inlined_call_operand.vmem [shape: f32[1,512], index: 13, kind: input, shape index: {}]
  %s14 = inlined_call_operand.vmem [shape: f32[1,512], index: 14, kind: input, shape index: {}]
  %s15 = inlined_call_operand.vmem [shape: bf16[512,256], index: 15, kind: input, shape index: {}]
  %s16 = inlined_call_operand.vmem [shape: f32[1,256], index: 16, kind: input, shape index: {}]
  %s17 = inlined_call_operand.vmem [shape: f32[1,256], index: 17, kind: input, shape index: {}]
  %s18 = inlined_call_operand.vmem [shape: f32[1,256], index: 18, kind: input, shape index: {}]
  %s19 = inlined_call_operand.vmem [shape: f32[256,128], index: 19, kind: input, shape index: {}]
  %s20 = inlined_call_operand.vmem [shape: f32[1,128], index: 20, kind: input, shape index: {}]
  %s21 = inlined_call_operand.vmem [shape: f32[2,128], index: 21, kind: output, shape index: {}]
  %s22 = sld [smem:[#allocation0]]
  $region137: #{input_transform_net_alt_forward.1} parent=0
    _
  %s24 = ssub.s32 1, %s22
  %s25 = scalar_select 0, %s24, %s22
  loop: start=0, step=1, limit=6
  $region2: #{input_transform_net_alt_forward.1} parent=0 // loop_pre_header
    _
  $region3: #{input_transform_net_alt_forward.1} parent=0 // loop_header
    %s27 = sphi 0, %s31
    %p28 = scmp.ge.s32.totalorder %s27, 6
    %s34 = sphi 0, %s53
    %s35 = sphi 0, %s49
    %s36 = sphi 0, %s45
    %s37 = sphi 0, %s34
    %s38 = sphi 0, %s35
    %s39 = sphi 0, %s36
    %s40 = sphi 0, %s37
    %s41 = sphi 0, %s38
    %s42 = sphi 0, %s39
    %s58 = sphi 0, %s60
    %s61 = sphi 0, %s58
    %s62 = sphi 0, %s61
    %s78 = sphi 0, %s62
    %s82 = sphi 0, %s82
    %s84 = sphi 0, %s82
    %s85 = sphi 0, %s84
    %s99 = sphi 0, %s85
    %s103 = sphi 0, %s103
    %s105 = sphi 0, %s103
    %s106 = sphi 0, %s105
    %s120 = sphi 0, %s106
    %s124 = sphi 0, %s124
    %s126 = sphi 0, %s124
    %s127 = sphi 0, %s126
    %s141 = sphi 0, %s127
    %s145 = sphi 0, %s145
    %s147 = sphi 0, %s145
    %s148 = sphi 0, %s147
    %s162 = sphi 0, %s148
    %s166 = sphi 0, %s166
    %s168 = sphi 0, %s166
    %s169 = sphi 0, %s168
    %s183 = sphi 0, %s169
    %s187 = sphi 0, %s187
    %s189 = sphi 0, %s187
    %s190 = sphi 0, %s189
    %s204 = sphi 0, %s190
    %s208 = sphi 0, %s208
    %s210 = sphi 0, %s208
    %s211 = sphi 0, %s210
    %s225 = sphi 0, %s211
    %s229 = sphi 0, %s229
    %s231 = sphi 0, %s229
    %s232 = sphi 0, %s231
    %s246 = sphi 0, %s232
    %s250 = sphi 0, %s250
    %s252 = sphi 0, %s250
    %s253 = sphi 0, %s252
    %s267 = sphi 0, %s253
    %s271 = sphi 0, %s271
    %s273 = sphi 0, %s271
    %s274 = sphi 0, %s273
    %s288 = sphi 0, %s274
    %s292 = sphi 0, %s292
    %s294 = sphi 0, %s292
    %s295 = sphi 0, %s294
    %s309 = sphi 0, %s295
    %s313 = sphi 0, %s313
    %s315 = sphi 0, %s313
    %s316 = sphi 0, %s315
    %s330 = sphi 0, %s316
    %s334 = sphi 0, %s334
    %s336 = sphi 0, %s334
    %s337 = sphi 0, %s336
    %s351 = sphi 0, %s337
    %s355 = sphi 0, %s355
    %s357 = sphi 0, %s355
    %s358 = sphi 0, %s357
    %s372 = sphi 0, %s358
    %s376 = sphi 0, %s376
    %s378 = sphi 0, %s376
    %s379 = sphi 0, %s378
    %s393 = sphi 0, %s379
    %s397 = sphi 0, %s397
    %s399 = sphi 0, %s397
    %s400 = sphi 0, %s399
    %s414 = sphi 0, %s400
    %s418 = sphi 0, %s418
    %s420 = sphi 0, %s418
    %s421 = sphi 0, %s420
    %s435 = sphi 0, %s421
    %s439 = sphi 0, %s439
    %s441 = sphi 0, %s439
    %s442 = sphi 0, %s441
    %s456 = sphi 0, %s442
    %s460 = sphi 0, %s460
    %s462 = sphi 0, %s460
    %s463 = sphi 0, %s462
    %s477 = sphi 0, %s463
    %s481 = sphi 0, %s481
    %s483 = sphi 0, %s481
    %s484 = sphi 0, %s483
    %s498 = sphi 0, %s484
    %s502 = sphi 0, %s502
    %s504 = sphi 0, %s502
    %s505 = sphi 0, %s504
    %s519 = sphi 0, %s505
  $region4: #{input_transform_net_alt_forward.1} parent=0 // loop_header_branch
    %30 = sbr.rel (%p28) target = $region8
  $region5: #{input_transform_net_alt_forward.1} parent=0 // loop_body
    %s32 = ssub.s32 %s27, 1
    %s33 = ssub.s32 %s27, 2
    %s43 = sadd.s32 1, %s36
    %p44 = scmp.ge.s32.totalorder %s43, 1
    %s45 = scalar_select %p44, 0, %s43
    %s46 = sadd.s32 1, %s35
    %s47 = scalar_select %p44, %s46, %s35
    %p48 = scmp.ge.s32.totalorder %s47, 2
    %s49 = scalar_select %p48, 0, %s47
    %s50 = sadd.s32 1, %s34
    %s51 = scalar_select %p48, %s50, %s34
    %p52 = scmp.ge.s32.totalorder %s51, 2
    %s53 = scalar_select %p52, 0, %s51
    %s54 = ssub.s32 %s35, %s49
    %s55 = ssub.s32 %s36, %s45
    %s56 = sor.u32 %s54, %s55
    %p57 = scmp.eq.s32.totalorder %s56, 0
    %s59 = sadd.s32 %s58, 1
    %s60 = scalar_select %p57, %s58, %s59
    %p63 = pneg %p57
    %p64 = scmp.eq.s32.totalorder %s27, 3
    %p65 = por %p63, %p64
    %p66 = scmp.ne.s32.totalorder %s58, %s61
    %p67 = scmp.eq.s32.totalorder %s27, 0
    %p68 = por %p66, %p67
    %p69 = scmp.ne.s32.totalorder %s58, %s61
    %p70 = scmp.eq.s32.totalorder %s32, 3
    %p71 = por %p69, %p70
    %p72 = scmp.ne.s32.totalorder %s61, %s62
    %p73 = scmp.eq.s32.totalorder %s32, 0
    %p74 = por %p72, %p73
    %p75 = scmp.ne.s32.totalorder %s61, %s62
    %p76 = scmp.eq.s32.totalorder %s33, 3
    %p77 = por %p75, %p76
    %p79 = scmp.ne.s32.totalorder %s62, %s78
    %p80 = scmp.eq.s32.totalorder %s33, 0
    %p81 = por %p79, %p80
    %s83 = sadd.s32 %s82, 1
    %p86 = scmp.eq.s32.totalorder %s27, 3
    %p87 = scmp.ne.s32.totalorder %s82, %s84
    %p88 = scmp.eq.s32.totalorder %s27, 0
    %p89 = por %p87, %p88
    %p90 = scmp.ne.s32.totalorder %s82, %s84
    %p91 = scmp.eq.s32.totalorder %s32, 3
    %p92 = por %p90, %p91
    %p93 = scmp.ne.s32.totalorder %s84, %s85
    %p94 = scmp.eq.s32.totalorder %s32, 0
    %p95 = por %p93, %p94
    %p96 = scmp.ne.s32.totalorder %s84, %s85
    %p97 = scmp.eq.s32.totalorder %s33, 3
    %p98 = por %p96, %p97
    %p100 = scmp.ne.s32.totalorder %s85, %s99
    %p101 = scmp.eq.s32.totalorder %s33, 0
    %p102 = por %p100, %p101
    %s104 = sadd.s32 %s103, 1
    %p107 = scmp.eq.s32.totalorder %s27, 3
    %p108 = scmp.ne.s32.totalorder %s103, %s105
    %p109 = scmp.eq.s32.totalorder %s27, 0
    %p110 = por %p108, %p109
    %p111 = scmp.ne.s32.totalorder %s103, %s105
    %p112 = scmp.eq.s32.totalorder %s32, 3
    %p113 = por %p111, %p112
    %p114 = scmp.ne.s32.totalorder %s105, %s106
    %p115 = scmp.eq.s32.totalorder %s32, 0
    %p116 = por %p114, %p115
    %p117 = scmp.ne.s32.totalorder %s105, %s106
    %p118 = scmp.eq.s32.totalorder %s33, 3
    %p119 = por %p117, %p118
    %p121 = scmp.ne.s32.totalorder %s106, %s120
    %p122 = scmp.eq.s32.totalorder %s33, 0
    %p123 = por %p121, %p122
    %s125 = sadd.s32 %s124, 1
    %p128 = scmp.eq.s32.totalorder %s27, 3
    %p129 = scmp.ne.s32.totalorder %s124, %s126
    %p130 = scmp.eq.s32.totalorder %s27, 0
    %p131 = por %p129, %p130
    %p132 = scmp.ne.s32.totalorder %s124, %s126
    %p133 = scmp.eq.s32.totalorder %s32, 3
    %p134 = por %p132, %p133
    %p135 = scmp.ne.s32.totalorder %s126, %s127
    %p136 = scmp.eq.s32.totalorder %s32, 0
    %p137 = por %p135, %p136
    %p138 = scmp.ne.s32.totalorder %s126, %s127
    %p139 = scmp.eq.s32.totalorder %s33, 3
    %p140 = por %p138, %p139
    %p142 = scmp.ne.s32.totalorder %s127, %s141
    %p143 = scmp.eq.s32.totalorder %s33, 0
    %p144 = por %p142, %p143
    %s146 = sadd.s32 %s145, 1
    %p149 = scmp.eq.s32.totalorder %s27, 3
    %p150 = scmp.ne.s32.totalorder %s145, %s147
    %p151 = scmp.eq.s32.totalorder %s27, 0
    %p152 = por %p150, %p151
    %p153 = scmp.ne.s32.totalorder %s145, %s147
    %p154 = scmp.eq.s32.totalorder %s32, 3
    %p155 = por %p153, %p154
    %p156 = scmp.ne.s32.totalorder %s147, %s148
    %p157 = scmp.eq.s32.totalorder %s32, 0
    %p158 = por %p156, %p157
    %p159 = scmp.ne.s32.totalorder %s147, %s148
    %p160 = scmp.eq.s32.totalorder %s33, 3
    %p161 = por %p159, %p160
    %p163 = scmp.ne.s32.totalorder %s148, %s162
    %p164 = scmp.eq.s32.totalorder %s33, 0
    %p165 = por %p163, %p164
    %s167 = sadd.s32 %s166, 1
    %p170 = scmp.eq.s32.totalorder %s27, 3
    %p171 = scmp.ne.s32.totalorder %s166, %s168
    %p172 = scmp.eq.s32.totalorder %s27, 0
    %p173 = por %p171, %p172
    %p174 = scmp.ne.s32.totalorder %s166, %s168
    %p175 = scmp.eq.s32.totalorder %s32, 3
    %p176 = por %p174, %p175
    %p177 = scmp.ne.s32.totalorder %s168, %s169
    %p178 = scmp.eq.s32.totalorder %s32, 0
    %p179 = por %p177, %p178
    %p180 = scmp.ne.s32.totalorder %s168, %s169
    %p181 = scmp.eq.s32.totalorder %s33, 3
    %p182 = por %p180, %p181
    %p184 = scmp.ne.s32.totalorder %s169, %s183
    %p185 = scmp.eq.s32.totalorder %s33, 0
    %p186 = por %p184, %p185
    %s188 = sadd.s32 %s187, 1
    %p191 = scmp.eq.s32.totalorder %s27, 3
    %p192 = scmp.ne.s32.totalorder %s187, %s189
    %p193 = scmp.eq.s32.totalorder %s27, 0
    %p194 = por %p192, %p193
    %p195 = scmp.ne.s32.totalorder %s187, %s189
    %p196 = scmp.eq.s32.totalorder %s32, 3
    %p197 = por %p195, %p196
    %p198 = scmp.ne.s32.totalorder %s189, %s190
    %p199 = scmp.eq.s32.totalorder %s32, 0
    %p200 = por %p198, %p199
    %p201 = scmp.ne.s32.totalorder %s189, %s190
    %p202 = scmp.eq.s32.totalorder %s33, 3
    %p203 = por %p201, %p202
    %p205 = scmp.ne.s32.totalorder %s190, %s204
    %p206 = scmp.eq.s32.totalorder %s33, 0
    %p207 = por %p205, %p206
    %s209 = sadd.s32 %s208, 1
    %p212 = scmp.eq.s32.totalorder %s27, 3
    %p213 = scmp.ne.s32.totalorder %s208, %s210
    %p214 = scmp.eq.s32.totalorder %s27, 0
    %p215 = por %p213, %p214
    %p216 = scmp.ne.s32.totalorder %s208, %s210
    %p217 = scmp.eq.s32.totalorder %s32, 3
    %p218 = por %p216, %p217
    %p219 = scmp.ne.s32.totalorder %s210, %s211
    %p220 = scmp.eq.s32.totalorder %s32, 0
    %p221 = por %p219, %p220
    %p222 = scmp.ne.s32.totalorder %s210, %s211
    %p223 = scmp.eq.s32.totalorder %s33, 3
    %p224 = por %p222, %p223
    %p226 = scmp.ne.s32.totalorder %s211, %s225
    %p227 = scmp.eq.s32.totalorder %s33, 0
    %p228 = por %p226, %p227
    %s230 = sadd.s32 %s229, 1
    %p233 = scmp.eq.s32.totalorder %s27, 3
    %p234 = scmp.ne.s32.totalorder %s229, %s231
    %p235 = scmp.eq.s32.totalorder %s27, 0
    %p236 = por %p234, %p235
    %p237 = scmp.ne.s32.totalorder %s229, %s231
    %p238 = scmp.eq.s32.totalorder %s32, 3
    %p239 = por %p237, %p238
    %p240 = scmp.ne.s32.totalorder %s231, %s232
    %p241 = scmp.eq.s32.totalorder %s32, 0
    %p242 = por %p240, %p241
    %p243 = scmp.ne.s32.totalorder %s231, %s232
    %p244 = scmp.eq.s32.totalorder %s33, 3
    %p245 = por %p243, %p244
    %p247 = scmp.ne.s32.totalorder %s232, %s246
    %p248 = scmp.eq.s32.totalorder %s33, 0
    %p249 = por %p247, %p248
    %s251 = sadd.s32 %s250, 1
    %p254 = scmp.eq.s32.totalorder %s27, 3
    %p255 = scmp.ne.s32.totalorder %s250, %s252
    %p256 = scmp.eq.s32.totalorder %s27, 0
    %p257 = por %p255, %p256
    %p258 = scmp.ne.s32.totalorder %s250, %s252
    %p259 = scmp.eq.s32.totalorder %s32, 3
    %p260 = por %p258, %p259
    %p261 = scmp.ne.s32.totalorder %s252, %s253
    %p262 = scmp.eq.s32.totalorder %s32, 0
    %p263 = por %p261, %p262
    %p264 = scmp.ne.s32.totalorder %s252, %s253
    %p265 = scmp.eq.s32.totalorder %s33, 3
    %p266 = por %p264, %p265
    %p268 = scmp.ne.s32.totalorder %s253, %s267
    %p269 = scmp.eq.s32.totalorder %s33, 0
    %p270 = por %p268, %p269
    %s272 = sadd.s32 %s271, 1
    %p275 = scmp.eq.s32.totalorder %s27, 3
    %p276 = scmp.ne.s32.totalorder %s271, %s273
    %p277 = scmp.eq.s32.totalorder %s27, 0
    %p278 = por %p276, %p277
    %p279 = scmp.ne.s32.totalorder %s271, %s273
    %p280 = scmp.eq.s32.totalorder %s32, 3
    %p281 = por %p279, %p280
    %p282 = scmp.ne.s32.totalorder %s273, %s274
    %p283 = scmp.eq.s32.totalorder %s32, 0
    %p284 = por %p282, %p283
    %p285 = scmp.ne.s32.totalorder %s273, %s274
    %p286 = scmp.eq.s32.totalorder %s33, 3
    %p287 = por %p285, %p286
    %p289 = scmp.ne.s32.totalorder %s274, %s288
    %p290 = scmp.eq.s32.totalorder %s33, 0
    %p291 = por %p289, %p290
    %s293 = sadd.s32 %s292, 1
    %p296 = scmp.eq.s32.totalorder %s27, 3
    %p297 = scmp.ne.s32.totalorder %s292, %s294
    %p298 = scmp.eq.s32.totalorder %s27, 0
    %p299 = por %p297, %p298
    %p300 = scmp.ne.s32.totalorder %s292, %s294
    %p301 = scmp.eq.s32.totalorder %s32, 3
    %p302 = por %p300, %p301
    %p303 = scmp.ne.s32.totalorder %s294, %s295
    %p304 = scmp.eq.s32.totalorder %s32, 0
    %p305 = por %p303, %p304
    %p306 = scmp.ne.s32.totalorder %s294, %s295
    %p307 = scmp.eq.s32.totalorder %s33, 3
    %p308 = por %p306, %p307
    %p310 = scmp.ne.s32.totalorder %s295, %s309
    %p311 = scmp.eq.s32.totalorder %s33, 0
    %p312 = por %p310, %p311
    %s314 = sadd.s32 %s313, 1
    %p317 = scmp.eq.s32.totalorder %s27, 3
    %p318 = scmp.ne.s32.totalorder %s313, %s315
    %p319 = scmp.eq.s32.totalorder %s27, 0
    %p320 = por %p318, %p319
    %p321 = scmp.ne.s32.totalorder %s313, %s315
    %p322 = scmp.eq.s32.totalorder %s32, 3
    %p323 = por %p321, %p322
    %p324 = scmp.ne.s32.totalorder %s315, %s316
    %p325 = scmp.eq.s32.totalorder %s32, 0
    %p326 = por %p324, %p325
    %p327 = scmp.ne.s32.totalorder %s315, %s316
    %p328 = scmp.eq.s32.totalorder %s33, 3
    %p329 = por %p327, %p328
    %p331 = scmp.ne.s32.totalorder %s316, %s330
    %p332 = scmp.eq.s32.totalorder %s33, 0
    %p333 = por %p331, %p332
    %s335 = sadd.s32 %s334, 1
    %p338 = scmp.eq.s32.totalorder %s27, 3
    %p339 = scmp.ne.s32.totalorder %s334, %s336
    %p340 = scmp.eq.s32.totalorder %s27, 0
    %p341 = por %p339, %p340
    %p342 = scmp.ne.s32.totalorder %s334, %s336
    %p343 = scmp.eq.s32.totalorder %s32, 3
    %p344 = por %p342, %p343
    %p345 = scmp.ne.s32.totalorder %s336, %s337
    %p346 = scmp.eq.s32.totalorder %s32, 0
    %p347 = por %p345, %p346
    %p348 = scmp.ne.s32.totalorder %s336, %s337
    %p349 = scmp.eq.s32.totalorder %s33, 3
    %p350 = por %p348, %p349
    %p352 = scmp.ne.s32.totalorder %s337, %s351
    %p353 = scmp.eq.s32.totalorder %s33, 0
    %p354 = por %p352, %p353
    %s356 = sadd.s32 %s355, 1
    %p359 = scmp.eq.s32.totalorder %s27, 3
    %p360 = scmp.ne.s32.totalorder %s355, %s357
    %p361 = scmp.eq.s32.totalorder %s27, 0
    %p362 = por %p360, %p361
    %p363 = scmp.ne.s32.totalorder %s355, %s357
    %p364 = scmp.eq.s32.totalorder %s32, 3
    %p365 = por %p363, %p364
    %p366 = scmp.ne.s32.totalorder %s357, %s358
    %p367 = scmp.eq.s32.totalorder %s32, 0
    %p368 = por %p366, %p367
    %p369 = scmp.ne.s32.totalorder %s357, %s358
    %p370 = scmp.eq.s32.totalorder %s33, 3
    %p371 = por %p369, %p370
    %p373 = scmp.ne.s32.totalorder %s358, %s372
    %p374 = scmp.eq.s32.totalorder %s33, 0
    %p375 = por %p373, %p374
    %s377 = sadd.s32 %s376, 1
    %p380 = scmp.eq.s32.totalorder %s27, 3
    %p381 = scmp.ne.s32.totalorder %s376, %s378
    %p382 = scmp.eq.s32.totalorder %s27, 0
    %p383 = por %p381, %p382
    %p384 = scmp.ne.s32.totalorder %s376, %s378
    %p385 = scmp.eq.s32.totalorder %s32, 3
    %p386 = por %p384, %p385
    %p387 = scmp.ne.s32.totalorder %s378, %s379
    %p388 = scmp.eq.s32.totalorder %s32, 0
    %p389 = por %p387, %p388
    %p390 = scmp.ne.s32.totalorder %s378, %s379
    %p391 = scmp.eq.s32.totalorder %s33, 3
    %p392 = por %p390, %p391
    %p394 = scmp.ne.s32.totalorder %s379, %s393
    %p395 = scmp.eq.s32.totalorder %s33, 0
    %p396 = por %p394, %p395
    %s398 = sadd.s32 %s397, 1
    %p401 = scmp.eq.s32.totalorder %s27, 3
    %p402 = scmp.ne.s32.totalorder %s397, %s399
    %p403 = scmp.eq.s32.totalorder %s27, 0
    %p404 = por %p402, %p403
    %p405 = scmp.ne.s32.totalorder %s397, %s399
    %p406 = scmp.eq.s32.totalorder %s32, 3
    %p407 = por %p405, %p406
    %p408 = scmp.ne.s32.totalorder %s399, %s400
    %p409 = scmp.eq.s32.totalorder %s32, 0
    %p410 = por %p408, %p409
    %p411 = scmp.ne.s32.totalorder %s399, %s400
    %p412 = scmp.eq.s32.totalorder %s33, 3
    %p413 = por %p411, %p412
    %p415 = scmp.ne.s32.totalorder %s400, %s414
    %p416 = scmp.eq.s32.totalorder %s33, 0
    %p417 = por %p415, %p416
    %s419 = sadd.s32 %s418, 1
    %p422 = scmp.eq.s32.totalorder %s27, 3
    %p423 = scmp.ne.s32.totalorder %s418, %s420
    %p424 = scmp.eq.s32.totalorder %s27, 0
    %p425 = por %p423, %p424
    %p426 = scmp.ne.s32.totalorder %s418, %s420
    %p427 = scmp.eq.s32.totalorder %s32, 3
    %p428 = por %p426, %p427
    %p429 = scmp.ne.s32.totalorder %s420, %s421
    %p430 = scmp.eq.s32.totalorder %s32, 0
    %p431 = por %p429, %p430
    %p432 = scmp.ne.s32.totalorder %s420, %s421
    %p433 = scmp.eq.s32.totalorder %s33, 3
    %p434 = por %p432, %p433
    %p436 = scmp.ne.s32.totalorder %s421, %s435
    %p437 = scmp.eq.s32.totalorder %s33, 0
    %p438 = por %p436, %p437
    %s440 = sadd.s32 %s439, 1
    %p443 = scmp.eq.s32.totalorder %s27, 3
    %p444 = scmp.ne.s32.totalorder %s439, %s441
    %p445 = scmp.eq.s32.totalorder %s27, 0
    %p446 = por %p444, %p445
    %p447 = scmp.ne.s32.totalorder %s439, %s441
    %p448 = scmp.eq.s32.totalorder %s32, 3
    %p449 = por %p447, %p448
    %p450 = scmp.ne.s32.totalorder %s441, %s442
    %p451 = scmp.eq.s32.totalorder %s32, 0
    %p452 = por %p450, %p451
    %p453 = scmp.ne.s32.totalorder %s441, %s442
    %p454 = scmp.eq.s32.totalorder %s33, 3
    %p455 = por %p453, %p454
    %p457 = scmp.ne.s32.totalorder %s442, %s456
    %p458 = scmp.eq.s32.totalorder %s33, 0
    %p459 = por %p457, %p458
    %s461 = sadd.s32 %s460, 1
    %p464 = scmp.eq.s32.totalorder %s27, 3
    %p465 = scmp.ne.s32.totalorder %s460, %s462
    %p466 = scmp.eq.s32.totalorder %s27, 0
    %p467 = por %p465, %p466
    %p468 = scmp.ne.s32.totalorder %s460, %s462
    %p469 = scmp.eq.s32.totalorder %s32, 3
    %p470 = por %p468, %p469
    %p471 = scmp.ne.s32.totalorder %s462, %s463
    %p472 = scmp.eq.s32.totalorder %s32, 0
    %p473 = por %p471, %p472
    %p474 = scmp.ne.s32.totalorder %s462, %s463
    %p475 = scmp.eq.s32.totalorder %s33, 3
    %p476 = por %p474, %p475
    %p478 = scmp.ne.s32.totalorder %s463, %s477
    %p479 = scmp.eq.s32.totalorder %s33, 0
    %p480 = por %p478, %p479
    %s482 = sadd.s32 %s481, 1
    %p485 = scmp.eq.s32.totalorder %s27, 3
    %p486 = scmp.ne.s32.totalorder %s481, %s483
    %p487 = scmp.eq.s32.totalorder %s27, 0
    %p488 = por %p486, %p487
    %p489 = scmp.ne.s32.totalorder %s481, %s483
    %p490 = scmp.eq.s32.totalorder %s32, 3
    %p491 = por %p489, %p490
    %p492 = scmp.ne.s32.totalorder %s483, %s484
    %p493 = scmp.eq.s32.totalorder %s32, 0
    %p494 = por %p492, %p493
    %p495 = scmp.ne.s32.totalorder %s483, %s484
    %p496 = scmp.eq.s32.totalorder %s33, 3
    %p497 = por %p495, %p496
    %p499 = scmp.ne.s32.totalorder %s484, %s498
    %p500 = scmp.eq.s32.totalorder %s33, 0
    %p501 = por %p499, %p500
    %s503 = sadd.s32 %s502, 1
    %p506 = scmp.eq.s32.totalorder %s27, 3
    %p507 = scmp.ne.s32.totalorder %s502, %s504
    %p508 = scmp.eq.s32.totalorder %s27, 0
    %p509 = por %p507, %p508
    %p510 = scmp.ne.s32.totalorder %s502, %s504
    %p511 = scmp.eq.s32.totalorder %s32, 3
    %p512 = por %p510, %p511
    %p513 = scmp.ne.s32.totalorder %s504, %s505
    %p514 = scmp.eq.s32.totalorder %s32, 0
    %p515 = por %p513, %p514
    %p516 = scmp.ne.s32.totalorder %s504, %s505
    %p517 = scmp.eq.s32.totalorder %s33, 3
    %p518 = por %p516, %p517
    %p520 = scmp.ne.s32.totalorder %s505, %s519
    %p521 = scmp.eq.s32.totalorder %s33, 0
    %p522 = por %p520, %p521
    %p523 = scmp.le.s32.totalorder 1, %s27
    %p524 = scmp.lt.s32.totalorder %s27, 5
    %p525 = pnand %p523, %p524
    %p526 = pneg %p525
    // Predicated region
    $region9: #{input_transform_net_alt_forward.1} parent=5 // pred_check
      _
    $region10: #{input_transform_net_alt_forward.1} parent=5 // pred_check_branch
      %528 = sbr.rel (%p525) target = $region12
    $region11: #{input_transform_net_alt_forward.1} parent=5 // pred_region
      %s529 = ssub.s32 %s27, 1
      // Predicated region
      $region13: #{input_transform_net_alt_forward.1} parent=11 // pred_check
        %p530 = pneg %p95
      $region14: #{input_transform_net_alt_forward.1} parent=11 // pred_check_branch
        %532 = sbr.rel (%p530) target = $region16
      $region15: #{input_transform_net_alt_forward.1} parent=11 // pred_region
        _
      $region16: #{input_transform_net_alt_forward.1} parent=11 // pred_fallthru
        _
      // Predicated region
      $region17: #{input_transform_net_alt_forward.1} parent=11 // pred_check
        %p533 = pneg %p116
      $region18: #{input_transform_net_alt_forward.1} parent=11 // pred_check_branch
        %535 = sbr.rel (%p533) target = $region20
      $region19: #{input_transform_net_alt_forward.1} parent=11 // pred_region
        _
      $region20: #{input_transform_net_alt_forward.1} parent=11 // pred_fallthru
        _
      // Predicated region
      $region21: #{input_transform_net_alt_forward.1} parent=11 // pred_check
        %p536 = pneg %p137
      $region22: #{input_transform_net_alt_forward.1} parent=11 // pred_check_branch
        %538 = sbr.rel (%p536) target = $region24
      $region23: #{input_transform_net_alt_forward.1} parent=11 // pred_region
        _
      $region24: #{input_transform_net_alt_forward.1} parent=11 // pred_fallthru
        _
      // Predicated region
      $region25: #{input_transform_net_alt_forward.1} parent=11 // pred_check
        %p539 = pneg %p158
      $region26: #{input_transform_net_alt_forward.1} parent=11 // pred_check_branch
        %541 = sbr.rel (%p539) target = $region28
      $region27: #{input_transform_net_alt_forward.1} parent=11 // pred_region
        _
      $region28: #{input_transform_net_alt_forward.1} parent=11 // pred_fallthru
        _
      // Predicated region
      $region29: #{input_transform_net_alt_forward.1} parent=11 // pred_check
        %p542 = pneg %p179
      $region30: #{input_transform_net_alt_forward.1} parent=11 // pred_check_branch
        %544 = sbr.rel (%p542) target = $region32
      $region31: #{input_transform_net_alt_forward.1} parent=11 // pred_region
        _
      $region32: #{input_transform_net_alt_forward.1} parent=11 // pred_fallthru
        _
      // Predicated region
      $region33: #{input_transform_net_alt_forward.1} parent=11 // pred_check
        %p545 = pneg %p200
      $region34: #{input_transform_net_alt_forward.1} parent=11 // pred_check_branch
        %547 = sbr.rel (%p545) target = $region36
      $region35: #{input_transform_net_alt_forward.1} parent=11 // pred_region
        _
      $region36: #{input_transform_net_alt_forward.1} parent=11 // pred_fallthru
        _
      // Predicated region
      $region37: #{input_transform_net_alt_forward.1} parent=11 // pred_check
        %p548 = pneg %p221
      $region38: #{input_transform_net_alt_forward.1} parent=11 // pred_check_branch
        %550 = sbr.rel (%p548) target = $region40
      $region39: #{input_transform_net_alt_forward.1} parent=11 // pred_region
        _
      $region40: #{input_transform_net_alt_forward.1} parent=11 // pred_fallthru
        _
      // Predicated region
      $region41: #{input_transform_net_alt_forward.1} parent=11 // pred_check
        %p551 = pneg %p242
      $region42: #{input_transform_net_alt_forward.1} parent=11 // pred_check_branch
        %553 = sbr.rel (%p551) target = $region44
      $region43: #{input_transform_net_alt_forward.1} parent=11 // pred_region
        _
      $region44: #{input_transform_net_alt_forward.1} parent=11 // pred_fallthru
        _
      // Predicated region
      $region45: #{input_transform_net_alt_forward.1} parent=11 // pred_check
        %p554 = pneg %p263
      $region46: #{input_transform_net_alt_forward.1} parent=11 // pred_check_branch
        %556 = sbr.rel (%p554) target = $region48
      $region47: #{input_transform_net_alt_forward.1} parent=11 // pred_region
        _
      $region48: #{input_transform_net_alt_forward.1} parent=11 // pred_fallthru
        _
      // Predicated region
      $region49: #{input_transform_net_alt_forward.1} parent=11 // pred_check
        %p557 = pneg %p284
      $region50: #{input_transform_net_alt_forward.1} parent=11 // pred_check_branch
        %559 = sbr.rel (%p557) target = $region52
      $region51: #{input_transform_net_alt_forward.1} parent=11 // pred_region
        _
      $region52: #{input_transform_net_alt_forward.1} parent=11 // pred_fallthru
        _
      // Predicated region
      $region53: #{input_transform_net_alt_forward.1} parent=11 // pred_check
        %p560 = pneg %p305
      $region54: #{input_transform_net_alt_forward.1} parent=11 // pred_check_branch
        %562 = sbr.rel (%p560) target = $region56
      $region55: #{input_transform_net_alt_forward.1} parent=11 // pred_region
        _
      $region56: #{input_transform_net_alt_forward.1} parent=11 // pred_fallthru
        _
      // Predicated region
      $region57: #{input_transform_net_alt_forward.1} parent=11 // pred_check
        %p563 = pneg %p326
      $region58: #{input_transform_net_alt_forward.1} parent=11 // pred_check_branch
        %565 = sbr.rel (%p563) target = $region60
      $region59: #{input_transform_net_alt_forward.1} parent=11 // pred_region
        _
      $region60: #{input_transform_net_alt_forward.1} parent=11 // pred_fallthru
        _
      // Predicated region
      $region61: #{input_transform_net_alt_forward.1} parent=11 // pred_check
        %p566 = pneg %p347
      $region62: #{input_transform_net_alt_forward.1} parent=11 // pred_check_branch
        %568 = sbr.rel (%p566) target = $region64
      $region63: #{input_transform_net_alt_forward.1} parent=11 // pred_region
        _
      $region64: #{input_transform_net_alt_forward.1} parent=11 // pred_fallthru
        _
      // Predicated region
      $region65: #{input_transform_net_alt_forward.1} parent=11 // pred_check
        %p569 = pneg %p368
      $region66: #{input_transform_net_alt_forward.1} parent=11 // pred_check_branch
        %571 = sbr.rel (%p569) target = $region68
      $region67: #{input_transform_net_alt_forward.1} parent=11 // pred_region
        _
      $region68: #{input_transform_net_alt_forward.1} parent=11 // pred_fallthru
        _
      // Predicated region
      $region69: #{input_transform_net_alt_forward.1} parent=11 // pred_check
        %p572 = pneg %p389
      $region70: #{input_transform_net_alt_forward.1} parent=11 // pred_check_branch
        %574 = sbr.rel (%p572) target = $region72
      $region71: #{input_transform_net_alt_forward.1} parent=11 // pred_region
        _
      $region72: #{input_transform_net_alt_forward.1} parent=11 // pred_fallthru
        _
      // Predicated region
      $region73: #{input_transform_net_alt_forward.1} parent=11 // pred_check
        %p575 = pneg %p410
      $region74: #{input_transform_net_alt_forward.1} parent=11 // pred_check_branch
        %577 = sbr.rel (%p575) target = $region76
      $region75: #{input_transform_net_alt_forward.1} parent=11 // pred_region
        _
      $region76: #{input_transform_net_alt_forward.1} parent=11 // pred_fallthru
        _
      // Predicated region
      $region77: #{input_transform_net_alt_forward.1} parent=11 // pred_check
        %p578 = pneg %p431
      $region78: #{input_transform_net_alt_forward.1} parent=11 // pred_check_branch
        %580 = sbr.rel (%p578) target = $region80
      $region79: #{input_transform_net_alt_forward.1} parent=11 // pred_region
        _
      $region80: #{input_transform_net_alt_forward.1} parent=11 // pred_fallthru
        _
      // Predicated region
      $region81: #{input_transform_net_alt_forward.1} parent=11 // pred_check
        %p581 = pneg %p452
      $region82: #{input_transform_net_alt_forward.1} parent=11 // pred_check_branch
        %583 = sbr.rel (%p581) target = $region84
      $region83: #{input_transform_net_alt_forward.1} parent=11 // pred_region
        _
      $region84: #{input_transform_net_alt_forward.1} parent=11 // pred_fallthru
        _
      // Predicated region
      $region85: #{input_transform_net_alt_forward.1} parent=11 // pred_check
        %p584 = pneg %p473
      $region86: #{input_transform_net_alt_forward.1} parent=11 // pred_check_branch
        %586 = sbr.rel (%p584) target = $region88
      $region87: #{input_transform_net_alt_forward.1} parent=11 // pred_region
        _
      $region88: #{input_transform_net_alt_forward.1} parent=11 // pred_fallthru
        _
      // Predicated region
      $region89: #{input_transform_net_alt_forward.1} parent=11 // pred_check
        %p587 = pneg %p494
      $region90: #{input_transform_net_alt_forward.1} parent=11 // pred_check_branch
        %589 = sbr.rel (%p587) target = $region92
      $region91: #{input_transform_net_alt_forward.1} parent=11 // pred_region
        _
      $region92: #{input_transform_net_alt_forward.1} parent=11 // pred_fallthru
        _
    $region12: #{input_transform_net_alt_forward.1} parent=5 // pred_fallthru
      _
    %p590 = scmp.lt.s32.totalorder %s27, 4
    // Predicated region
    $region93: #{input_transform_net_alt_forward.1} parent=5 // pred_check
      %p591 = pneg %p590
    $region94: #{input_transform_net_alt_forward.1} parent=5 // pred_check_branch
      %593 = sbr.rel (%p591) target = $region96
    $region95: #{input_transform_net_alt_forward.1} parent=5 // pred_region
      // Predicated region
      $region97: #{input_transform_net_alt_forward.1} parent=95 // pred_check
        %p594 = pneg %p68
      $region98: #{input_transform_net_alt_forward.1} parent=95 // pred_check_branch
        %596 = sbr.rel (%p594) target = $region100
      $region99: #{input_transform_net_alt_forward.1} parent=95 // pred_region
        %s597 = smul.u32 2, %s36
        %p598 = scmp.lt.s32.totalorder %s35, 1
        %s599 = scalar_select %p598, %s35, 1
        %p600 = scmp.lt.s32.totalorder %s597, 1
        %s601 = scalar_select %p600, %s597, 1
        %s602 = smul.addr %s599, 2
        %s603 = sadd.s32 %s601, %s602
        %s604 = smul.addr %s603, 8
        %s605 = scalar_lea.vmem %s0, %s604
        %s606 = smul.u32 2, %s36
      $region100: #{input_transform_net_alt_forward.1} parent=95 // pred_fallthru
        _
    $region96: #{input_transform_net_alt_forward.1} parent=5 // pred_fallthru
      _
    %p607 = scmp.le.s32.totalorder 1, %s27
    %p608 = scmp.lt.s32.totalorder %s27, 5
    %p609 = pnand %p607, %p608
    %p610 = pneg %p609
    // Predicated region
    $region101: #{input_transform_net_alt_forward.1} parent=5 // pred_check
      _
    $region102: #{input_transform_net_alt_forward.1} parent=5 // pred_check_branch
      %612 = sbr.rel (%p609) target = $region104
    $region103: #{input_transform_net_alt_forward.1} parent=5 // pred_region
      %s613 = ssub.s32 %s27, 1
      %s614 = smul.u32 2, %s39
      %p615 = scmp.lt.s32.totalorder %s38, 1
      %s616 = scalar_select %p615, %s38, 1
      %p617 = scmp.lt.s32.totalorder %s614, 1
      %s618 = scalar_select %p617, %s614, 1
      %s619 = smul.addr %s616, 2
      %s620 = sadd.s32 %s618, %s619
      %s621 = smul.addr %s620, 8
      %s622 = scalar_lea.vmem %s0, %s621
      %p623 = pneg %p74
      %p624 = pneg %p71
      %p625 = pneg %p95
      %p626 = pneg %p92
      %p627 = pneg %p116
      %p628 = pneg %p113
      %p629 = pneg %p137
      %p630 = pneg %p134
      %p631 = pneg %p158
      %p632 = pneg %p155
      %p633 = pneg %p179
      %p634 = pneg %p176
      %p635 = pneg %p200
      %p636 = pneg %p197
      %p637 = pneg %p221
      %p638 = pneg %p218
      %p639 = pneg %p242
      %p640 = pneg %p239
      %p641 = pneg %p263
      %p642 = pneg %p260
      %p643 = pneg %p284
      %p644 = pneg %p281
      %p645 = pneg %p305
      %p646 = pneg %p302
      %p647 = pneg %p326
      %p648 = pneg %p323
      %p649 = pneg %p347
      %p650 = pneg %p344
      %p651 = pneg %p368
      %p652 = pneg %p365
      %p653 = pneg %p389
      %p654 = pneg %p386
      %p655 = pneg %p410
      %p656 = pneg %p407
      %p657 = pneg %p431
      %p658 = pneg %p428
      %p659 = pneg %p452
      %p660 = pneg %p449
      %p661 = pneg %p473
      %p662 = pneg %p470
      %p663 = pneg %p494
      %p664 = pneg %p491
      %p665 = pneg %p515
      %p666 = pneg %p512
      %s667 = smul.u32 2, %s39
      %p668 = scmp.lt.s32.totalorder %s38, 1
      %s669 = scalar_select %p668, %s38, 1
      %p670 = scmp.lt.s32.totalorder %s667, 1
      %s671 = scalar_select %p670, %s667, 1
      %s672 = smul.addr %s669, 2
      %s673 = sadd.s32 %s671, %s672
      %s674 = smul.addr %s673, 8
      %s675 = scalar_lea.vmem %s0, %s674
      %s676 = smul.u32 2, %s39
      %p678 = scmp.eq.s32.totalorder %s38, 1
      %p679 = scmp.eq.s32.totalorder %s39, 0
      %p680 = pnand %p678, %p679
      %p681 = pneg %p680
      %p682 = scmp.eq.s32.totalorder %s37, 0
      %p683 = scmp.eq.s32.totalorder %s38, 0
      %p684 = pnand %p682, %p683
      %p685 = pneg %p684
      %p686 = pnand %p685, %p679
      %p687 = pneg %p686
      // Predicated region
      $region105: #{input_transform_net_alt_forward.1} parent=103 // pred_check
        _
      $region106: #{input_transform_net_alt_forward.1} parent=103 // pred_check_branch
        %689 = sbr.rel (%p686) target = $region108
      $region107: #{input_transform_net_alt_forward.1} parent=103 // pred_region
        %690 = vst [vmem:[#allocation2] sm:$0x1] 0.0
        %691 = vst [vmem:[#allocation3] sm:$0x1] 0.0
        %692 = vst [vmem:[#allocation4] sm:$0xff] 0.0
        %693 = vst [vmem:[#allocation5] sm:$0xff] 0.0
        %694 = vst [vmem:[#allocation6] sm:$0xff] -inf
        %695 = vst [vmem:[#allocation6 + $0x8] sm:$0xff] -inf
        %696 = vst [vmem:[#allocation7] sm:$0xff] inf
        %697 = vst [vmem:[#allocation7 + $0x8] sm:$0xff] inf
      $region108: #{input_transform_net_alt_forward.1} parent=103 // pred_fallthru
        _
      %v698 = vld [vmem:[%s675] sm:$0xff]
      %v699 = vld [vmem:[%s675 + $0x8] sm:$0xff]
      %v700 = vld [vmem:[%s1] sm:$0x7]
      %v701 = vld [vmem:[%s2] sm:$0x1]
      %703 = vset.pattern.permute.xlu0 0
      %704 = vperm.xlu0 %703, %v698
      %v705 = vpop.permute.xlu0 %704
      %708 = vset.pattern.permute.xlu0 0
      %709 = vperm.xlu0 %708, %v699
      %v710 = vpop.permute.xlu0 %709
      %v712 = vlaneseq
      %v713 = vshrl.u32 %v712, 7
      %v714 = vsub.s32 0, %v713
      %v715 = vrot.slane %v700, %v714
      %v716 = vmul.f32 %v705, %v715
      %v717 = vmul.f32 %v710, %v715
      %v719 = vlaneseq
      %v720 = vshrl.u32 %v719, 7
      %v721 = vsub.s32 0, %v720
      %v722 = vrot.slane %v701, %v721
      %v724 = vadd.f32 %v722, %v716
      %v725 = vadd.f32 %v722, %v717
      %726 = vset.pattern.permute.xlu0 1
      %727 = vperm.xlu0 %726, %v698
      %v728 = vpop.permute.xlu0 %727
      %730 = vset.pattern.permute.xlu0 1
      %731 = vperm.xlu0 %730, %v699
      %v732 = vpop.permute.xlu0 %731
      %v734 = vlaneseq
      %v735 = vshrl.u32 %v734, 7
      %v736 = vsub.s32 1, %v735
      %v737 = vrot.slane %v700, %v736
      %v738 = vmul.f32 %v728, %v737
      %v739 = vmul.f32 %v732, %v737
      %v740 = vadd.f32 %v724, %v738
      %v741 = vadd.f32 %v725, %v739
      %742 = vset.pattern.permute.xlu0 2
      %743 = vperm.xlu0 %742, %v698
      %v744 = vpop.permute.xlu0 %743
      %746 = vset.pattern.permute.xlu0 2
      %747 = vperm.xlu0 %746, %v699
      %v748 = vpop.permute.xlu0 %747
      %v750 = vlaneseq
      %v751 = vshrl.u32 %v750, 7
      %v752 = vsub.s32 2, %v751
      %v753 = vrot.slane %v700, %v752
      %v754 = vmul.f32 %v744, %v753
      %v755 = vmul.f32 %v748, %v753
      %v756 = vadd.f32 %v740, %v754
      %v757 = vadd.f32 %v741, %v755
      %v758 = vmax.f32 %v756, 0.0
      %v759 = vmax.f32 %v757, 0.0
      %v760 = vpack.c.bf16 %v759, %v758
      %v761 = vld [vmem:[%s3] sm:$0xf]
      %v762 = vld [vmem:[%s3 + $0x4] sm:$0xf]
      %v763 = vld [vmem:[%s3 + $0x8] sm:$0xf]
      %v764 = vld [vmem:[%s3 + $0xc] sm:$0xf]
      %v765 = vld [vmem:[%s3 + $0x10] sm:$0xf]
      %v766 = vld [vmem:[%s3 + $0x14] sm:$0xf]
      %v767 = vld [vmem:[%s3 + $0x18] sm:$0xf]
      %v768 = vld [vmem:[%s3 + $0x1c] sm:$0xf]
      %v769 = vld [vmem:[%s4] sm:$0x1]
      %v771 = vlaneseq
      %v772 = vshrl.u32 %v771, 7
      %v773 = vsub.s32 0, %v772
      %v774 = vrot.slane %v769, %v773
      %v784 = vunpack.c.l.b16 %v761
      %v785 = vunpack.c.l.b16 %v762
      %v786 = vunpack.c.l.b16 %v763
      %v787 = vunpack.c.l.b16 %v764
      %v788 = vunpack.c.l.b16 %v765
      %v789 = vunpack.c.l.b16 %v766
      %v790 = vunpack.c.l.b16 %v767
      %v791 = vunpack.c.l.b16 %v768
      %v792 = vpack.c.b16 %v785, %v784
      %v793 = vpack.c.b16 %v787, %v786
      %v794 = vpack.c.b16 %v789, %v788
      %v795 = vpack.c.b16 %v791, %v790
      %vm800 = vcmask 523264
      %v802 = vsel %vm800, %v760, 0
      %804 = vmatprep.subr.bf16.mxu0 0
      %805 = vmatpush1.bf16.msra.mxu0 %v792
      %806 = vmatprep.subr.bf16.mxu0 0
      %807 = vmatpush1.bf16.msra.mxu0 %v793
      %808 = vmatprep.subr.bf16.mxu0 0
      %809 = vmatpush1.bf16.msra.mxu0 %v794
      %810 = vmatprep.subr.bf16.mxu0 0
      %811 = vmatpush1.bf16.msra.mxu0 %v795
      %812 = vmatprep.subr.bf16.mxu0 0
      %813 = vmatpush1.bf16.msra.mxu0 0
      %814 = vmatprep.subr.bf16.mxu0 0
      %815 = vmatpush1.bf16.msra.mxu0 0
      %816 = vmatprep.subr.bf16.mxu0 0
      %817 = vmatpush1.bf16.msra.mxu0 0
      %818 = vmatprep.subr.bf16.mxu0 0
      %819 = vmatpush1.bf16.msra.mxu0 0
      %820 = vmatprep.subr.bf16.mxu0 0
      %821 = vmatpush1.bf16.msra.mxu0 0
      %822 = vmatprep.subr.bf16.mxu0 0
      %823 = vmatpush1.bf16.msra.mxu0 0
      %824 = vmatprep.subr.bf16.mxu0 0
      %825 = vmatpush1.bf16.msra.mxu0 0
      %826 = vmatprep.subr.bf16.mxu0 0
      %827 = vmatpush1.bf16.msra.mxu0 0
      %828 = vmatprep.subr.bf16.mxu0 0
      %829 = vmatpush1.bf16.msra.mxu0 0
      %830 = vmatprep.subr.bf16.mxu0 0
      %831 = vmatpush1.bf16.msra.mxu0 0
      %832 = vmatprep.subr.bf16.mxu0 0
      %833 = vmatpush1.bf16.msra.mxu0 0
      %834 = vmatprep.subr.bf16.mxu0 0
      %835 = vmatpush1.bf16.msra.mxu0 0
      %836 = vmatprep.mubr.bf16.mxu0 0
      %837 = vmatmul.mubr.bf16.gmra.mrb[0].mxu0 %v802
      %v838 = vpop.f32.mrb[0].mxu0
      %v839 = vadd.f32 %v774, %v838
      %v840 = vpop.f32.mrb[0].mxu0
      %v841 = vpop.f32.mrb[0].mxu0
      %v842 = vadd.f32 %v774, %v841
      %v843 = vpop.f32.mrb[0].mxu0
      %844 = vdwg.mxu0
      // Predicated region
      $region109: #{input_transform_net_alt_forward.1} parent=103 // pred_check
        %p845 = pneg %p682
      $region110: #{input_transform_net_alt_forward.1} parent=103 // pred_check_branch
        %847 = sbr.rel (%p845) target = $region112
      $region111: #{input_transform_net_alt_forward.1} parent=103 // pred_region
        %v848 = vld [vmem:[#allocation2] sm:$0x1]
        %v849 = vadd.f32 %v839, %v842
        %v850 = vrot.slane %v849, 4
        %v851 = vadd.f32 %v849, %v850
        %v852 = vrot.slane %v851, 2
        %v853 = vadd.f32 %v851, %v852
        %v854 = vrot.slane %v853, 1
        %v855 = vadd.f32 %v853, %v854
        %v856 = vadd.f32 %v848, %v855
        %857 = vst [vmem:[#allocation2] sm:$0x1] %v856
        %v858 = vld [vmem:[#allocation3] sm:$0x1]
        %v859 = vmul.f32 %v839, %v839
        %v860 = vmul.f32 %v842, %v842
        %v861 = vadd.f32 %v859, %v860
        %v862 = vrot.slane %v861, 4
        %v863 = vadd.f32 %v861, %v862
        %v864 = vrot.slane %v863, 2
        %v865 = vadd.f32 %v863, %v864
        %v866 = vrot.slane %v865, 1
        %v867 = vadd.f32 %v865, %v866
        %v868 = vadd.f32 %v858, %v867
        %869 = vst [vmem:[#allocation3] sm:$0x1] %v868
      $region112: #{input_transform_net_alt_forward.1} parent=103 // pred_fallthru
        _
      %p870 = pnand %p682, %p681
      %p871 = pneg %p870
      // Predicated region
      $region113: #{input_transform_net_alt_forward.1} parent=103 // pred_check
        _
      $region114: #{input_transform_net_alt_forward.1} parent=103 // pred_check_branch
        %873 = sbr.rel (%p870) target = $region116
      $region115: #{input_transform_net_alt_forward.1} parent=103 // pred_region
        %v874 = vld [vmem:[#allocation2] sm:$0x1]
        %v875 = vmul.f32 %v874, 0.03125
        %v876 = vld [vmem:[#allocation3] sm:$0x1]
        %v877 = vmul.f32 %v876, 0.03125
        %v878 = vmul.f32 %v875, %v875
        %v879 = vsub.f32 %v877, %v878
        %v880 = vmax.f32 %v879, 0.0
        %881 = vst [vmem:[#allocation2] sm:$0x1] %v875
        %v882 = vadd.f32 %v880, 1e-05
        %v883 = vrsqrt.pop %v882
        %884 = vst [vmem:[#allocation3] sm:$0x1] %v883
      $region116: #{input_transform_net_alt_forward.1} parent=103 // pred_fallthru
        _
      %p885 = scmp.eq.s32.totalorder %s37, 1
      // Predicated region
      $region117: #{input_transform_net_alt_forward.1} parent=103 // pred_check
        %p886 = pneg %p885
      $region118: #{input_transform_net_alt_forward.1} parent=103 // pred_check_branch
        %888 = sbr.rel (%p886) target = $region120
      $region119: #{input_transform_net_alt_forward.1} parent=103 // pred_region
        %v889 = vld [vmem:[#allocation3] sm:$0x1]
        %v890 = vld [vmem:[%s5] sm:$0x1]
        %v891 = vmul.f32 %v889, %v890
        %v892 = vld [vmem:[%s6] sm:$0x1]
        %v893 = vld [vmem:[#allocation2] sm:$0x1]
        %v894 = vmul.f32 %v893, %v891
        %v895 = vsub.f32 %v892, %v894
        %v897 = vlaneseq
        %v898 = vshrl.u32 %v897, 7
        %v899 = vsub.s32 0, %v898
        %v900 = vrot.slane %v891, %v899
        %v902 = vmul.f32 %v839, %v900
        %v903 = vmul.f32 %v842, %v900
        %v905 = vlaneseq
        %v906 = vshrl.u32 %v905, 7
        %v907 = vsub.s32 0, %v906
        %v908 = vrot.slane %v895, %v907
        %v910 = vadd.f32 %v902, %v908
        %v911 = vadd.f32 %v903, %v908
        %v912 = vmax.f32 %v910, 0.0
        %v913 = vmax.f32 %v911, 0.0
        %v914 = vpack.c.bf16 %v913, %v912
        %v915 = vld [vmem:[%s7] sm:$0xff]
        %v916 = vld [vmem:[%s7 + $0x8] sm:$0xff]
        %v917 = vld [vmem:[%s7 + $0x10] sm:$0xff]
        %v918 = vld [vmem:[%s7 + $0x18] sm:$0xff]
        %v919 = vld [vmem:[%s7 + $0x20] sm:$0xff]
        %v920 = vld [vmem:[%s7 + $0x28] sm:$0xff]
        %v921 = vld [vmem:[%s7 + $0x30] sm:$0xff]
        %v922 = vld [vmem:[%s7 + $0x38] sm:$0xff]
        %v923 = vld [vmem:[%s7 + $0x40] sm:$0xff]
        %v924 = vld [vmem:[%s7 + $0x48] sm:$0xff]
        %v925 = vld [vmem:[%s7 + $0x50] sm:$0xff]
        %v926 = vld [vmem:[%s7 + $0x58] sm:$0xff]
        %v927 = vld [vmem:[%s7 + $0x60] sm:$0xff]
        %v928 = vld [vmem:[%s7 + $0x68] sm:$0xff]
        %v929 = vld [vmem:[%s7 + $0x70] sm:$0xff]
        %v930 = vld [vmem:[%s7 + $0x78] sm:$0xff]
        %v931 = vld [vmem:[%s7 + $0x80] sm:$0xff]
        %v932 = vld [vmem:[%s7 + $0x88] sm:$0xff]
        %v933 = vld [vmem:[%s7 + $0x90] sm:$0xff]
        %v934 = vld [vmem:[%s7 + $0x98] sm:$0xff]
        %v935 = vld [vmem:[%s7 + $0xa0] sm:$0xff]
        %v936 = vld [vmem:[%s7 + $0xa8] sm:$0xff]
        %v937 = vld [vmem:[%s7 + $0xb0] sm:$0xff]
        %v938 = vld [vmem:[%s7 + $0xb8] sm:$0xff]
        %v939 = vld [vmem:[%s7 + $0xc0] sm:$0xff]
        %v940 = vld [vmem:[%s7 + $0xc8] sm:$0xff]
        %v941 = vld [vmem:[%s7 + $0xd0] sm:$0xff]
        %v942 = vld [vmem:[%s7 + $0xd8] sm:$0xff]
        %v943 = vld [vmem:[%s7 + $0xe0] sm:$0xff]
        %v944 = vld [vmem:[%s7 + $0xe8] sm:$0xff]
        %v945 = vld [vmem:[%s7 + $0xf0] sm:$0xff]
        %v946 = vld [vmem:[%s7 + $0xf8] sm:$0xff]
        %v947 = vld [vmem:[%s7 + $0x100] sm:$0xff]
        %v948 = vld [vmem:[%s7 + $0x108] sm:$0xff]
        %v949 = vld [vmem:[%s7 + $0x110] sm:$0xff]
        %v950 = vld [vmem:[%s7 + $0x118] sm:$0xff]
        %v951 = vld [vmem:[%s7 + $0x120] sm:$0xff]
        %v952 = vld [vmem:[%s7 + $0x128] sm:$0xff]
        %v953 = vld [vmem:[%s7 + $0x130] sm:$0xff]
        %v954 = vld [vmem:[%s7 + $0x138] sm:$0xff]
        %v955 = vld [vmem:[%s7 + $0x140] sm:$0xff]
        %v956 = vld [vmem:[%s7 + $0x148] sm:$0xff]
        %v957 = vld [vmem:[%s7 + $0x150] sm:$0xff]
        %v958 = vld [vmem:[%s7 + $0x158] sm:$0xff]
        %v959 = vld [vmem:[%s7 + $0x160] sm:$0xff]
        %v960 = vld [vmem:[%s7 + $0x168] sm:$0xff]
        %v961 = vld [vmem:[%s7 + $0x170] sm:$0xff]
        %v962 = vld [vmem:[%s7 + $0x178] sm:$0xff]
        %v963 = vld [vmem:[%s7 + $0x180] sm:$0xff]
        %v964 = vld [vmem:[%s7 + $0x188] sm:$0xff]
        %v965 = vld [vmem:[%s7 + $0x190] sm:$0xff]
        %v966 = vld [vmem:[%s7 + $0x198] sm:$0xff]
        %v967 = vld [vmem:[%s7 + $0x1a0] sm:$0xff]
        %v968 = vld [vmem:[%s7 + $0x1a8] sm:$0xff]
        %v969 = vld [vmem:[%s7 + $0x1b0] sm:$0xff]
        %v970 = vld [vmem:[%s7 + $0x1b8] sm:$0xff]
        %v971 = vld [vmem:[%s7 + $0x1c0] sm:$0xff]
        %v972 = vld [vmem:[%s7 + $0x1c8] sm:$0xff]
        %v973 = vld [vmem:[%s7 + $0x1d0] sm:$0xff]
        %v974 = vld [vmem:[%s7 + $0x1d8] sm:$0xff]
        %v975 = vld [vmem:[%s7 + $0x1e0] sm:$0xff]
        %v976 = vld [vmem:[%s7 + $0x1e8] sm:$0xff]
        %v977 = vld [vmem:[%s7 + $0x1f0] sm:$0xff]
        %v978 = vld [vmem:[%s7 + $0x1f8] sm:$0xff]
        %v979 = vld [vmem:[%s8] sm:$0xff]
        %v981 = vlaneseq
        %v982 = vshrl.u32 %v981, 7
        %v983 = vsub.s32 0, %v982
        %v984 = vrot.slane %v979, %v983
        %v985 = vlaneseq
        %v986 = vshrl.u32 %v985, 7
        %v987 = vsub.s32 1, %v986
        %v988 = vrot.slane %v979, %v987
        %v989 = vlaneseq
        %v990 = vshrl.u32 %v989, 7
        %v991 = vsub.s32 2, %v990
        %v992 = vrot.slane %v979, %v991
        %v993 = vlaneseq
        %v994 = vshrl.u32 %v993, 7
        %v995 = vsub.s32 3, %v994
        %v996 = vrot.slane %v979, %v995
        %v997 = vlaneseq
        %v998 = vshrl.u32 %v997, 7
        %v999 = vsub.s32 4, %v998
        %v1000 = vrot.slane %v979, %v999
        %v1001 = vlaneseq
        %v1002 = vshrl.u32 %v1001, 7
        %v1003 = vsub.s32 5, %v1002
        %v1004 = vrot.slane %v979, %v1003
        %v1005 = vlaneseq
        %v1006 = vshrl.u32 %v1005, 7
        %v1007 = vsub.s32 6, %v1006
        %v1008 = vrot.slane %v979, %v1007
        %v1009 = vlaneseq
        %v1010 = vshrl.u32 %v1009, 7
        %v1011 = vsub.s32 7, %v1010
        %v1012 = vrot.slane %v979, %v1011
        %v1085 = vunpack.c.l.b16 %v915
        %v1086 = vunpack.c.h.b16 %v915
        %v1087 = vunpack.c.l.b16 %v916
        %v1088 = vunpack.c.h.b16 %v916
        %v1089 = vunpack.c.l.b16 %v917
        %v1090 = vunpack.c.h.b16 %v917
        %v1091 = vunpack.c.l.b16 %v918
        %v1092 = vunpack.c.h.b16 %v918
        %v1093 = vunpack.c.l.b16 %v919
        %v1094 = vunpack.c.h.b16 %v919
        %v1095 = vunpack.c.l.b16 %v920
        %v1096 = vunpack.c.h.b16 %v920
        %v1097 = vunpack.c.l.b16 %v921
        %v1098 = vunpack.c.h.b16 %v921
        %v1099 = vunpack.c.l.b16 %v922
        %v1100 = vunpack.c.h.b16 %v922
        %v1101 = vunpack.c.l.b16 %v923
        %v1102 = vunpack.c.h.b16 %v923
        %v1103 = vunpack.c.l.b16 %v924
        %v1104 = vunpack.c.h.b16 %v924
        %v1105 = vunpack.c.l.b16 %v925
        %v1106 = vunpack.c.h.b16 %v925
        %v1107 = vunpack.c.l.b16 %v926
        %v1108 = vunpack.c.h.b16 %v926
        %v1109 = vunpack.c.l.b16 %v927
        %v1110 = vunpack.c.h.b16 %v927
        %v1111 = vunpack.c.l.b16 %v928
        %v1112 = vunpack.c.h.b16 %v928
        %v1113 = vunpack.c.l.b16 %v929
        %v1114 = vunpack.c.h.b16 %v929
        %v1115 = vunpack.c.l.b16 %v930
        %v1116 = vunpack.c.h.b16 %v930
        %v1117 = vunpack.c.l.b16 %v931
        %v1118 = vunpack.c.h.b16 %v931
        %v1119 = vunpack.c.l.b16 %v932
        %v1120 = vunpack.c.h.b16 %v932
        %v1121 = vunpack.c.l.b16 %v933
        %v1122 = vunpack.c.h.b16 %v933
        %v1123 = vunpack.c.l.b16 %v934
        %v1124 = vunpack.c.h.b16 %v934
        %v1125 = vunpack.c.l.b16 %v935
        %v1126 = vunpack.c.h.b16 %v935
        %v1127 = vunpack.c.l.b16 %v936
        %v1128 = vunpack.c.h.b16 %v936
        %v1129 = vunpack.c.l.b16 %v937
        %v1130 = vunpack.c.h.b16 %v937
        %v1131 = vunpack.c.l.b16 %v938
        %v1132 = vunpack.c.h.b16 %v938
        %v1133 = vunpack.c.l.b16 %v939
        %v1134 = vunpack.c.h.b16 %v939
        %v1135 = vunpack.c.l.b16 %v940
        %v1136 = vunpack.c.h.b16 %v940
        %v1137 = vunpack.c.l.b16 %v941
        %v1138 = vunpack.c.h.b16 %v941
        %v1139 = vunpack.c.l.b16 %v942
        %v1140 = vunpack.c.h.b16 %v942
        %v1141 = vunpack.c.l.b16 %v943
        %v1142 = vunpack.c.h.b16 %v943
        %v1143 = vunpack.c.l.b16 %v944
        %v1144 = vunpack.c.h.b16 %v944
        %v1145 = vunpack.c.l.b16 %v945
        %v1146 = vunpack.c.h.b16 %v945
        %v1147 = vunpack.c.l.b16 %v946
        %v1148 = vunpack.c.h.b16 %v946
        %v1149 = vunpack.c.l.b16 %v947
        %v1150 = vunpack.c.h.b16 %v947
        %v1151 = vunpack.c.l.b16 %v948
        %v1152 = vunpack.c.h.b16 %v948
        %v1153 = vunpack.c.l.b16 %v949
        %v1154 = vunpack.c.h.b16 %v949
        %v1155 = vunpack.c.l.b16 %v950
        %v1156 = vunpack.c.h.b16 %v950
        %v1157 = vunpack.c.l.b16 %v951
        %v1158 = vunpack.c.h.b16 %v951
        %v1159 = vunpack.c.l.b16 %v952
        %v1160 = vunpack.c.h.b16 %v952
        %v1161 = vunpack.c.l.b16 %v953
        %v1162 = vunpack.c.h.b16 %v953
        %v1163 = vunpack.c.l.b16 %v954
        %v1164 = vunpack.c.h.b16 %v954
        %v1165 = vunpack.c.l.b16 %v955
        %v1166 = vunpack.c.h.b16 %v955
        %v1167 = vunpack.c.l.b16 %v956
        %v1168 = vunpack.c.h.b16 %v956
        %v1169 = vunpack.c.l.b16 %v957
        %v1170 = vunpack.c.h.b16 %v957
        %v1171 = vunpack.c.l.b16 %v958
        %v1172 = vunpack.c.h.b16 %v958
        %v1173 = vunpack.c.l.b16 %v959
        %v1174 = vunpack.c.h.b16 %v959
        %v1175 = vunpack.c.l.b16 %v960
        %v1176 = vunpack.c.h.b16 %v960
        %v1177 = vunpack.c.l.b16 %v961
        %v1178 = vunpack.c.h.b16 %v961
        %v1179 = vunpack.c.l.b16 %v962
        %v1180 = vunpack.c.h.b16 %v962
        %v1181 = vunpack.c.l.b16 %v963
        %v1182 = vunpack.c.h.b16 %v963
        %v1183 = vunpack.c.l.b16 %v964
        %v1184 = vunpack.c.h.b16 %v964
        %v1185 = vunpack.c.l.b16 %v965
        %v1186 = vunpack.c.h.b16 %v965
        %v1187 = vunpack.c.l.b16 %v966
        %v1188 = vunpack.c.h.b16 %v966
        %v1189 = vunpack.c.l.b16 %v967
        %v1190 = vunpack.c.h.b16 %v967
        %v1191 = vunpack.c.l.b16 %v968
        %v1192 = vunpack.c.h.b16 %v968
        %v1193 = vunpack.c.l.b16 %v969
        %v1194 = vunpack.c.h.b16 %v969
        %v1195 = vunpack.c.l.b16 %v970
        %v1196 = vunpack.c.h.b16 %v970
        %v1197 = vunpack.c.l.b16 %v971
        %v1198 = vunpack.c.h.b16 %v971
        %v1199 = vunpack.c.l.b16 %v972
        %v1200 = vunpack.c.h.b16 %v972
        %v1201 = vunpack.c.l.b16 %v973
        %v1202 = vunpack.c.h.b16 %v973
        %v1203 = vunpack.c.l.b16 %v974
        %v1204 = vunpack.c.h.b16 %v974
        %v1205 = vunpack.c.l.b16 %v975
        %v1206 = vunpack.c.h.b16 %v975
        %v1207 = vunpack.c.l.b16 %v976
        %v1208 = vunpack.c.h.b16 %v976
        %v1209 = vunpack.c.l.b16 %v977
        %v1210 = vunpack.c.h.b16 %v977
        %v1211 = vunpack.c.l.b16 %v978
        %v1212 = vunpack.c.h.b16 %v978
        %v1213 = vpack.c.b16 %v1093, %v1085
        %v1214 = vpack.c.b16 %v1094, %v1086
        %v1215 = vpack.c.b16 %v1095, %v1087
        %v1216 = vpack.c.b16 %v1096, %v1088
        %v1217 = vpack.c.b16 %v1097, %v1089
        %v1218 = vpack.c.b16 %v1098, %v1090
        %v1219 = vpack.c.b16 %v1099, %v1091
        %v1220 = vpack.c.b16 %v1100, %v1092
        %v1221 = vpack.c.b16 %v1109, %v1101
        %v1222 = vpack.c.b16 %v1110, %v1102
        %v1223 = vpack.c.b16 %v1111, %v1103
        %v1224 = vpack.c.b16 %v1112, %v1104
        %v1225 = vpack.c.b16 %v1113, %v1105
        %v1226 = vpack.c.b16 %v1114, %v1106
        %v1227 = vpack.c.b16 %v1115, %v1107
        %v1228 = vpack.c.b16 %v1116, %v1108
        %v1229 = vpack.c.b16 %v1125, %v1117
        %v1230 = vpack.c.b16 %v1126, %v1118
        %v1231 = vpack.c.b16 %v1127, %v1119
        %v1232 = vpack.c.b16 %v1128, %v1120
        %v1233 = vpack.c.b16 %v1129, %v1121
        %v1234 = vpack.c.b16 %v1130, %v1122
        %v1235 = vpack.c.b16 %v1131, %v1123
        %v1236 = vpack.c.b16 %v1132, %v1124
        %v1237 = vpack.c.b16 %v1141, %v1133
        %v1238 = vpack.c.b16 %v1142, %v1134
        %v1239 = vpack.c.b16 %v1143, %v1135
        %v1240 = vpack.c.b16 %v1144, %v1136
        %v1241 = vpack.c.b16 %v1145, %v1137
        %v1242 = vpack.c.b16 %v1146, %v1138
        %v1243 = vpack.c.b16 %v1147, %v1139
        %v1244 = vpack.c.b16 %v1148, %v1140
        %v1245 = vpack.c.b16 %v1157, %v1149
        %v1246 = vpack.c.b16 %v1158, %v1150
        %v1247 = vpack.c.b16 %v1159, %v1151
        %v1248 = vpack.c.b16 %v1160, %v1152
        %v1249 = vpack.c.b16 %v1161, %v1153
        %v1250 = vpack.c.b16 %v1162, %v1154
        %v1251 = vpack.c.b16 %v1163, %v1155
        %v1252 = vpack.c.b16 %v1164, %v1156
        %v1253 = vpack.c.b16 %v1173, %v1165
        %v1254 = vpack.c.b16 %v1174, %v1166
        %v1255 = vpack.c.b16 %v1175, %v1167
        %v1256 = vpack.c.b16 %v1176, %v1168
        %v1257 = vpack.c.b16 %v1177, %v1169
        %v1258 = vpack.c.b16 %v1178, %v1170
        %v1259 = vpack.c.b16 %v1179, %v1171
        %v1260 = vpack.c.b16 %v1180, %v1172
        %v1261 = vpack.c.b16 %v1189, %v1181
        %v1262 = vpack.c.b16 %v1190, %v1182
        %v1263 = vpack.c.b16 %v1191, %v1183
        %v1264 = vpack.c.b16 %v1192, %v1184
        %v1265 = vpack.c.b16 %v1193, %v1185
        %v1266 = vpack.c.b16 %v1194, %v1186
        %v1267 = vpack.c.b16 %v1195, %v1187
        %v1268 = vpack.c.b16 %v1196, %v1188
        %v1269 = vpack.c.b16 %v1205, %v1197
        %v1270 = vpack.c.b16 %v1206, %v1198
        %v1271 = vpack.c.b16 %v1207, %v1199
        %v1272 = vpack.c.b16 %v1208, %v1200
        %v1273 = vpack.c.b16 %v1209, %v1201
        %v1274 = vpack.c.b16 %v1210, %v1202
        %v1275 = vpack.c.b16 %v1211, %v1203
        %v1276 = vpack.c.b16 %v1212, %v1204
        %1341 = vmatprep.subr.bf16.mxu0 %v1214
        %1342 = vmatpush1.bf16.msra.mxu0 %v1213
        %1343 = vmatprep.subr.bf16.mxu0 %v1222
        %1344 = vmatpush1.bf16.msra.mxu0 %v1221
        %1345 = vmatprep.subr.bf16.mxu0 %v1230
        %1346 = vmatpush1.bf16.msra.mxu0 %v1229
        %1347 = vmatprep.subr.bf16.mxu0 %v1238
        %1348 = vmatpush1.bf16.msra.mxu0 %v1237
        %1349 = vmatprep.subr.bf16.mxu0 %v1246
        %1350 = vmatpush1.bf16.msra.mxu0 %v1245
        %1351 = vmatprep.subr.bf16.mxu0 %v1254
        %1352 = vmatpush1.bf16.msra.mxu0 %v1253
        %1353 = vmatprep.subr.bf16.mxu0 %v1262
        %1354 = vmatpush1.bf16.msra.mxu0 %v1261
        %1355 = vmatprep.subr.bf16.mxu0 %v1270
        %1356 = vmatpush1.bf16.msra.mxu0 %v1269
        %1357 = vmatprep.subr.bf16.mxu0 0
        %1358 = vmatpush1.bf16.msra.mxu0 0
        %1359 = vmatprep.subr.bf16.mxu0 0
        %1360 = vmatpush1.bf16.msra.mxu0 0
        %1361 = vmatprep.subr.bf16.mxu0 0
        %1362 = vmatpush1.bf16.msra.mxu0 0
        %1363 = vmatprep.subr.bf16.mxu0 0
        %1364 = vmatpush1.bf16.msra.mxu0 0
        %1365 = vmatprep.subr.bf16.mxu0 0
        %1366 = vmatpush1.bf16.msra.mxu0 0
        %1367 = vmatprep.subr.bf16.mxu0 0
        %1368 = vmatpush1.bf16.msra.mxu0 0
        %1369 = vmatprep.subr.bf16.mxu0 0
        %1370 = vmatpush1.bf16.msra.mxu0 0
        %1371 = vmatprep.subr.bf16.mxu0 0
        %1372 = vmatpush1.bf16.msra.mxu0 0
        %1373 = vmatprep.mubr.bf16.mxu0 0
        %1374 = vmatmul.mubr.bf16.gmra.mrb[0].mxu0 %v914
        %v1375 = vpop.f32.mrb[0].mxu0
        %v1376 = vadd.f32 %v984, %v1375
        %v1377 = vpop.f32.mrb[0].mxu0
        %v1378 = vadd.f32 %v988, %v1377
        %v1379 = vpop.f32.mrb[0].mxu0
        %v1380 = vadd.f32 %v984, %v1379
        %v1381 = vpop.f32.mrb[0].mxu0
        %v1382 = vadd.f32 %v988, %v1381
        %1383 = vdwg.mxu0
        %1384 = vmatprep.subr.bf16.mxu0 %v1216
        %1385 = vmatpush1.bf16.msra.mxu0 %v1215
        %1386 = vmatprep.subr.bf16.mxu0 %v1224
        %1387 = vmatpush1.bf16.msra.mxu0 %v1223
        %1388 = vmatprep.subr.bf16.mxu0 %v1232
        %1389 = vmatpush1.bf16.msra.mxu0 %v1231
        %1390 = vmatprep.subr.bf16.mxu0 %v1240
        %1391 = vmatpush1.bf16.msra.mxu0 %v1239
        %1392 = vmatprep.subr.bf16.mxu0 %v1248
        %1393 = vmatpush1.bf16.msra.mxu0 %v1247
        %1394 = vmatprep.subr.bf16.mxu0 %v1256
        %1395 = vmatpush1.bf16.msra.mxu0 %v1255
        %1396 = vmatprep.subr.bf16.mxu0 %v1264
        %1397 = vmatpush1.bf16.msra.mxu0 %v1263
        %1398 = vmatprep.subr.bf16.mxu0 %v1272
        %1399 = vmatpush1.bf16.msra.mxu0 %v1271
        %1400 = vmatprep.subr.bf16.mxu0 0
        %1401 = vmatpush1.bf16.msra.mxu0 0
        %1402 = vmatprep.subr.bf16.mxu0 0
        %1403 = vmatpush1.bf16.msra.mxu0 0
        %1404 = vmatprep.subr.bf16.mxu0 0
        %1405 = vmatpush1.bf16.msra.mxu0 0
        %1406 = vmatprep.subr.bf16.mxu0 0
        %1407 = vmatpush1.bf16.msra.mxu0 0
        %1408 = vmatprep.subr.bf16.mxu0 0
        %1409 = vmatpush1.bf16.msra.mxu0 0
        %1410 = vmatprep.subr.bf16.mxu0 0
        %1411 = vmatpush1.bf16.msra.mxu0 0
        %1412 = vmatprep.subr.bf16.mxu0 0
        %1413 = vmatpush1.bf16.msra.mxu0 0
        %1414 = vmatprep.subr.bf16.mxu0 0
        %1415 = vmatpush1.bf16.msra.mxu0 0
        %1416 = vmatprep.mubr.bf16.mxu0 0
        %1417 = vmatmul.mubr.bf16.gmra.mrb[0].mxu0 %v914
        %v1418 = vpop.f32.mrb[0].mxu0
        %v1419 = vadd.f32 %v992, %v1418
        %v1420 = vpop.f32.mrb[0].mxu0
        %v1421 = vadd.f32 %v996, %v1420
        %v1422 = vpop.f32.mrb[0].mxu0
        %v1423 = vadd.f32 %v992, %v1422
        %v1424 = vpop.f32.mrb[0].mxu0
        %v1425 = vadd.f32 %v996, %v1424
        %1426 = vdwg.mxu0
        %1427 = vmatprep.subr.bf16.mxu0 %v1218
        %1428 = vmatpush1.bf16.msra.mxu0 %v1217
        %1429 = vmatprep.subr.bf16.mxu0 %v1226
        %1430 = vmatpush1.bf16.msra.mxu0 %v1225
        %1431 = vmatprep.subr.bf16.mxu0 %v1234
        %1432 = vmatpush1.bf16.msra.mxu0 %v1233
        %1433 = vmatprep.subr.bf16.mxu0 %v1242
        %1434 = vmatpush1.bf16.msra.mxu0 %v1241
        %1435 = vmatprep.subr.bf16.mxu0 %v1250
        %1436 = vmatpush1.bf16.msra.mxu0 %v1249
        %1437 = vmatprep.subr.bf16.mxu0 %v1258
        %1438 = vmatpush1.bf16.msra.mxu0 %v1257
        %1439 = vmatprep.subr.bf16.mxu0 %v1266
        %1440 = vmatpush1.bf16.msra.mxu0 %v1265
        %1441 = vmatprep.subr.bf16.mxu0 %v1274
        %1442 = vmatpush1.bf16.msra.mxu0 %v1273
        %1443 = vmatprep.subr.bf16.mxu0 0
        %1444 = vmatpush1.bf16.msra.mxu0 0
        %1445 = vmatprep.subr.bf16.mxu0 0
        %1446 = vmatpush1.bf16.msra.mxu0 0
        %1447 = vmatprep.subr.bf16.mxu0 0
        %1448 = vmatpush1.bf16.msra.mxu0 0
        %1449 = vmatprep.subr.bf16.mxu0 0
        %1450 = vmatpush1.bf16.msra.mxu0 0
        %1451 = vmatprep.subr.bf16.mxu0 0
        %1452 = vmatpush1.bf16.msra.mxu0 0
        %1453 = vmatprep.subr.bf16.mxu0 0
        %1454 = vmatpush1.bf16.msra.mxu0 0
        %1455 = vmatprep.subr.bf16.mxu0 0
        %1456 = vmatpush1.bf16.msra.mxu0 0
        %1457 = vmatprep.subr.bf16.mxu0 0
        %1458 = vmatpush1.bf16.msra.mxu0 0
        %1459 = vmatprep.mubr.bf16.mxu0 0
        %1460 = vmatmul.mubr.bf16.gmra.mrb[0].mxu0 %v914
        %v1461 = vpop.f32.mrb[0].mxu0
        %v1462 = vadd.f32 %v1000, %v1461
        %v1463 = vpop.f32.mrb[0].mxu0
        %v1464 = vadd.f32 %v1004, %v1463
        %v1465 = vpop.f32.mrb[0].mxu0
        %v1466 = vadd.f32 %v1000, %v1465
        %v1467 = vpop.f32.mrb[0].mxu0
        %v1468 = vadd.f32 %v1004, %v1467
        %1469 = vdwg.mxu0
        %1470 = vmatprep.subr.bf16.mxu0 %v1220
        %1471 = vmatpush1.bf16.msra.mxu0 %v1219
        %1472 = vmatprep.subr.bf16.mxu0 %v1228
        %1473 = vmatpush1.bf16.msra.mxu0 %v1227
        %1474 = vmatprep.subr.bf16.mxu0 %v1236
        %1475 = vmatpush1.bf16.msra.mxu0 %v1235
        %1476 = vmatprep.subr.bf16.mxu0 %v1244
        %1477 = vmatpush1.bf16.msra.mxu0 %v1243
        %1478 = vmatprep.subr.bf16.mxu0 %v1252
        %1479 = vmatpush1.bf16.msra.mxu0 %v1251
        %1480 = vmatprep.subr.bf16.mxu0 %v1260
        %1481 = vmatpush1.bf16.msra.mxu0 %v1259
        %1482 = vmatprep.subr.bf16.mxu0 %v1268
        %1483 = vmatpush1.bf16.msra.mxu0 %v1267
        %1484 = vmatprep.subr.bf16.mxu0 %v1276
        %1485 = vmatpush1.bf16.msra.mxu0 %v1275
        %1486 = vmatprep.subr.bf16.mxu0 0
        %1487 = vmatpush1.bf16.msra.mxu0 0
        %1488 = vmatprep.subr.bf16.mxu0 0
        %1489 = vmatpush1.bf16.msra.mxu0 0
        %1490 = vmatprep.subr.bf16.mxu0 0
        %1491 = vmatpush1.bf16.msra.mxu0 0
        %1492 = vmatprep.subr.bf16.mxu0 0
        %1493 = vmatpush1.bf16.msra.mxu0 0
        %1494 = vmatprep.subr.bf16.mxu0 0
        %1495 = vmatpush1.bf16.msra.mxu0 0
        %1496 = vmatprep.subr.bf16.mxu0 0
        %1497 = vmatpush1.bf16.msra.mxu0 0
        %1498 = vmatprep.subr.bf16.mxu0 0
        %1499 = vmatpush1.bf16.msra.mxu0 0
        %1500 = vmatprep.subr.bf16.mxu0 0
        %1501 = vmatpush1.bf16.msra.mxu0 0
        %1502 = vmatprep.mubr.bf16.mxu0 0
        %1503 = vmatmul.mubr.bf16.gmra.mrb[0].mxu0 %v914
        %v1504 = vpop.f32.mrb[0].mxu0
        %v1505 = vadd.f32 %v1008, %v1504
        %v1506 = vpop.f32.mrb[0].mxu0
        %v1507 = vadd.f32 %v1012, %v1506
        %v1508 = vpop.f32.mrb[0].mxu0
        %v1509 = vadd.f32 %v1008, %v1508
        %v1510 = vpop.f32.mrb[0].mxu0
        %v1511 = vadd.f32 %v1012, %v1510
        %1512 = vdwg.mxu0
        %v1513 = vld [vmem:[#allocation4] sm:$0xff]
        %v1514 = vadd.f32 %v1376, %v1380
        %v1515 = vrot.slane %v1514, 4
        %v1516 = vadd.f32 %v1514, %v1515
        %v1517 = vrot.slane %v1516, 2
        %v1518 = vadd.f32 %v1516, %v1517
        %v1519 = vrot.slane %v1518, 1
        %v1520 = vadd.f32 %v1518, %v1519
        %v1521 = vadd.f32 %v1378, %v1382
        %v1522 = vrot.slane %v1521, 4
        %v1523 = vadd.f32 %v1521, %v1522
        %v1524 = vrot.slane %v1523, 2
        %v1525 = vadd.f32 %v1523, %v1524
        %v1526 = vrot.slane %v1525, 1
        %v1527 = vadd.f32 %v1525, %v1526
        %v1528 = vadd.f32 %v1419, %v1423
        %v1529 = vrot.slane %v1528, 4
        %v1530 = vadd.f32 %v1528, %v1529
        %v1531 = vrot.slane %v1530, 2
        %v1532 = vadd.f32 %v1530, %v1531
        %v1533 = vrot.slane %v1532, 1
        %v1534 = vadd.f32 %v1532, %v1533
        %v1535 = vadd.f32 %v1421, %v1425
        %v1536 = vrot.slane %v1535, 4
        %v1537 = vadd.f32 %v1535, %v1536
        %v1538 = vrot.slane %v1537, 2
        %v1539 = vadd.f32 %v1537, %v1538
        %v1540 = vrot.slane %v1539, 1
        %v1541 = vadd.f32 %v1539, %v1540
        %v1542 = vadd.f32 %v1462, %v1466
        %v1543 = vrot.slane %v1542, 4
        %v1544 = vadd.f32 %v1542, %v1543
        %v1545 = vrot.slane %v1544, 2
        %v1546 = vadd.f32 %v1544, %v1545
        %v1547 = vrot.slane %v1546, 1
        %v1548 = vadd.f32 %v1546, %v1547
        %v1549 = vadd.f32 %v1464, %v1468
        %v1550 = vrot.slane %v1549, 4
        %v1551 = vadd.f32 %v1549, %v1550
        %v1552 = vrot.slane %v1551, 2
        %v1553 = vadd.f32 %v1551, %v1552
        %v1554 = vrot.slane %v1553, 1
        %v1555 = vadd.f32 %v1553, %v1554
        %v1556 = vadd.f32 %v1505, %v1509
        %v1557 = vrot.slane %v1556, 4
        %v1558 = vadd.f32 %v1556, %v1557
        %v1559 = vrot.slane %v1558, 2
        %v1560 = vadd.f32 %v1558, %v1559
        %v1561 = vrot.slane %v1560, 1
        %v1562 = vadd.f32 %v1560, %v1561
        %v1563 = vadd.f32 %v1507, %v1511
        %v1564 = vrot.slane %v1563, 4
        %v1565 = vadd.f32 %v1563, %v1564
        %v1566 = vrot.slane %v1565, 2
        %v1567 = vadd.f32 %v1565, %v1566
        %v1568 = vrot.slane %v1567, 1
        %v1569 = vadd.f32 %v1567, %v1568
        %v1578 = vcombine.low %v1520, %v1527
        %v1579 = vcombine.low %v1534, %v1541
        %v1580 = vcombine.low %v1548, %v1555
        %v1581 = vcombine.low %v1562, %v1569
        %v1583 = vunpack.c.l.s4 1966171168
        %v1584 = vunpack.c.0.s8 %v1583
        %v1585 = vlaneseq
        %v1586 = vshrl.u32 %v1585, 7
        %v1587 = vsub.s32 %v1584, %v1586
        %v1588 = vrot.slane %v1578, %v1587
        %v1590 = vunpack.c.l.s4 1966171168
        %v1591 = vunpack.c.0.s8 %v1590
        %v1592 = vlaneseq
        %v1593 = vshrl.u32 %v1592, 7
        %v1594 = vsub.s32 %v1591, %v1593
        %v1595 = vrot.slane %v1579, %v1594
        %v1597 = vunpack.c.l.s4 1966171168
        %v1598 = vunpack.c.0.s8 %v1597
        %v1599 = vlaneseq
        %v1600 = vshrl.u32 %v1599, 7
        %v1601 = vsub.s32 %v1598, %v1600
        %v1602 = vrot.slane %v1580, %v1601
        %v1604 = vunpack.c.l.s4 1966171168
        %v1605 = vunpack.c.0.s8 %v1604
        %v1606 = vlaneseq
        %v1607 = vshrl.u32 %v1606, 7
        %v1608 = vsub.s32 %v1605, %v1607
        %v1609 = vrot.slane %v1581, %v1608
        %v1610 = vcombine.low %v1588, %v1595
        %v1611 = vcombine.low %v1602, %v1609
        %v1613 = vunpack.c.l.s4 1966171168
        %v1614 = vunpack.c.0.s8 %v1613
        %v1615 = vlaneseq
        %v1616 = vshrl.u32 %v1615, 7
        %v1617 = vsub.s32 %v1614, %v1616
        %v1618 = vrot.slane %v1610, %v1617
        %v1620 = vunpack.c.l.s4 1966171168
        %v1621 = vunpack.c.0.s8 %v1620
        %v1622 = vlaneseq
        %v1623 = vshrl.u32 %v1622, 7
        %v1624 = vsub.s32 %v1621, %v1623
        %v1625 = vrot.slane %v1611, %v1624
        %v1626 = vcombine.low %v1618, %v1625
        %v1628 = vadd.f32 %v1513, %v1626
        %1629 = vst [vmem:[#allocation4] sm:$0xff] %v1628
        %v1630 = vld [vmem:[#allocation5] sm:$0xff]
        %v1631 = vmul.f32 %v1376, %v1376
        %v1632 = vmul.f32 %v1378, %v1378
        %v1633 = vmul.f32 %v1419, %v1419
        %v1634 = vmul.f32 %v1421, %v1421
        %v1635 = vmul.f32 %v1462, %v1462
        %v1636 = vmul.f32 %v1464, %v1464
        %v1637 = vmul.f32 %v1505, %v1505
        %v1638 = vmul.f32 %v1507, %v1507
        %v1639 = vmul.f32 %v1380, %v1380
        %v1640 = vmul.f32 %v1382, %v1382
        %v1641 = vmul.f32 %v1423, %v1423
        %v1642 = vmul.f32 %v1425, %v1425
        %v1643 = vmul.f32 %v1466, %v1466
        %v1644 = vmul.f32 %v1468, %v1468
        %v1645 = vmul.f32 %v1509, %v1509
        %v1646 = vmul.f32 %v1511, %v1511
        %v1647 = vadd.f32 %v1631, %v1639
        %v1648 = vrot.slane %v1647, 4
        %v1649 = vadd.f32 %v1647, %v1648
        %v1650 = vrot.slane %v1649, 2
        %v1651 = vadd.f32 %v1649, %v1650
        %v1652 = vrot.slane %v1651, 1
        %v1653 = vadd.f32 %v1651, %v1652
        %v1654 = vadd.f32 %v1632, %v1640
        %v1655 = vrot.slane %v1654, 4
        %v1656 = vadd.f32 %v1654, %v1655
        %v1657 = vrot.slane %v1656, 2
        %v1658 = vadd.f32 %v1656, %v1657
        %v1659 = vrot.slane %v1658, 1
        %v1660 = vadd.f32 %v1658, %v1659
        %v1661 = vadd.f32 %v1633, %v1641
        %v1662 = vrot.slane %v1661, 4
        %v1663 = vadd.f32 %v1661, %v1662
        %v1664 = vrot.slane %v1663, 2
        %v1665 = vadd.f32 %v1663, %v1664
        %v1666 = vrot.slane %v1665, 1
        %v1667 = vadd.f32 %v1665, %v1666
        %v1668 = vadd.f32 %v1634, %v1642
        %v1669 = vrot.slane %v1668, 4
        %v1670 = vadd.f32 %v1668, %v1669
        %v1671 = vrot.slane %v1670, 2
        %v1672 = vadd.f32 %v1670, %v1671
        %v1673 = vrot.slane %v1672, 1
        %v1674 = vadd.f32 %v1672, %v1673
        %v1675 = vadd.f32 %v1635, %v1643
        %v1676 = vrot.slane %v1675, 4
        %v1677 = vadd.f32 %v1675, %v1676
        %v1678 = vrot.slane %v1677, 2
        %v1679 = vadd.f32 %v1677, %v1678
        %v1680 = vrot.slane %v1679, 1
        %v1681 = vadd.f32 %v1679, %v1680
        %v1682 = vadd.f32 %v1636, %v1644
        %v1683 = vrot.slane %v1682, 4
        %v1684 = vadd.f32 %v1682, %v1683
        %v1685 = vrot.slane %v1684, 2
        %v1686 = vadd.f32 %v1684, %v1685
        %v1687 = vrot.slane %v1686, 1
        %v1688 = vadd.f32 %v1686, %v1687
        %v1689 = vadd.f32 %v1637, %v1645
        %v1690 = vrot.slane %v1689, 4
        %v1691 = vadd.f32 %v1689, %v1690
        %v1692 = vrot.slane %v1691, 2
        %v1693 = vadd.f32 %v1691, %v1692
        %v1694 = vrot.slane %v1693, 1
        %v1695 = vadd.f32 %v1693, %v1694
        %v1696 = vadd.f32 %v1638, %v1646
        %v1697 = vrot.slane %v1696, 4
        %v1698 = vadd.f32 %v1696, %v1697
        %v1699 = vrot.slane %v1698, 2
        %v1700 = vadd.f32 %v1698, %v1699
        %v1701 = vrot.slane %v1700, 1
        %v1702 = vadd.f32 %v1700, %v1701
        %v1711 = vcombine.low %v1653, %v1660
        %v1712 = vcombine.low %v1667, %v1674
        %v1713 = vcombine.low %v1681, %v1688
        %v1714 = vcombine.low %v1695, %v1702
        %v1716 = vunpack.c.l.s4 1966171168
        %v1717 = vunpack.c.0.s8 %v1716
        %v1718 = vlaneseq
        %v1719 = vshrl.u32 %v1718, 7
        %v1720 = vsub.s32 %v1717, %v1719
        %v1721 = vrot.slane %v1711, %v1720
        %v1723 = vunpack.c.l.s4 1966171168
        %v1724 = vunpack.c.0.s8 %v1723
        %v1725 = vlaneseq
        %v1726 = vshrl.u32 %v1725, 7
        %v1727 = vsub.s32 %v1724, %v1726
        %v1728 = vrot.slane %v1712, %v1727
        %v1730 = vunpack.c.l.s4 1966171168
        %v1731 = vunpack.c.0.s8 %v1730
        %v1732 = vlaneseq
        %v1733 = vshrl.u32 %v1732, 7
        %v1734 = vsub.s32 %v1731, %v1733
        %v1735 = vrot.slane %v1713, %v1734
        %v1737 = vunpack.c.l.s4 1966171168
        %v1738 = vunpack.c.0.s8 %v1737
        %v1739 = vlaneseq
        %v1740 = vshrl.u32 %v1739, 7
        %v1741 = vsub.s32 %v1738, %v1740
        %v1742 = vrot.slane %v1714, %v1741
        %v1743 = vcombine.low %v1721, %v1728
        %v1744 = vcombine.low %v1735, %v1742
        %v1746 = vunpack.c.l.s4 1966171168
        %v1747 = vunpack.c.0.s8 %v1746
        %v1748 = vlaneseq
        %v1749 = vshrl.u32 %v1748, 7
        %v1750 = vsub.s32 %v1747, %v1749
        %v1751 = vrot.slane %v1743, %v1750
        %v1753 = vunpack.c.l.s4 1966171168
        %v1754 = vunpack.c.0.s8 %v1753
        %v1755 = vlaneseq
        %v1756 = vshrl.u32 %v1755, 7
        %v1757 = vsub.s32 %v1754, %v1756
        %v1758 = vrot.slane %v1744, %v1757
        %v1759 = vcombine.low %v1751, %v1758
        %v1761 = vadd.f32 %v1630, %v1759
        %1762 = vst [vmem:[#allocation5] sm:$0xff] %v1761
        %v1763 = vmax.f32 %v1376, %v1380
        %v1764 = vrot.slane %v1763, 4
        %v1765 = vmax.f32 %v1763, %v1764
        %v1766 = vrot.slane %v1765, 2
        %v1767 = vmax.f32 %v1765, %v1766
        %v1768 = vrot.slane %v1767, 1
        %v1769 = vmax.f32 %v1767, %v1768
        %v1770 = vmax.f32 %v1378, %v1382
        %v1771 = vrot.slane %v1770, 4
        %v1772 = vmax.f32 %v1770, %v1771
        %v1773 = vrot.slane %v1772, 2
        %v1774 = vmax.f32 %v1772, %v1773
        %v1775 = vrot.slane %v1774, 1
        %v1776 = vmax.f32 %v1774, %v1775
        %v1777 = vmax.f32 %v1419, %v1423
        %v1778 = vrot.slane %v1777, 4
        %v1779 = vmax.f32 %v1777, %v1778
        %v1780 = vrot.slane %v1779, 2
        %v1781 = vmax.f32 %v1779, %v1780
        %v1782 = vrot.slane %v1781, 1
        %v1783 = vmax.f32 %v1781, %v1782
        %v1784 = vmax.f32 %v1421, %v1425
        %v1785 = vrot.slane %v1784, 4
        %v1786 = vmax.f32 %v1784, %v1785
        %v1787 = vrot.slane %v1786, 2
        %v1788 = vmax.f32 %v1786, %v1787
        %v1789 = vrot.slane %v1788, 1
        %v1790 = vmax.f32 %v1788, %v1789
        %v1791 = vmax.f32 %v1462, %v1466
        %v1792 = vrot.slane %v1791, 4
        %v1793 = vmax.f32 %v1791, %v1792
        %v1794 = vrot.slane %v1793, 2
        %v1795 = vmax.f32 %v1793, %v1794
        %v1796 = vrot.slane %v1795, 1
        %v1797 = vmax.f32 %v1795, %v1796
        %v1798 = vmax.f32 %v1464, %v1468
        %v1799 = vrot.slane %v1798, 4
        %v1800 = vmax.f32 %v1798, %v1799
        %v1801 = vrot.slane %v1800, 2
        %v1802 = vmax.f32 %v1800, %v1801
        %v1803 = vrot.slane %v1802, 1
        %v1804 = vmax.f32 %v1802, %v1803
        %v1805 = vmax.f32 %v1505, %v1509
        %v1806 = vrot.slane %v1805, 4
        %v1807 = vmax.f32 %v1805, %v1806
        %v1808 = vrot.slane %v1807, 2
        %v1809 = vmax.f32 %v1807, %v1808
        %v1810 = vrot.slane %v1809, 1
        %v1811 = vmax.f32 %v1809, %v1810
        %v1812 = vmax.f32 %v1507, %v1511
        %v1813 = vrot.slane %v1812, 4
        %v1814 = vmax.f32 %v1812, %v1813
        %v1815 = vrot.slane %v1814, 2
        %v1816 = vmax.f32 %v1814, %v1815
        %v1817 = vrot.slane %v1816, 1
        %v1818 = vmax.f32 %v1816, %v1817
        %v1819 = vmin.f32 %v1376, %v1380
        %v1820 = vrot.slane %v1819, 4
        %v1821 = vmin.f32 %v1819, %v1820
        %v1822 = vrot.slane %v1821, 2
        %v1823 = vmin.f32 %v1821, %v1822
        %v1824 = vrot.slane %v1823, 1
        %v1825 = vmin.f32 %v1823, %v1824
        %v1826 = vmin.f32 %v1378, %v1382
        %v1827 = vrot.slane %v1826, 4
        %v1828 = vmin.f32 %v1826, %v1827
        %v1829 = vrot.slane %v1828, 2
        %v1830 = vmin.f32 %v1828, %v1829
        %v1831 = vrot.slane %v1830, 1
        %v1832 = vmin.f32 %v1830, %v1831
        %v1833 = vmin.f32 %v1419, %v1423
        %v1834 = vrot.slane %v1833, 4
        %v1835 = vmin.f32 %v1833, %v1834
        %v1836 = vrot.slane %v1835, 2
        %v1837 = vmin.f32 %v1835, %v1836
        %v1838 = vrot.slane %v1837, 1
        %v1839 = vmin.f32 %v1837, %v1838
        %v1840 = vmin.f32 %v1421, %v1425
        %v1841 = vrot.slane %v1840, 4
        %v1842 = vmin.f32 %v1840, %v1841
        %v1843 = vrot.slane %v1842, 2
        %v1844 = vmin.f32 %v1842, %v1843
        %v1845 = vrot.slane %v1844, 1
        %v1846 = vmin.f32 %v1844, %v1845
        %v1847 = vmin.f32 %v1462, %v1466
        %v1848 = vrot.slane %v1847, 4
        %v1849 = vmin.f32 %v1847, %v1848
        %v1850 = vrot.slane %v1849, 2
        %v1851 = vmin.f32 %v1849, %v1850
        %v1852 = vrot.slane %v1851, 1
        %v1853 = vmin.f32 %v1851, %v1852
        %v1854 = vmin.f32 %v1464, %v1468
        %v1855 = vrot.slane %v1854, 4
        %v1856 = vmin.f32 %v1854, %v1855
        %v1857 = vrot.slane %v1856, 2
        %v1858 = vmin.f32 %v1856, %v1857
        %v1859 = vrot.slane %v1858, 1
        %v1860 = vmin.f32 %v1858, %v1859
        %v1861 = vmin.f32 %v1505, %v1509
        %v1862 = vrot.slane %v1861, 4
        %v1863 = vmin.f32 %v1861, %v1862
        %v1864 = vrot.slane %v1863, 2
        %v1865 = vmin.f32 %v1863, %v1864
        %v1866 = vrot.slane %v1865, 1
        %v1867 = vmin.f32 %v1865, %v1866
        %v1868 = vmin.f32 %v1507, %v1511
        %v1869 = vrot.slane %v1868, 4
        %v1870 = vmin.f32 %v1868, %v1869
        %v1871 = vrot.slane %v1870, 2
        %v1872 = vmin.f32 %v1870, %v1871
        %v1873 = vrot.slane %v1872, 1
        %v1874 = vmin.f32 %v1872, %v1873
        %s1875 = sshra.s32 %s38, 1
        %s1876 = sand.u32 %s38, 1
        %s1877 = sshra.s32 %s38, 1
        %s1878 = sand.u32 %s38, 1
        %s1879 = smul.u32 %s1875, 8
        %s1880 = smul.u32 %s1879, 2
        %s1881 = sadd.s32 %s1880, %s1878
        %s1882 = scalar_lea.vmem [#allocation6], %s1881
        %v1883 = vld [vmem:[%s1882] ss:$2 sm:$0xff]
        %v1892 = vcombine.low %v1769, %v1776
        %v1893 = vcombine.low %v1783, %v1790
        %v1894 = vcombine.low %v1797, %v1804
        %v1895 = vcombine.low %v1811, %v1818
        %v1897 = vunpack.c.l.s4 1966171168
        %v1898 = vunpack.c.0.s8 %v1897
        %v1899 = vlaneseq
        %v1900 = vshrl.u32 %v1899, 7
        %v1901 = vsub.s32 %v1898, %v1900
        %v1902 = vrot.slane %v1892, %v1901
        %v1904 = vunpack.c.l.s4 1966171168
        %v1905 = vunpack.c.0.s8 %v1904
        %v1906 = vlaneseq
        %v1907 = vshrl.u32 %v1906, 7
        %v1908 = vsub.s32 %v1905, %v1907
        %v1909 = vrot.slane %v1893, %v1908
        %v1911 = vunpack.c.l.s4 1966171168
        %v1912 = vunpack.c.0.s8 %v1911
        %v1913 = vlaneseq
        %v1914 = vshrl.u32 %v1913, 7
        %v1915 = vsub.s32 %v1912, %v1914
        %v1916 = vrot.slane %v1894, %v1915
        %v1918 = vunpack.c.l.s4 1966171168
        %v1919 = vunpack.c.0.s8 %v1918
        %v1920 = vlaneseq
        %v1921 = vshrl.u32 %v1920, 7
        %v1922 = vsub.s32 %v1919, %v1921
        %v1923 = vrot.slane %v1895, %v1922
        %v1924 = vcombine.low %v1902, %v1909
        %v1925 = vcombine.low %v1916, %v1923
        %v1927 = vunpack.c.l.s4 1966171168
        %v1928 = vunpack.c.0.s8 %v1927
        %v1929 = vlaneseq
        %v1930 = vshrl.u32 %v1929, 7
        %v1931 = vsub.s32 %v1928, %v1930
        %v1932 = vrot.slane %v1924, %v1931
        %v1934 = vunpack.c.l.s4 1966171168
        %v1935 = vunpack.c.0.s8 %v1934
        %v1936 = vlaneseq
        %v1937 = vshrl.u32 %v1936, 7
        %v1938 = vsub.s32 %v1935, %v1937
        %v1939 = vrot.slane %v1925, %v1938
        %v1940 = vcombine.low %v1932, %v1939
        %v1942 = vmax.f32 %v1883, %v1940
        %1943 = vst [vmem:[%s1882] ss:$2 sm:$0xff] %v1942
        %s1944 = scalar_lea.vmem [#allocation7], %s1881
        %v1945 = vld [vmem:[%s1944] ss:$2 sm:$0xff]
        %v1954 = vcombine.low %v1825, %v1832
        %v1955 = vcombine.low %v1839, %v1846
        %v1956 = vcombine.low %v1853, %v1860
        %v1957 = vcombine.low %v1867, %v1874
        %v1959 = vunpack.c.l.s4 1966171168
        %v1960 = vunpack.c.0.s8 %v1959
        %v1961 = vlaneseq
        %v1962 = vshrl.u32 %v1961, 7
        %v1963 = vsub.s32 %v1960, %v1962
        %v1964 = vrot.slane %v1954, %v1963
        %v1966 = vunpack.c.l.s4 1966171168
        %v1967 = vunpack.c.0.s8 %v1966
        %v1968 = vlaneseq
        %v1969 = vshrl.u32 %v1968, 7
        %v1970 = vsub.s32 %v1967, %v1969
        %v1971 = vrot.slane %v1955, %v1970
        %v1973 = vunpack.c.l.s4 1966171168
        %v1974 = vunpack.c.0.s8 %v1973
        %v1975 = vlaneseq
        %v1976 = vshrl.u32 %v1975, 7
        %v1977 = vsub.s32 %v1974, %v1976
        %v1978 = vrot.slane %v1956, %v1977
        %v1980 = vunpack.c.l.s4 1966171168
        %v1981 = vunpack.c.0.s8 %v1980
        %v1982 = vlaneseq
        %v1983 = vshrl.u32 %v1982, 7
        %v1984 = vsub.s32 %v1981, %v1983
        %v1985 = vrot.slane %v1957, %v1984
        %v1986 = vcombine.low %v1964, %v1971
        %v1987 = vcombine.low %v1978, %v1985
        %v1989 = vunpack.c.l.s4 1966171168
        %v1990 = vunpack.c.0.s8 %v1989
        %v1991 = vlaneseq
        %v1992 = vshrl.u32 %v1991, 7
        %v1993 = vsub.s32 %v1990, %v1992
        %v1994 = vrot.slane %v1986, %v1993
        %v1996 = vunpack.c.l.s4 1966171168
        %v1997 = vunpack.c.0.s8 %v1996
        %v1998 = vlaneseq
        %v1999 = vshrl.u32 %v1998, 7
        %v2000 = vsub.s32 %v1997, %v1999
        %v2001 = vrot.slane %v1987, %v2000
        %v2002 = vcombine.low %v1994, %v2001
        %v2004 = vmin.f32 %v1945, %v2002
        %2005 = vst [vmem:[%s1944] ss:$2 sm:$0xff] %v2004
      $region120: #{input_transform_net_alt_forward.1} parent=103 // pred_fallthru
        _
      %p2006 = pnand %p885, %p681
      %p2007 = pneg %p2006
      // Predicated region
      $region121: #{input_transform_net_alt_forward.1} parent=103 // pred_check
        _
      $region122: #{input_transform_net_alt_forward.1} parent=103 // pred_check_branch
        %2009 = sbr.rel (%p2006) target = $region124
      $region123: #{input_transform_net_alt_forward.1} parent=103 // pred_region
        %v2010 = vld [vmem:[#allocation4] sm:$0xff]
        %v2011 = vmul.f32 %v2010, 0.03125
        %v2012 = vld [vmem:[#allocation5] sm:$0xff]
        %v2013 = vmul.f32 %v2012, 0.03125
        %v2014 = vmul.f32 %v2011, %v2011
        %v2015 = vsub.f32 %v2013, %v2014
        %v2016 = vmax.f32 %v2015, 0.0
        %2017 = vst [vmem:[#allocation4] sm:$0xff] %v2011
        %v2018 = vadd.f32 %v2016, 1e-05
        %v2019 = vrsqrt.pop %v2018
        %2020 = vst [vmem:[#allocation5] sm:$0xff] %v2019
        %v2021 = vld [vmem:[#allocation5] sm:$0xff]
        %v2022 = vld [vmem:[%s9] sm:$0xff]
        %v2023 = vmul.f32 %v2021, %v2022
        %v2024 = vld [vmem:[%s10] sm:$0xff]
        %v2025 = vld [vmem:[#allocation4] sm:$0xff]
        %v2026 = vmul.f32 %v2025, %v2023
        %v2027 = vsub.f32 %v2024, %v2026
        %vm2028 = vcmp.ge.f32.partialorder %v2023, 0.0
        %v2029 = vld [vmem:[#allocation6] sm:$0xff]
        %v2030 = vld [vmem:[#allocation6 + $0x8] sm:$0xff]
        %v2031 = vld [vmem:[#allocation7] sm:$0xff]
        %v2032 = vld [vmem:[#allocation7 + $0x8] sm:$0xff]
        %v2033 = vsel %vm2028, 1, 0
        %v2034 = vlaneseq
        %v2035 = vshrl.u32 %v2034, 7
        %v2036 = vsub.s32 0, %v2035
        %v2037 = vrot.slane %v2033, %v2036
        %v2038 = vlaneseq
        %v2039 = vshrl.u32 %v2038, 7
        %v2040 = vsub.s32 1, %v2039
        %v2041 = vrot.slane %v2033, %v2040
        %v2042 = vlaneseq
        %v2043 = vshrl.u32 %v2042, 7
        %v2044 = vsub.s32 2, %v2043
        %v2045 = vrot.slane %v2033, %v2044
        %v2046 = vlaneseq
        %v2047 = vshrl.u32 %v2046, 7
        %v2048 = vsub.s32 3, %v2047
        %v2049 = vrot.slane %v2033, %v2048
        %v2050 = vlaneseq
        %v2051 = vshrl.u32 %v2050, 7
        %v2052 = vsub.s32 4, %v2051
        %v2053 = vrot.slane %v2033, %v2052
        %v2054 = vlaneseq
        %v2055 = vshrl.u32 %v2054, 7
        %v2056 = vsub.s32 5, %v2055
        %v2057 = vrot.slane %v2033, %v2056
        %v2058 = vlaneseq
        %v2059 = vshrl.u32 %v2058, 7
        %v2060 = vsub.s32 6, %v2059
        %v2061 = vrot.slane %v2033, %v2060
        %v2062 = vlaneseq
        %v2063 = vshrl.u32 %v2062, 7
        %v2064 = vsub.s32 7, %v2063
        %v2065 = vrot.slane %v2033, %v2064
        %vm2066 = vcmp.eq.s32.totalorder %v2037, 1
        %vm2067 = vcmp.eq.s32.totalorder %v2041, 1
        %vm2068 = vcmp.eq.s32.totalorder %v2045, 1
        %vm2069 = vcmp.eq.s32.totalorder %v2049, 1
        %vm2070 = vcmp.eq.s32.totalorder %v2053, 1
        %vm2071 = vcmp.eq.s32.totalorder %v2057, 1
        %vm2072 = vcmp.eq.s32.totalorder %v2061, 1
        %vm2073 = vcmp.eq.s32.totalorder %v2065, 1
        %v2076 = vcombine.high %v2029, %v2029
        %v2078 = vunpack.c.l.s4 1983009808
        %v2079 = vunpack.c.0.s8 %v2078
        %v2080 = vlaneseq
        %v2081 = vshrl.u32 %v2080, 7
        %v2082 = vsub.s32 %v2079, %v2081
        %v2083 = vrot.slane %v2029, %v2082
        %v2085 = vunpack.c.l.s4 1983009808
        %v2086 = vunpack.c.0.s8 %v2085
        %v2087 = vlaneseq
        %v2088 = vshrl.u32 %v2087, 7
        %v2089 = vsub.s32 %v2086, %v2088
        %v2090 = vrot.slane %v2076, %v2089
        %v2091 = vcombine.high %v2083, %v2083
        %v2092 = vcombine.high %v2090, %v2090
        %v2093 = vcombine.high %v2030, %v2030
        %v2095 = vunpack.c.l.s4 1983009808
        %v2096 = vunpack.c.0.s8 %v2095
        %v2097 = vlaneseq
        %v2098 = vshrl.u32 %v2097, 7
        %v2099 = vsub.s32 %v2096, %v2098
        %v2100 = vrot.slane %v2030, %v2099
        %v2102 = vunpack.c.l.s4 1983009808
        %v2103 = vunpack.c.0.s8 %v2102
        %v2104 = vlaneseq
        %v2105 = vshrl.u32 %v2104, 7
        %v2106 = vsub.s32 %v2103, %v2105
        %v2107 = vrot.slane %v2093, %v2106
        %v2108 = vcombine.high %v2100, %v2100
        %v2109 = vcombine.high %v2107, %v2107
        %v2120 = vcombine.high %v2031, %v2031
        %v2122 = vunpack.c.l.s4 1983009808
        %v2123 = vunpack.c.0.s8 %v2122
        %v2124 = vlaneseq
        %v2125 = vshrl.u32 %v2124, 7
        %v2126 = vsub.s32 %v2123, %v2125
        %v2127 = vrot.slane %v2031, %v2126
        %v2129 = vunpack.c.l.s4 1983009808
        %v2130 = vunpack.c.0.s8 %v2129
        %v2131 = vlaneseq
        %v2132 = vshrl.u32 %v2131, 7
        %v2133 = vsub.s32 %v2130, %v2132
        %v2134 = vrot.slane %v2120, %v2133
        %v2135 = vcombine.high %v2127, %v2127
        %v2136 = vcombine.high %v2134, %v2134
        %v2137 = vcombine.high %v2032, %v2032
        %v2139 = vunpack.c.l.s4 1983009808
        %v2140 = vunpack.c.0.s8 %v2139
        %v2141 = vlaneseq
        %v2142 = vshrl.u32 %v2141, 7
        %v2143 = vsub.s32 %v2140, %v2142
        %v2144 = vrot.slane %v2032, %v2143
        %v2146 = vunpack.c.l.s4 1983009808
        %v2147 = vunpack.c.0.s8 %v2146
        %v2148 = vlaneseq
        %v2149 = vshrl.u32 %v2148, 7
        %v2150 = vsub.s32 %v2147, %v2149
        %v2151 = vrot.slane %v2137, %v2150
        %v2152 = vcombine.high %v2144, %v2144
        %v2153 = vcombine.high %v2151, %v2151
        %v2162 = vsel %vm2066, %v2083, %v2127
        %v2163 = vsel %vm2067, %v2091, %v2135
        %v2164 = vsel %vm2068, %v2090, %v2134
        %v2165 = vsel %vm2069, %v2092, %v2136
        %v2166 = vsel %vm2070, %v2100, %v2144
        %v2167 = vsel %vm2071, %v2108, %v2152
        %v2168 = vsel %vm2072, %v2107, %v2151
        %v2169 = vsel %vm2073, %v2109, %v2153
        %v2171 = vlaneseq
        %v2172 = vshrl.u32 %v2171, 7
        %v2173 = vsub.s32 0, %v2172
        %v2174 = vrot.slane %v2023, %v2173
        %v2175 = vlaneseq
        %v2176 = vshrl.u32 %v2175, 7
        %v2177 = vsub.s32 1, %v2176
        %v2178 = vrot.slane %v2023, %v2177
        %v2179 = vlaneseq
        %v2180 = vshrl.u32 %v2179, 7
        %v2181 = vsub.s32 2, %v2180
        %v2182 = vrot.slane %v2023, %v2181
        %v2183 = vlaneseq
        %v2184 = vshrl.u32 %v2183, 7
        %v2185 = vsub.s32 3, %v2184
        %v2186 = vrot.slane %v2023, %v2185
        %v2187 = vlaneseq
        %v2188 = vshrl.u32 %v2187, 7
        %v2189 = vsub.s32 4, %v2188
        %v2190 = vrot.slane %v2023, %v2189
        %v2191 = vlaneseq
        %v2192 = vshrl.u32 %v2191, 7
        %v2193 = vsub.s32 5, %v2192
        %v2194 = vrot.slane %v2023, %v2193
        %v2195 = vlaneseq
        %v2196 = vshrl.u32 %v2195, 7
        %v2197 = vsub.s32 6, %v2196
        %v2198 = vrot.slane %v2023, %v2197
        %v2199 = vlaneseq
        %v2200 = vshrl.u32 %v2199, 7
        %v2201 = vsub.s32 7, %v2200
        %v2202 = vrot.slane %v2023, %v2201
        %v2211 = vmul.f32 %v2162, %v2174
        %v2212 = vmul.f32 %v2163, %v2178
        %v2213 = vmul.f32 %v2164, %v2182
        %v2214 = vmul.f32 %v2165, %v2186
        %v2215 = vmul.f32 %v2166, %v2190
        %v2216 = vmul.f32 %v2167, %v2194
        %v2217 = vmul.f32 %v2168, %v2198
        %v2218 = vmul.f32 %v2169, %v2202
        %v2220 = vlaneseq
        %v2221 = vshrl.u32 %v2220, 7
        %v2222 = vsub.s32 0, %v2221
        %v2223 = vrot.slane %v2027, %v2222
        %v2224 = vlaneseq
        %v2225 = vshrl.u32 %v2224, 7
        %v2226 = vsub.s32 1, %v2225
        %v2227 = vrot.slane %v2027, %v2226
        %v2228 = vlaneseq
        %v2229 = vshrl.u32 %v2228, 7
        %v2230 = vsub.s32 2, %v2229
        %v2231 = vrot.slane %v2027, %v2230
        %v2232 = vlaneseq
        %v2233 = vshrl.u32 %v2232, 7
        %v2234 = vsub.s32 3, %v2233
        %v2235 = vrot.slane %v2027, %v2234
        %v2236 = vlaneseq
        %v2237 = vshrl.u32 %v2236, 7
        %v2238 = vsub.s32 4, %v2237
        %v2239 = vrot.slane %v2027, %v2238
        %v2240 = vlaneseq
        %v2241 = vshrl.u32 %v2240, 7
        %v2242 = vsub.s32 5, %v2241
        %v2243 = vrot.slane %v2027, %v2242
        %v2244 = vlaneseq
        %v2245 = vshrl.u32 %v2244, 7
        %v2246 = vsub.s32 6, %v2245
        %v2247 = vrot.slane %v2027, %v2246
        %v2248 = vlaneseq
        %v2249 = vshrl.u32 %v2248, 7
        %v2250 = vsub.s32 7, %v2249
        %v2251 = vrot.slane %v2027, %v2250
        %v2260 = vadd.f32 %v2211, %v2223
        %v2261 = vadd.f32 %v2212, %v2227
        %v2262 = vadd.f32 %v2213, %v2231
        %v2263 = vadd.f32 %v2214, %v2235
        %v2264 = vadd.f32 %v2215, %v2239
        %v2265 = vadd.f32 %v2216, %v2243
        %v2266 = vadd.f32 %v2217, %v2247
        %v2267 = vadd.f32 %v2218, %v2251
        %v2268 = vmax.f32 %v2260, 0.0
        %v2269 = vmax.f32 %v2261, 0.0
        %v2270 = vmax.f32 %v2262, 0.0
        %v2271 = vmax.f32 %v2263, 0.0
        %v2272 = vmax.f32 %v2264, 0.0
        %v2273 = vmax.f32 %v2265, 0.0
        %v2274 = vmax.f32 %v2266, 0.0
        %v2275 = vmax.f32 %v2267, 0.0
        %v2276 = vpack.c.bf16 %v2268, %v2268
        %v2277 = vpack.c.bf16 %v2269, %v2269
        %v2278 = vpack.c.bf16 %v2270, %v2270
        %v2279 = vpack.c.bf16 %v2271, %v2271
        %v2280 = vpack.c.bf16 %v2272, %v2272
        %v2281 = vpack.c.bf16 %v2273, %v2273
        %v2282 = vpack.c.bf16 %v2274, %v2274
        %v2283 = vpack.c.bf16 %v2275, %v2275
        %v2284 = vld [vmem:[%s11] sm:$0xff]
        %v2285 = vld [vmem:[%s11 + $0x8] sm:$0xff]
        %v2286 = vld [vmem:[%s11 + $0x10] sm:$0xff]
        %v2287 = vld [vmem:[%s11 + $0x18] sm:$0xff]
        %v2288 = vld [vmem:[%s11 + $0x20] sm:$0xff]
        %v2289 = vld [vmem:[%s11 + $0x28] sm:$0xff]
        %v2290 = vld [vmem:[%s11 + $0x30] sm:$0xff]
        %v2291 = vld [vmem:[%s11 + $0x38] sm:$0xff]
        %v2292 = vld [vmem:[%s11 + $0x40] sm:$0xff]
        %v2293 = vld [vmem:[%s11 + $0x48] sm:$0xff]
        %v2294 = vld [vmem:[%s11 + $0x50] sm:$0xff]
        %v2295 = vld [vmem:[%s11 + $0x58] sm:$0xff]
        %v2296 = vld [vmem:[%s11 + $0x60] sm:$0xff]
        %v2297 = vld [vmem:[%s11 + $0x68] sm:$0xff]
        %v2298 = vld [vmem:[%s11 + $0x70] sm:$0xff]
        %v2299 = vld [vmem:[%s11 + $0x78] sm:$0xff]
        %v2300 = vld [vmem:[%s11 + $0x80] sm:$0xff]
        %v2301 = vld [vmem:[%s11 + $0x88] sm:$0xff]
        %v2302 = vld [vmem:[%s11 + $0x90] sm:$0xff]
        %v2303 = vld [vmem:[%s11 + $0x98] sm:$0xff]
        %v2304 = vld [vmem:[%s11 + $0xa0] sm:$0xff]
        %v2305 = vld [vmem:[%s11 + $0xa8] sm:$0xff]
        %v2306 = vld [vmem:[%s11 + $0xb0] sm:$0xff]
        %v2307 = vld [vmem:[%s11 + $0xb8] sm:$0xff]
        %v2308 = vld [vmem:[%s11 + $0xc0] sm:$0xff]
        %v2309 = vld [vmem:[%s11 + $0xc8] sm:$0xff]
        %v2310 = vld [vmem:[%s11 + $0xd0] sm:$0xff]
        %v2311 = vld [vmem:[%s11 + $0xd8] sm:$0xff]
        %v2312 = vld [vmem:[%s11 + $0xe0] sm:$0xff]
        %v2313 = vld [vmem:[%s11 + $0xe8] sm:$0xff]
        %v2314 = vld [vmem:[%s11 + $0xf0] sm:$0xff]
        %v2315 = vld [vmem:[%s11 + $0xf8] sm:$0xff]
        %v2316 = vld [vmem:[%s11 + $0x100] sm:$0xff]
        %v2317 = vld [vmem:[%s11 + $0x108] sm:$0xff]
        %v2318 = vld [vmem:[%s11 + $0x110] sm:$0xff]
        %v2319 = vld [vmem:[%s11 + $0x118] sm:$0xff]
        %v2320 = vld [vmem:[%s11 + $0x120] sm:$0xff]
        %v2321 = vld [vmem:[%s11 + $0x128] sm:$0xff]
        %v2322 = vld [vmem:[%s11 + $0x130] sm:$0xff]
        %v2323 = vld [vmem:[%s11 + $0x138] sm:$0xff]
        %v2324 = vld [vmem:[%s11 + $0x140] sm:$0xff]
        %v2325 = vld [vmem:[%s11 + $0x148] sm:$0xff]
        %v2326 = vld [vmem:[%s11 + $0x150] sm:$0xff]
        %v2327 = vld [vmem:[%s11 + $0x158] sm:$0xff]
        %v2328 = vld [vmem:[%s11 + $0x160] sm:$0xff]
        %v2329 = vld [vmem:[%s11 + $0x168] sm:$0xff]
        %v2330 = vld [vmem:[%s11 + $0x170] sm:$0xff]
        %v2331 = vld [vmem:[%s11 + $0x178] sm:$0xff]
        %v2332 = vld [vmem:[%s11 + $0x180] sm:$0xff]
        %v2333 = vld [vmem:[%s11 + $0x188] sm:$0xff]
        %v2334 = vld [vmem:[%s11 + $0x190] sm:$0xff]
        %v2335 = vld [vmem:[%s11 + $0x198] sm:$0xff]
        %v2336 = vld [vmem:[%s11 + $0x1a0] sm:$0xff]
        %v2337 = vld [vmem:[%s11 + $0x1a8] sm:$0xff]
        %v2338 = vld [vmem:[%s11 + $0x1b0] sm:$0xff]
        %v2339 = vld [vmem:[%s11 + $0x1b8] sm:$0xff]
        %v2340 = vld [vmem:[%s11 + $0x1c0] sm:$0xff]
        %v2341 = vld [vmem:[%s11 + $0x1c8] sm:$0xff]
        %v2342 = vld [vmem:[%s11 + $0x1d0] sm:$0xff]
        %v2343 = vld [vmem:[%s11 + $0x1d8] sm:$0xff]
        %v2344 = vld [vmem:[%s11 + $0x1e0] sm:$0xff]
        %v2345 = vld [vmem:[%s11 + $0x1e8] sm:$0xff]
        %v2346 = vld [vmem:[%s11 + $0x1f0] sm:$0xff]
        %v2347 = vld [vmem:[%s11 + $0x1f8] sm:$0xff]
        %v2348 = vld [vmem:[%s11 + $0x200] sm:$0xff]
        %v2349 = vld [vmem:[%s11 + $0x208] sm:$0xff]
        %v2350 = vld [vmem:[%s11 + $0x210] sm:$0xff]
        %v2351 = vld [vmem:[%s11 + $0x218] sm:$0xff]
        %v2352 = vld [vmem:[%s11 + $0x220] sm:$0xff]
        %v2353 = vld [vmem:[%s11 + $0x228] sm:$0xff]
        %v2354 = vld [vmem:[%s11 + $0x230] sm:$0xff]
        %v2355 = vld [vmem:[%s11 + $0x238] sm:$0xff]
        %v2356 = vld [vmem:[%s11 + $0x240] sm:$0xff]
        %v2357 = vld [vmem:[%s11 + $0x248] sm:$0xff]
        %v2358 = vld [vmem:[%s11 + $0x250] sm:$0xff]
        %v2359 = vld [vmem:[%s11 + $0x258] sm:$0xff]
        %v2360 = vld [vmem:[%s11 + $0x260] sm:$0xff]
        %v2361 = vld [vmem:[%s11 + $0x268] sm:$0xff]
        %v2362 = vld [vmem:[%s11 + $0x270] sm:$0xff]
        %v2363 = vld [vmem:[%s11 + $0x278] sm:$0xff]
        %v2364 = vld [vmem:[%s11 + $0x280] sm:$0xff]
        %v2365 = vld [vmem:[%s11 + $0x288] sm:$0xff]
        %v2366 = vld [vmem:[%s11 + $0x290] sm:$0xff]
        %v2367 = vld [vmem:[%s11 + $0x298] sm:$0xff]
        %v2368 = vld [vmem:[%s11 + $0x2a0] sm:$0xff]
        %v2369 = vld [vmem:[%s11 + $0x2a8] sm:$0xff]
        %v2370 = vld [vmem:[%s11 + $0x2b0] sm:$0xff]
        %v2371 = vld [vmem:[%s11 + $0x2b8] sm:$0xff]
        %v2372 = vld [vmem:[%s11 + $0x2c0] sm:$0xff]
        %v2373 = vld [vmem:[%s11 + $0x2c8] sm:$0xff]
        %v2374 = vld [vmem:[%s11 + $0x2d0] sm:$0xff]
        %v2375 = vld [vmem:[%s11 + $0x2d8] sm:$0xff]
        %v2376 = vld [vmem:[%s11 + $0x2e0] sm:$0xff]
        %v2377 = vld [vmem:[%s11 + $0x2e8] sm:$0xff]
        %v2378 = vld [vmem:[%s11 + $0x2f0] sm:$0xff]
        %v2379 = vld [vmem:[%s11 + $0x2f8] sm:$0xff]
        %v2380 = vld [vmem:[%s11 + $0x300] sm:$0xff]
        %v2381 = vld [vmem:[%s11 + $0x308] sm:$0xff]
        %v2382 = vld [vmem:[%s11 + $0x310] sm:$0xff]
        %v2383 = vld [vmem:[%s11 + $0x318] sm:$0xff]
        %v2384 = vld [vmem:[%s11 + $0x320] sm:$0xff]
        %v2385 = vld [vmem:[%s11 + $0x328] sm:$0xff]
        %v2386 = vld [vmem:[%s11 + $0x330] sm:$0xff]
        %v2387 = vld [vmem:[%s11 + $0x338] sm:$0xff]
        %v2388 = vld [vmem:[%s11 + $0x340] sm:$0xff]
        %v2389 = vld [vmem:[%s11 + $0x348] sm:$0xff]
        %v2390 = vld [vmem:[%s11 + $0x350] sm:$0xff]
        %v2391 = vld [vmem:[%s11 + $0x358] sm:$0xff]
        %v2392 = vld [vmem:[%s11 + $0x360] sm:$0xff]
        %v2393 = vld [vmem:[%s11 + $0x368] sm:$0xff]
        %v2394 = vld [vmem:[%s11 + $0x370] sm:$0xff]
        %v2395 = vld [vmem:[%s11 + $0x378] sm:$0xff]
        %v2396 = vld [vmem:[%s11 + $0x380] sm:$0xff]
        %v2397 = vld [vmem:[%s11 + $0x388] sm:$0xff]
        %v2398 = vld [vmem:[%s11 + $0x390] sm:$0xff]
        %v2399 = vld [vmem:[%s11 + $0x398] sm:$0xff]
        %v2400 = vld [vmem:[%s11 + $0x3a0] sm:$0xff]
        %v2401 = vld [vmem:[%s11 + $0x3a8] sm:$0xff]
        %v2402 = vld [vmem:[%s11 + $0x3b0] sm:$0xff]
        %v2403 = vld [vmem:[%s11 + $0x3b8] sm:$0xff]
        %v2404 = vld [vmem:[%s11 + $0x3c0] sm:$0xff]
        %v2405 = vld [vmem:[%s11 + $0x3c8] sm:$0xff]
        %v2406 = vld [vmem:[%s11 + $0x3d0] sm:$0xff]
        %v2407 = vld [vmem:[%s11 + $0x3d8] sm:$0xff]
        %v2408 = vld [vmem:[%s11 + $0x3e0] sm:$0xff]
        %v2409 = vld [vmem:[%s11 + $0x3e8] sm:$0xff]
        %v2410 = vld [vmem:[%s11 + $0x3f0] sm:$0xff]
        %v2411 = vld [vmem:[%s11 + $0x3f8] sm:$0xff]
        %v2412 = vld [vmem:[%s11 + $0x400] sm:$0xff]
        %v2413 = vld [vmem:[%s11 + $0x408] sm:$0xff]
        %v2414 = vld [vmem:[%s11 + $0x410] sm:$0xff]
        %v2415 = vld [vmem:[%s11 + $0x418] sm:$0xff]
        %v2416 = vld [vmem:[%s11 + $0x420] sm:$0xff]
        %v2417 = vld [vmem:[%s11 + $0x428] sm:$0xff]
        %v2418 = vld [vmem:[%s11 + $0x430] sm:$0xff]
        %v2419 = vld [vmem:[%s11 + $0x438] sm:$0xff]
        %v2420 = vld [vmem:[%s11 + $0x440] sm:$0xff]
        %v2421 = vld [vmem:[%s11 + $0x448] sm:$0xff]
        %v2422 = vld [vmem:[%s11 + $0x450] sm:$0xff]
        %v2423 = vld [vmem:[%s11 + $0x458] sm:$0xff]
        %v2424 = vld [vmem:[%s11 + $0x460] sm:$0xff]
        %v2425 = vld [vmem:[%s11 + $0x468] sm:$0xff]
        %v2426 = vld [vmem:[%s11 + $0x470] sm:$0xff]
        %v2427 = vld [vmem:[%s11 + $0x478] sm:$0xff]
        %v2428 = vld [vmem:[%s11 + $0x480] sm:$0xff]
        %v2429 = vld [vmem:[%s11 + $0x488] sm:$0xff]
        %v2430 = vld [vmem:[%s11 + $0x490] sm:$0xff]
        %v2431 = vld [vmem:[%s11 + $0x498] sm:$0xff]
        %v2432 = vld [vmem:[%s11 + $0x4a0] sm:$0xff]
        %v2433 = vld [vmem:[%s11 + $0x4a8] sm:$0xff]
        %v2434 = vld [vmem:[%s11 + $0x4b0] sm:$0xff]
        %v2435 = vld [vmem:[%s11 + $0x4b8] sm:$0xff]
        %v2436 = vld [vmem:[%s11 + $0x4c0] sm:$0xff]
        %v2437 = vld [vmem:[%s11 + $0x4c8] sm:$0xff]
        %v2438 = vld [vmem:[%s11 + $0x4d0] sm:$0xff]
        %v2439 = vld [vmem:[%s11 + $0x4d8] sm:$0xff]
        %v2440 = vld [vmem:[%s11 + $0x4e0] sm:$0xff]
        %v2441 = vld [vmem:[%s11 + $0x4e8] sm:$0xff]
        %v2442 = vld [vmem:[%s11 + $0x4f0] sm:$0xff]
        %v2443 = vld [vmem:[%s11 + $0x4f8] sm:$0xff]
        %v2444 = vld [vmem:[%s11 + $0x500] sm:$0xff]
        %v2445 = vld [vmem:[%s11 + $0x508] sm:$0xff]
        %v2446 = vld [vmem:[%s11 + $0x510] sm:$0xff]
        %v2447 = vld [vmem:[%s11 + $0x518] sm:$0xff]
        %v2448 = vld [vmem:[%s11 + $0x520] sm:$0xff]
        %v2449 = vld [vmem:[%s11 + $0x528] sm:$0xff]
        %v2450 = vld [vmem:[%s11 + $0x530] sm:$0xff]
        %v2451 = vld [vmem:[%s11 + $0x538] sm:$0xff]
        %v2452 = vld [vmem:[%s11 + $0x540] sm:$0xff]
        %v2453 = vld [vmem:[%s11 + $0x548] sm:$0xff]
        %v2454 = vld [vmem:[%s11 + $0x550] sm:$0xff]
        %v2455 = vld [vmem:[%s11 + $0x558] sm:$0xff]
        %v2456 = vld [vmem:[%s11 + $0x560] sm:$0xff]
        %v2457 = vld [vmem:[%s11 + $0x568] sm:$0xff]
        %v2458 = vld [vmem:[%s11 + $0x570] sm:$0xff]
        %v2459 = vld [vmem:[%s11 + $0x578] sm:$0xff]
        %v2460 = vld [vmem:[%s11 + $0x580] sm:$0xff]
        %v2461 = vld [vmem:[%s11 + $0x588] sm:$0xff]
        %v2462 = vld [vmem:[%s11 + $0x590] sm:$0xff]
        %v2463 = vld [vmem:[%s11 + $0x598] sm:$0xff]
        %v2464 = vld [vmem:[%s11 + $0x5a0] sm:$0xff]
        %v2465 = vld [vmem:[%s11 + $0x5a8] sm:$0xff]
        %v2466 = vld [vmem:[%s11 + $0x5b0] sm:$0xff]
        %v2467 = vld [vmem:[%s11 + $0x5b8] sm:$0xff]
        %v2468 = vld [vmem:[%s11 + $0x5c0] sm:$0xff]
        %v2469 = vld [vmem:[%s11 + $0x5c8] sm:$0xff]
        %v2470 = vld [vmem:[%s11 + $0x5d0] sm:$0xff]
        %v2471 = vld [vmem:[%s11 + $0x5d8] sm:$0xff]
        %v2472 = vld [vmem:[%s11 + $0x5e0] sm:$0xff]
        %v2473 = vld [vmem:[%s11 + $0x5e8] sm:$0xff]
        %v2474 = vld [vmem:[%s11 + $0x5f0] sm:$0xff]
        %v2475 = vld [vmem:[%s11 + $0x5f8] sm:$0xff]
        %v2476 = vld [vmem:[%s11 + $0x600] sm:$0xff]
        %v2477 = vld [vmem:[%s11 + $0x608] sm:$0xff]
        %v2478 = vld [vmem:[%s11 + $0x610] sm:$0xff]
        %v2479 = vld [vmem:[%s11 + $0x618] sm:$0xff]
        %v2480 = vld [vmem:[%s11 + $0x620] sm:$0xff]
        %v2481 = vld [vmem:[%s11 + $0x628] sm:$0xff]
        %v2482 = vld [vmem:[%s11 + $0x630] sm:$0xff]
        %v2483 = vld [vmem:[%s11 + $0x638] sm:$0xff]
        %v2484 = vld [vmem:[%s11 + $0x640] sm:$0xff]
        %v2485 = vld [vmem:[%s11 + $0x648] sm:$0xff]
        %v2486 = vld [vmem:[%s11 + $0x650] sm:$0xff]
        %v2487 = vld [vmem:[%s11 + $0x658] sm:$0xff]
        %v2488 = vld [vmem:[%s11 + $0x660] sm:$0xff]
        %v2489 = vld [vmem:[%s11 + $0x668] sm:$0xff]
        %v2490 = vld [vmem:[%s11 + $0x670] sm:$0xff]
        %v2491 = vld [vmem:[%s11 + $0x678] sm:$0xff]
        %v2492 = vld [vmem:[%s11 + $0x680] sm:$0xff]
        %v2493 = vld [vmem:[%s11 + $0x688] sm:$0xff]
        %v2494 = vld [vmem:[%s11 + $0x690] sm:$0xff]
        %v2495 = vld [vmem:[%s11 + $0x698] sm:$0xff]
        %v2496 = vld [vmem:[%s11 + $0x6a0] sm:$0xff]
        %v2497 = vld [vmem:[%s11 + $0x6a8] sm:$0xff]
        %v2498 = vld [vmem:[%s11 + $0x6b0] sm:$0xff]
        %v2499 = vld [vmem:[%s11 + $0x6b8] sm:$0xff]
        %v2500 = vld [vmem:[%s11 + $0x6c0] sm:$0xff]
        %v2501 = vld [vmem:[%s11 + $0x6c8] sm:$0xff]
        %v2502 = vld [vmem:[%s11 + $0x6d0] sm:$0xff]
        %v2503 = vld [vmem:[%s11 + $0x6d8] sm:$0xff]
        %v2504 = vld [vmem:[%s11 + $0x6e0] sm:$0xff]
        %v2505 = vld [vmem:[%s11 + $0x6e8] sm:$0xff]
        %v2506 = vld [vmem:[%s11 + $0x6f0] sm:$0xff]
        %v2507 = vld [vmem:[%s11 + $0x6f8] sm:$0xff]
        %v2508 = vld [vmem:[%s11 + $0x700] sm:$0xff]
        %v2509 = vld [vmem:[%s11 + $0x708] sm:$0xff]
        %v2510 = vld [vmem:[%s11 + $0x710] sm:$0xff]
        %v2511 = vld [vmem:[%s11 + $0x718] sm:$0xff]
        %v2512 = vld [vmem:[%s11 + $0x720] sm:$0xff]
        %v2513 = vld [vmem:[%s11 + $0x728] sm:$0xff]
        %v2514 = vld [vmem:[%s11 + $0x730] sm:$0xff]
        %v2515 = vld [vmem:[%s11 + $0x738] sm:$0xff]
        %v2516 = vld [vmem:[%s11 + $0x740] sm:$0xff]
        %v2517 = vld [vmem:[%s11 + $0x748] sm:$0xff]
        %v2518 = vld [vmem:[%s11 + $0x750] sm:$0xff]
        %v2519 = vld [vmem:[%s11 + $0x758] sm:$0xff]
        %v2520 = vld [vmem:[%s11 + $0x760] sm:$0xff]
        %v2521 = vld [vmem:[%s11 + $0x768] sm:$0xff]
        %v2522 = vld [vmem:[%s11 + $0x770] sm:$0xff]
        %v2523 = vld [vmem:[%s11 + $0x778] sm:$0xff]
        %v2524 = vld [vmem:[%s11 + $0x780] sm:$0xff]
        %v2525 = vld [vmem:[%s11 + $0x788] sm:$0xff]
        %v2526 = vld [vmem:[%s11 + $0x790] sm:$0xff]
        %v2527 = vld [vmem:[%s11 + $0x798] sm:$0xff]
        %v2528 = vld [vmem:[%s11 + $0x7a0] sm:$0xff]
        %v2529 = vld [vmem:[%s11 + $0x7a8] sm:$0xff]
        %v2530 = vld [vmem:[%s11 + $0x7b0] sm:$0xff]
        %v2531 = vld [vmem:[%s11 + $0x7b8] sm:$0xff]
        %v2532 = vld [vmem:[%s11 + $0x7c0] sm:$0xff]
        %v2533 = vld [vmem:[%s11 + $0x7c8] sm:$0xff]
        %v2534 = vld [vmem:[%s11 + $0x7d0] sm:$0xff]
        %v2535 = vld [vmem:[%s11 + $0x7d8] sm:$0xff]
        %v2536 = vld [vmem:[%s11 + $0x7e0] sm:$0xff]
        %v2537 = vld [vmem:[%s11 + $0x7e8] sm:$0xff]
        %v2538 = vld [vmem:[%s11 + $0x7f0] sm:$0xff]
        %v2539 = vld [vmem:[%s11 + $0x7f8] sm:$0xff]
        %v2540 = vld [vmem:[%s12] sm:$0xf]
        %v2542 = vlaneseq
        %v2543 = vshrl.u32 %v2542, 7
        %v2544 = vsub.s32 0, %v2543
        %v2545 = vrot.slane %v2540, %v2544
        %v2546 = vlaneseq
        %v2547 = vshrl.u32 %v2546, 7
        %v2548 = vsub.s32 1, %v2547
        %v2549 = vrot.slane %v2540, %v2548
        %v2550 = vlaneseq
        %v2551 = vshrl.u32 %v2550, 7
        %v2552 = vsub.s32 2, %v2551
        %v2553 = vrot.slane %v2540, %v2552
        %v2554 = vlaneseq
        %v2555 = vshrl.u32 %v2554, 7
        %v2556 = vsub.s32 3, %v2555
        %v2557 = vrot.slane %v2540, %v2556
        %v2818 = vunpack.c.l.b16 %v2284
        %v2819 = vunpack.c.h.b16 %v2284
        %v2820 = vunpack.c.l.b16 %v2285
        %v2821 = vunpack.c.h.b16 %v2285
        %v2822 = vunpack.c.l.b16 %v2286
        %v2823 = vunpack.c.h.b16 %v2286
        %v2824 = vunpack.c.l.b16 %v2287
        %v2825 = vunpack.c.h.b16 %v2287
        %v2826 = vunpack.c.l.b16 %v2288
        %v2827 = vunpack.c.h.b16 %v2288
        %v2828 = vunpack.c.l.b16 %v2289
        %v2829 = vunpack.c.h.b16 %v2289
        %v2830 = vunpack.c.l.b16 %v2290
        %v2831 = vunpack.c.h.b16 %v2290
        %v2832 = vunpack.c.l.b16 %v2291
        %v2833 = vunpack.c.h.b16 %v2291
        %v2834 = vunpack.c.l.b16 %v2292
        %v2835 = vunpack.c.h.b16 %v2292
        %v2836 = vunpack.c.l.b16 %v2293
        %v2837 = vunpack.c.h.b16 %v2293
        %v2838 = vunpack.c.l.b16 %v2294
        %v2839 = vunpack.c.h.b16 %v2294
        %v2840 = vunpack.c.l.b16 %v2295
        %v2841 = vunpack.c.h.b16 %v2295
        %v2842 = vunpack.c.l.b16 %v2296
        %v2843 = vunpack.c.h.b16 %v2296
        %v2844 = vunpack.c.l.b16 %v2297
        %v2845 = vunpack.c.h.b16 %v2297
        %v2846 = vunpack.c.l.b16 %v2298
        %v2847 = vunpack.c.h.b16 %v2298
        %v2848 = vunpack.c.l.b16 %v2299
        %v2849 = vunpack.c.h.b16 %v2299
        %v2850 = vunpack.c.l.b16 %v2300
        %v2851 = vunpack.c.h.b16 %v2300
        %v2852 = vunpack.c.l.b16 %v2301
        %v2853 = vunpack.c.h.b16 %v2301
        %v2854 = vunpack.c.l.b16 %v2302
        %v2855 = vunpack.c.h.b16 %v2302
        %v2856 = vunpack.c.l.b16 %v2303
        %v2857 = vunpack.c.h.b16 %v2303
        %v2858 = vunpack.c.l.b16 %v2304
        %v2859 = vunpack.c.h.b16 %v2304
        %v2860 = vunpack.c.l.b16 %v2305
        %v2861 = vunpack.c.h.b16 %v2305
        %v2862 = vunpack.c.l.b16 %v2306
        %v2863 = vunpack.c.h.b16 %v2306
        %v2864 = vunpack.c.l.b16 %v2307
        %v2865 = vunpack.c.h.b16 %v2307
        %v2866 = vunpack.c.l.b16 %v2308
        %v2867 = vunpack.c.h.b16 %v2308
        %v2868 = vunpack.c.l.b16 %v2309
        %v2869 = vunpack.c.h.b16 %v2309
        %v2870 = vunpack.c.l.b16 %v2310
        %v2871 = vunpack.c.h.b16 %v2310
        %v2872 = vunpack.c.l.b16 %v2311
        %v2873 = vunpack.c.h.b16 %v2311
        %v2874 = vunpack.c.l.b16 %v2312
        %v2875 = vunpack.c.h.b16 %v2312
        %v2876 = vunpack.c.l.b16 %v2313
        %v2877 = vunpack.c.h.b16 %v2313
        %v2878 = vunpack.c.l.b16 %v2314
        %v2879 = vunpack.c.h.b16 %v2314
        %v2880 = vunpack.c.l.b16 %v2315
        %v2881 = vunpack.c.h.b16 %v2315
        %v2882 = vunpack.c.l.b16 %v2316
        %v2883 = vunpack.c.h.b16 %v2316
        %v2884 = vunpack.c.l.b16 %v2317
        %v2885 = vunpack.c.h.b16 %v2317
        %v2886 = vunpack.c.l.b16 %v2318
        %v2887 = vunpack.c.h.b16 %v2318
        %v2888 = vunpack.c.l.b16 %v2319
        %v2889 = vunpack.c.h.b16 %v2319
        %v2890 = vunpack.c.l.b16 %v2320
        %v2891 = vunpack.c.h.b16 %v2320
        %v2892 = vunpack.c.l.b16 %v2321
        %v2893 = vunpack.c.h.b16 %v2321
        %v2894 = vunpack.c.l.b16 %v2322
        %v2895 = vunpack.c.h.b16 %v2322
        %v2896 = vunpack.c.l.b16 %v2323
        %v2897 = vunpack.c.h.b16 %v2323
        %v2898 = vunpack.c.l.b16 %v2324
        %v2899 = vunpack.c.h.b16 %v2324
        %v2900 = vunpack.c.l.b16 %v2325
        %v2901 = vunpack.c.h.b16 %v2325
        %v2902 = vunpack.c.l.b16 %v2326
        %v2903 = vunpack.c.h.b16 %v2326
        %v2904 = vunpack.c.l.b16 %v2327
        %v2905 = vunpack.c.h.b16 %v2327
        %v2906 = vunpack.c.l.b16 %v2328
        %v2907 = vunpack.c.h.b16 %v2328
        %v2908 = vunpack.c.l.b16 %v2329
        %v2909 = vunpack.c.h.b16 %v2329
        %v2910 = vunpack.c.l.b16 %v2330
        %v2911 = vunpack.c.h.b16 %v2330
        %v2912 = vunpack.c.l.b16 %v2331
        %v2913 = vunpack.c.h.b16 %v2331
        %v2914 = vunpack.c.l.b16 %v2332
        %v2915 = vunpack.c.h.b16 %v2332
        %v2916 = vunpack.c.l.b16 %v2333
        %v2917 = vunpack.c.h.b16 %v2333
        %v2918 = vunpack.c.l.b16 %v2334
        %v2919 = vunpack.c.h.b16 %v2334
        %v2920 = vunpack.c.l.b16 %v2335
        %v2921 = vunpack.c.h.b16 %v2335
        %v2922 = vunpack.c.l.b16 %v2336
        %v2923 = vunpack.c.h.b16 %v2336
        %v2924 = vunpack.c.l.b16 %v2337
        %v2925 = vunpack.c.h.b16 %v2337
        %v2926 = vunpack.c.l.b16 %v2338
        %v2927 = vunpack.c.h.b16 %v2338
        %v2928 = vunpack.c.l.b16 %v2339
        %v2929 = vunpack.c.h.b16 %v2339
        %v2930 = vunpack.c.l.b16 %v2340
        %v2931 = vunpack.c.h.b16 %v2340
        %v2932 = vunpack.c.l.b16 %v2341
        %v2933 = vunpack.c.h.b16 %v2341
        %v2934 = vunpack.c.l.b16 %v2342
        %v2935 = vunpack.c.h.b16 %v2342
        %v2936 = vunpack.c.l.b16 %v2343
        %v2937 = vunpack.c.h.b16 %v2343
        %v2938 = vunpack.c.l.b16 %v2344
        %v2939 = vunpack.c.h.b16 %v2344
        %v2940 = vunpack.c.l.b16 %v2345
        %v2941 = vunpack.c.h.b16 %v2345
        %v2942 = vunpack.c.l.b16 %v2346
        %v2943 = vunpack.c.h.b16 %v2346
        %v2944 = vunpack.c.l.b16 %v2347
        %v2945 = vunpack.c.h.b16 %v2347
        %v2946 = vunpack.c.l.b16 %v2348
        %v2947 = vunpack.c.h.b16 %v2348
        %v2948 = vunpack.c.l.b16 %v2349
        %v2949 = vunpack.c.h.b16 %v2349
        %v2950 = vunpack.c.l.b16 %v2350
        %v2951 = vunpack.c.h.b16 %v2350
        %v2952 = vunpack.c.l.b16 %v2351
        %v2953 = vunpack.c.h.b16 %v2351
        %v2954 = vunpack.c.l.b16 %v2352
        %v2955 = vunpack.c.h.b16 %v2352
        %v2956 = vunpack.c.l.b16 %v2353
        %v2957 = vunpack.c.h.b16 %v2353
        %v2958 = vunpack.c.l.b16 %v2354
        %v2959 = vunpack.c.h.b16 %v2354
        %v2960 = vunpack.c.l.b16 %v2355
        %v2961 = vunpack.c.h.b16 %v2355
        %v2962 = vunpack.c.l.b16 %v2356
        %v2963 = vunpack.c.h.b16 %v2356
        %v2964 = vunpack.c.l.b16 %v2357
        %v2965 = vunpack.c.h.b16 %v2357
        %v2966 = vunpack.c.l.b16 %v2358
        %v2967 = vunpack.c.h.b16 %v2358
        %v2968 = vunpack.c.l.b16 %v2359
        %v2969 = vunpack.c.h.b16 %v2359
        %v2970 = vunpack.c.l.b16 %v2360
        %v2971 = vunpack.c.h.b16 %v2360
        %v2972 = vunpack.c.l.b16 %v2361
        %v2973 = vunpack.c.h.b16 %v2361
        %v2974 = vunpack.c.l.b16 %v2362
        %v2975 = vunpack.c.h.b16 %v2362
        %v2976 = vunpack.c.l.b16 %v2363
        %v2977 = vunpack.c.h.b16 %v2363
        %v2978 = vunpack.c.l.b16 %v2364
        %v2979 = vunpack.c.h.b16 %v2364
        %v2980 = vunpack.c.l.b16 %v2365
        %v2981 = vunpack.c.h.b16 %v2365
        %v2982 = vunpack.c.l.b16 %v2366
        %v2983 = vunpack.c.h.b16 %v2366
        %v2984 = vunpack.c.l.b16 %v2367
        %v2985 = vunpack.c.h.b16 %v2367
        %v2986 = vunpack.c.l.b16 %v2368
        %v2987 = vunpack.c.h.b16 %v2368
        %v2988 = vunpack.c.l.b16 %v2369
        %v2989 = vunpack.c.h.b16 %v2369
        %v2990 = vunpack.c.l.b16 %v2370
        %v2991 = vunpack.c.h.b16 %v2370
        %v2992 = vunpack.c.l.b16 %v2371
        %v2993 = vunpack.c.h.b16 %v2371
        %v2994 = vunpack.c.l.b16 %v2372
        %v2995 = vunpack.c.h.b16 %v2372
        %v2996 = vunpack.c.l.b16 %v2373
        %v2997 = vunpack.c.h.b16 %v2373
        %v2998 = vunpack.c.l.b16 %v2374
        %v2999 = vunpack.c.h.b16 %v2374
        %v3000 = vunpack.c.l.b16 %v2375
        %v3001 = vunpack.c.h.b16 %v2375
        %v3002 = vunpack.c.l.b16 %v2376
        %v3003 = vunpack.c.h.b16 %v2376
        %v3004 = vunpack.c.l.b16 %v2377
        %v3005 = vunpack.c.h.b16 %v2377
        %v3006 = vunpack.c.l.b16 %v2378
        %v3007 = vunpack.c.h.b16 %v2378
        %v3008 = vunpack.c.l.b16 %v2379
        %v3009 = vunpack.c.h.b16 %v2379
        %v3010 = vunpack.c.l.b16 %v2380
        %v3011 = vunpack.c.h.b16 %v2380
        %v3012 = vunpack.c.l.b16 %v2381
        %v3013 = vunpack.c.h.b16 %v2381
        %v3014 = vunpack.c.l.b16 %v2382
        %v3015 = vunpack.c.h.b16 %v2382
        %v3016 = vunpack.c.l.b16 %v2383
        %v3017 = vunpack.c.h.b16 %v2383
        %v3018 = vunpack.c.l.b16 %v2384
        %v3019 = vunpack.c.h.b16 %v2384
        %v3020 = vunpack.c.l.b16 %v2385
        %v3021 = vunpack.c.h.b16 %v2385
        %v3022 = vunpack.c.l.b16 %v2386
        %v3023 = vunpack.c.h.b16 %v2386
        %v3024 = vunpack.c.l.b16 %v2387
        %v3025 = vunpack.c.h.b16 %v2387
        %v3026 = vunpack.c.l.b16 %v2388
        %v3027 = vunpack.c.h.b16 %v2388
        %v3028 = vunpack.c.l.b16 %v2389
        %v3029 = vunpack.c.h.b16 %v2389
        %v3030 = vunpack.c.l.b16 %v2390
        %v3031 = vunpack.c.h.b16 %v2390
        %v3032 = vunpack.c.l.b16 %v2391
        %v3033 = vunpack.c.h.b16 %v2391
        %v3034 = vunpack.c.l.b16 %v2392
        %v3035 = vunpack.c.h.b16 %v2392
        %v3036 = vunpack.c.l.b16 %v2393
        %v3037 = vunpack.c.h.b16 %v2393
        %v3038 = vunpack.c.l.b16 %v2394
        %v3039 = vunpack.c.h.b16 %v2394
        %v3040 = vunpack.c.l.b16 %v2395
        %v3041 = vunpack.c.h.b16 %v2395
        %v3042 = vunpack.c.l.b16 %v2396
        %v3043 = vunpack.c.h.b16 %v2396
        %v3044 = vunpack.c.l.b16 %v2397
        %v3045 = vunpack.c.h.b16 %v2397
        %v3046 = vunpack.c.l.b16 %v2398
        %v3047 = vunpack.c.h.b16 %v2398
        %v3048 = vunpack.c.l.b16 %v2399
        %v3049 = vunpack.c.h.b16 %v2399
        %v3050 = vunpack.c.l.b16 %v2400
        %v3051 = vunpack.c.h.b16 %v2400
        %v3052 = vunpack.c.l.b16 %v2401
        %v3053 = vunpack.c.h.b16 %v2401
        %v3054 = vunpack.c.l.b16 %v2402
        %v3055 = vunpack.c.h.b16 %v2402
        %v3056 = vunpack.c.l.b16 %v2403
        %v3057 = vunpack.c.h.b16 %v2403
        %v3058 = vunpack.c.l.b16 %v2404
        %v3059 = vunpack.c.h.b16 %v2404
        %v3060 = vunpack.c.l.b16 %v2405
        %v3061 = vunpack.c.h.b16 %v2405
        %v3062 = vunpack.c.l.b16 %v2406
        %v3063 = vunpack.c.h.b16 %v2406
        %v3064 = vunpack.c.l.b16 %v2407
        %v3065 = vunpack.c.h.b16 %v2407
        %v3066 = vunpack.c.l.b16 %v2408
        %v3067 = vunpack.c.h.b16 %v2408
        %v3068 = vunpack.c.l.b16 %v2409
        %v3069 = vunpack.c.h.b16 %v2409
        %v3070 = vunpack.c.l.b16 %v2410
        %v3071 = vunpack.c.h.b16 %v2410
        %v3072 = vunpack.c.l.b16 %v2411
        %v3073 = vunpack.c.h.b16 %v2411
        %v3074 = vunpack.c.l.b16 %v2412
        %v3075 = vunpack.c.h.b16 %v2412
        %v3076 = vunpack.c.l.b16 %v2413
        %v3077 = vunpack.c.h.b16 %v2413
        %v3078 = vunpack.c.l.b16 %v2414
        %v3079 = vunpack.c.h.b16 %v2414
        %v3080 = vunpack.c.l.b16 %v2415
        %v3081 = vunpack.c.h.b16 %v2415
        %v3082 = vunpack.c.l.b16 %v2416
        %v3083 = vunpack.c.h.b16 %v2416
        %v3084 = vunpack.c.l.b16 %v2417
        %v3085 = vunpack.c.h.b16 %v2417
        %v3086 = vunpack.c.l.b16 %v2418
        %v3087 = vunpack.c.h.b16 %v2418
        %v3088 = vunpack.c.l.b16 %v2419
        %v3089 = vunpack.c.h.b16 %v2419
        %v3090 = vunpack.c.l.b16 %v2420
        %v3091 = vunpack.c.h.b16 %v2420
        %v3092 = vunpack.c.l.b16 %v2421
        %v3093 = vunpack.c.h.b16 %v2421
        %v3094 = vunpack.c.l.b16 %v2422
        %v3095 = vunpack.c.h.b16 %v2422
        %v3096 = vunpack.c.l.b16 %v2423
        %v3097 = vunpack.c.h.b16 %v2423
        %v3098 = vunpack.c.l.b16 %v2424
        %v3099 = vunpack.c.h.b16 %v2424
        %v3100 = vunpack.c.l.b16 %v2425
        %v3101 = vunpack.c.h.b16 %v2425
        %v3102 = vunpack.c.l.b16 %v2426
        %v3103 = vunpack.c.h.b16 %v2426
        %v3104 = vunpack.c.l.b16 %v2427
        %v3105 = vunpack.c.h.b16 %v2427
        %v3106 = vunpack.c.l.b16 %v2428
        %v3107 = vunpack.c.h.b16 %v2428
        %v3108 = vunpack.c.l.b16 %v2429
        %v3109 = vunpack.c.h.b16 %v2429
        %v3110 = vunpack.c.l.b16 %v2430
        %v3111 = vunpack.c.h.b16 %v2430
        %v3112 = vunpack.c.l.b16 %v2431
        %v3113 = vunpack.c.h.b16 %v2431
        %v3114 = vunpack.c.l.b16 %v2432
        %v3115 = vunpack.c.h.b16 %v2432
        %v3116 = vunpack.c.l.b16 %v2433
        %v3117 = vunpack.c.h.b16 %v2433
        %v3118 = vunpack.c.l.b16 %v2434
        %v3119 = vunpack.c.h.b16 %v2434
        %v3120 = vunpack.c.l.b16 %v2435
        %v3121 = vunpack.c.h.b16 %v2435
        %v3122 = vunpack.c.l.b16 %v2436
        %v3123 = vunpack.c.h.b16 %v2436
        %v3124 = vunpack.c.l.b16 %v2437
        %v3125 = vunpack.c.h.b16 %v2437
        %v3126 = vunpack.c.l.b16 %v2438
        %v3127 = vunpack.c.h.b16 %v2438
        %v3128 = vunpack.c.l.b16 %v2439
        %v3129 = vunpack.c.h.b16 %v2439
        %v3130 = vunpack.c.l.b16 %v2440
        %v3131 = vunpack.c.h.b16 %v2440
        %v3132 = vunpack.c.l.b16 %v2441
        %v3133 = vunpack.c.h.b16 %v2441
        %v3134 = vunpack.c.l.b16 %v2442
        %v3135 = vunpack.c.h.b16 %v2442
        %v3136 = vunpack.c.l.b16 %v2443
        %v3137 = vunpack.c.h.b16 %v2443
        %v3138 = vunpack.c.l.b16 %v2444
        %v3139 = vunpack.c.h.b16 %v2444
        %v3140 = vunpack.c.l.b16 %v2445
        %v3141 = vunpack.c.h.b16 %v2445
        %v3142 = vunpack.c.l.b16 %v2446
        %v3143 = vunpack.c.h.b16 %v2446
        %v3144 = vunpack.c.l.b16 %v2447
        %v3145 = vunpack.c.h.b16 %v2447
        %v3146 = vunpack.c.l.b16 %v2448
        %v3147 = vunpack.c.h.b16 %v2448
        %v3148 = vunpack.c.l.b16 %v2449
        %v3149 = vunpack.c.h.b16 %v2449
        %v3150 = vunpack.c.l.b16 %v2450
        %v3151 = vunpack.c.h.b16 %v2450
        %v3152 = vunpack.c.l.b16 %v2451
        %v3153 = vunpack.c.h.b16 %v2451
        %v3154 = vunpack.c.l.b16 %v2452
        %v3155 = vunpack.c.h.b16 %v2452
        %v3156 = vunpack.c.l.b16 %v2453
        %v3157 = vunpack.c.h.b16 %v2453
        %v3158 = vunpack.c.l.b16 %v2454
        %v3159 = vunpack.c.h.b16 %v2454
        %v3160 = vunpack.c.l.b16 %v2455
        %v3161 = vunpack.c.h.b16 %v2455
        %v3162 = vunpack.c.l.b16 %v2456
        %v3163 = vunpack.c.h.b16 %v2456
        %v3164 = vunpack.c.l.b16 %v2457
        %v3165 = vunpack.c.h.b16 %v2457
        %v3166 = vunpack.c.l.b16 %v2458
        %v3167 = vunpack.c.h.b16 %v2458
        %v3168 = vunpack.c.l.b16 %v2459
        %v3169 = vunpack.c.h.b16 %v2459
        %v3170 = vunpack.c.l.b16 %v2460
        %v3171 = vunpack.c.h.b16 %v2460
        %v3172 = vunpack.c.l.b16 %v2461
        %v3173 = vunpack.c.h.b16 %v2461
        %v3174 = vunpack.c.l.b16 %v2462
        %v3175 = vunpack.c.h.b16 %v2462
        %v3176 = vunpack.c.l.b16 %v2463
        %v3177 = vunpack.c.h.b16 %v2463
        %v3178 = vunpack.c.l.b16 %v2464
        %v3179 = vunpack.c.h.b16 %v2464
        %v3180 = vunpack.c.l.b16 %v2465
        %v3181 = vunpack.c.h.b16 %v2465
        %v3182 = vunpack.c.l.b16 %v2466
        %v3183 = vunpack.c.h.b16 %v2466
        %v3184 = vunpack.c.l.b16 %v2467
        %v3185 = vunpack.c.h.b16 %v2467
        %v3186 = vunpack.c.l.b16 %v2468
        %v3187 = vunpack.c.h.b16 %v2468
        %v3188 = vunpack.c.l.b16 %v2469
        %v3189 = vunpack.c.h.b16 %v2469
        %v3190 = vunpack.c.l.b16 %v2470
        %v3191 = vunpack.c.h.b16 %v2470
        %v3192 = vunpack.c.l.b16 %v2471
        %v3193 = vunpack.c.h.b16 %v2471
        %v3194 = vunpack.c.l.b16 %v2472
        %v3195 = vunpack.c.h.b16 %v2472
        %v3196 = vunpack.c.l.b16 %v2473
        %v3197 = vunpack.c.h.b16 %v2473
        %v3198 = vunpack.c.l.b16 %v2474
        %v3199 = vunpack.c.h.b16 %v2474
        %v3200 = vunpack.c.l.b16 %v2475
        %v3201 = vunpack.c.h.b16 %v2475
        %v3202 = vunpack.c.l.b16 %v2476
        %v3203 = vunpack.c.h.b16 %v2476
        %v3204 = vunpack.c.l.b16 %v2477
        %v3205 = vunpack.c.h.b16 %v2477
        %v3206 = vunpack.c.l.b16 %v2478
        %v3207 = vunpack.c.h.b16 %v2478
        %v3208 = vunpack.c.l.b16 %v2479
        %v3209 = vunpack.c.h.b16 %v2479
        %v3210 = vunpack.c.l.b16 %v2480
        %v3211 = vunpack.c.h.b16 %v2480
        %v3212 = vunpack.c.l.b16 %v2481
        %v3213 = vunpack.c.h.b16 %v2481
        %v3214 = vunpack.c.l.b16 %v2482
        %v3215 = vunpack.c.h.b16 %v2482
        %v3216 = vunpack.c.l.b16 %v2483
        %v3217 = vunpack.c.h.b16 %v2483
        %v3218 = vunpack.c.l.b16 %v2484
        %v3219 = vunpack.c.h.b16 %v2484
        %v3220 = vunpack.c.l.b16 %v2485
        %v3221 = vunpack.c.h.b16 %v2485
        %v3222 = vunpack.c.l.b16 %v2486
        %v3223 = vunpack.c.h.b16 %v2486
        %v3224 = vunpack.c.l.b16 %v2487
        %v3225 = vunpack.c.h.b16 %v2487
        %v3226 = vunpack.c.l.b16 %v2488
        %v3227 = vunpack.c.h.b16 %v2488
        %v3228 = vunpack.c.l.b16 %v2489
        %v3229 = vunpack.c.h.b16 %v2489
        %v3230 = vunpack.c.l.b16 %v2490
        %v3231 = vunpack.c.h.b16 %v2490
        %v3232 = vunpack.c.l.b16 %v2491
        %v3233 = vunpack.c.h.b16 %v2491
        %v3234 = vunpack.c.l.b16 %v2492
        %v3235 = vunpack.c.h.b16 %v2492
        %v3236 = vunpack.c.l.b16 %v2493
        %v3237 = vunpack.c.h.b16 %v2493
        %v3238 = vunpack.c.l.b16 %v2494
        %v3239 = vunpack.c.h.b16 %v2494
        %v3240 = vunpack.c.l.b16 %v2495
        %v3241 = vunpack.c.h.b16 %v2495
        %v3242 = vunpack.c.l.b16 %v2496
        %v3243 = vunpack.c.h.b16 %v2496
        %v3244 = vunpack.c.l.b16 %v2497
        %v3245 = vunpack.c.h.b16 %v2497
        %v3246 = vunpack.c.l.b16 %v2498
        %v3247 = vunpack.c.h.b16 %v2498
        %v3248 = vunpack.c.l.b16 %v2499
        %v3249 = vunpack.c.h.b16 %v2499
        %v3250 = vunpack.c.l.b16 %v2500
        %v3251 = vunpack.c.h.b16 %v2500
        %v3252 = vunpack.c.l.b16 %v2501
        %v3253 = vunpack.c.h.b16 %v2501
        %v3254 = vunpack.c.l.b16 %v2502
        %v3255 = vunpack.c.h.b16 %v2502
        %v3256 = vunpack.c.l.b16 %v2503
        %v3257 = vunpack.c.h.b16 %v2503
        %v3258 = vunpack.c.l.b16 %v2504
        %v3259 = vunpack.c.h.b16 %v2504
        %v3260 = vunpack.c.l.b16 %v2505
        %v3261 = vunpack.c.h.b16 %v2505
        %v3262 = vunpack.c.l.b16 %v2506
        %v3263 = vunpack.c.h.b16 %v2506
        %v3264 = vunpack.c.l.b16 %v2507
        %v3265 = vunpack.c.h.b16 %v2507
        %v3266 = vunpack.c.l.b16 %v2508
        %v3267 = vunpack.c.h.b16 %v2508
        %v3268 = vunpack.c.l.b16 %v2509
        %v3269 = vunpack.c.h.b16 %v2509
        %v3270 = vunpack.c.l.b16 %v2510
        %v3271 = vunpack.c.h.b16 %v2510
        %v3272 = vunpack.c.l.b16 %v2511
        %v3273 = vunpack.c.h.b16 %v2511
        %v3274 = vunpack.c.l.b16 %v2512
        %v3275 = vunpack.c.h.b16 %v2512
        %v3276 = vunpack.c.l.b16 %v2513
        %v3277 = vunpack.c.h.b16 %v2513
        %v3278 = vunpack.c.l.b16 %v2514
        %v3279 = vunpack.c.h.b16 %v2514
        %v3280 = vunpack.c.l.b16 %v2515
        %v3281 = vunpack.c.h.b16 %v2515
        %v3282 = vunpack.c.l.b16 %v2516
        %v3283 = vunpack.c.h.b16 %v2516
        %v3284 = vunpack.c.l.b16 %v2517
        %v3285 = vunpack.c.h.b16 %v2517
        %v3286 = vunpack.c.l.b16 %v2518
        %v3287 = vunpack.c.h.b16 %v2518
        %v3288 = vunpack.c.l.b16 %v2519
        %v3289 = vunpack.c.h.b16 %v2519
        %v3290 = vunpack.c.l.b16 %v2520
        %v3291 = vunpack.c.h.b16 %v2520
        %v3292 = vunpack.c.l.b16 %v2521
        %v3293 = vunpack.c.h.b16 %v2521
        %v3294 = vunpack.c.l.b16 %v2522
        %v3295 = vunpack.c.h.b16 %v2522
        %v3296 = vunpack.c.l.b16 %v2523
        %v3297 = vunpack.c.h.b16 %v2523
        %v3298 = vunpack.c.l.b16 %v2524
        %v3299 = vunpack.c.h.b16 %v2524
        %v3300 = vunpack.c.l.b16 %v2525
        %v3301 = vunpack.c.h.b16 %v2525
        %v3302 = vunpack.c.l.b16 %v2526
        %v3303 = vunpack.c.h.b16 %v2526
        %v3304 = vunpack.c.l.b16 %v2527
        %v3305 = vunpack.c.h.b16 %v2527
        %v3306 = vunpack.c.l.b16 %v2528
        %v3307 = vunpack.c.h.b16 %v2528
        %v3308 = vunpack.c.l.b16 %v2529
        %v3309 = vunpack.c.h.b16 %v2529
        %v3310 = vunpack.c.l.b16 %v2530
        %v3311 = vunpack.c.h.b16 %v2530
        %v3312 = vunpack.c.l.b16 %v2531
        %v3313 = vunpack.c.h.b16 %v2531
        %v3314 = vunpack.c.l.b16 %v2532
        %v3315 = vunpack.c.h.b16 %v2532
        %v3316 = vunpack.c.l.b16 %v2533
        %v3317 = vunpack.c.h.b16 %v2533
        %v3318 = vunpack.c.l.b16 %v2534
        %v3319 = vunpack.c.h.b16 %v2534
        %v3320 = vunpack.c.l.b16 %v2535
        %v3321 = vunpack.c.h.b16 %v2535
        %v3322 = vunpack.c.l.b16 %v2536
        %v3323 = vunpack.c.h.b16 %v2536
        %v3324 = vunpack.c.l.b16 %v2537
        %v3325 = vunpack.c.h.b16 %v2537
        %v3326 = vunpack.c.l.b16 %v2538
        %v3327 = vunpack.c.h.b16 %v2538
        %v3328 = vunpack.c.l.b16 %v2539
        %v3329 = vunpack.c.h.b16 %v2539
        %v3330 = vpack.c.b16 %v2822, %v2818
        %v3331 = vpack.c.b16 %v2823, %v2819
        %v3332 = vpack.c.b16 %v2824, %v2820
        %v3333 = vpack.c.b16 %v2825, %v2821
        %v3334 = vpack.c.b16 %v2830, %v2826
        %v3335 = vpack.c.b16 %v2831, %v2827
        %v3336 = vpack.c.b16 %v2832, %v2828
        %v3337 = vpack.c.b16 %v2833, %v2829
        %v3338 = vpack.c.b16 %v2838, %v2834
        %v3339 = vpack.c.b16 %v2839, %v2835
        %v3340 = vpack.c.b16 %v2840, %v2836
        %v3341 = vpack.c.b16 %v2841, %v2837
        %v3342 = vpack.c.b16 %v2846, %v2842
        %v3343 = vpack.c.b16 %v2847, %v2843
        %v3344 = vpack.c.b16 %v2848, %v2844
        %v3345 = vpack.c.b16 %v2849, %v2845
        %v3346 = vpack.c.b16 %v2854, %v2850
        %v3347 = vpack.c.b16 %v2855, %v2851
        %v3348 = vpack.c.b16 %v2856, %v2852
        %v3349 = vpack.c.b16 %v2857, %v2853
        %v3350 = vpack.c.b16 %v2862, %v2858
        %v3351 = vpack.c.b16 %v2863, %v2859
        %v3352 = vpack.c.b16 %v2864, %v2860
        %v3353 = vpack.c.b16 %v2865, %v2861
        %v3354 = vpack.c.b16 %v2870, %v2866
        %v3355 = vpack.c.b16 %v2871, %v2867
        %v3356 = vpack.c.b16 %v2872, %v2868
        %v3357 = vpack.c.b16 %v2873, %v2869
        %v3358 = vpack.c.b16 %v2878, %v2874
        %v3359 = vpack.c.b16 %v2879, %v2875
        %v3360 = vpack.c.b16 %v2880, %v2876
        %v3361 = vpack.c.b16 %v2881, %v2877
        %v3362 = vpack.c.b16 %v2886, %v2882
        %v3363 = vpack.c.b16 %v2887, %v2883
        %v3364 = vpack.c.b16 %v2888, %v2884
        %v3365 = vpack.c.b16 %v2889, %v2885
        %v3366 = vpack.c.b16 %v2894, %v2890
        %v3367 = vpack.c.b16 %v2895, %v2891
        %v3368 = vpack.c.b16 %v2896, %v2892
        %v3369 = vpack.c.b16 %v2897, %v2893
        %v3370 = vpack.c.b16 %v2902, %v2898
        %v3371 = vpack.c.b16 %v2903, %v2899
        %v3372 = vpack.c.b16 %v2904, %v2900
        %v3373 = vpack.c.b16 %v2905, %v2901
        %v3374 = vpack.c.b16 %v2910, %v2906
        %v3375 = vpack.c.b16 %v2911, %v2907
        %v3376 = vpack.c.b16 %v2912, %v2908
        %v3377 = vpack.c.b16 %v2913, %v2909
        %v3378 = vpack.c.b16 %v2918, %v2914
        %v3379 = vpack.c.b16 %v2919, %v2915
        %v3380 = vpack.c.b16 %v2920, %v2916
        %v3381 = vpack.c.b16 %v2921, %v2917
        %v3382 = vpack.c.b16 %v2926, %v2922
        %v3383 = vpack.c.b16 %v2927, %v2923
        %v3384 = vpack.c.b16 %v2928, %v2924
        %v3385 = vpack.c.b16 %v2929, %v2925
        %v3386 = vpack.c.b16 %v2934, %v2930
        %v3387 = vpack.c.b16 %v2935, %v2931
        %v3388 = vpack.c.b16 %v2936, %v2932
        %v3389 = vpack.c.b16 %v2937, %v2933
        %v3390 = vpack.c.b16 %v2942, %v2938
        %v3391 = vpack.c.b16 %v2943, %v2939
        %v3392 = vpack.c.b16 %v2944, %v2940
        %v3393 = vpack.c.b16 %v2945, %v2941
        %v3394 = vpack.c.b16 %v2950, %v2946
        %v3395 = vpack.c.b16 %v2951, %v2947
        %v3396 = vpack.c.b16 %v2952, %v2948
        %v3397 = vpack.c.b16 %v2953, %v2949
        %v3398 = vpack.c.b16 %v2958, %v2954
        %v3399 = vpack.c.b16 %v2959, %v2955
        %v3400 = vpack.c.b16 %v2960, %v2956
        %v3401 = vpack.c.b16 %v2961, %v2957
        %v3402 = vpack.c.b16 %v2966, %v2962
        %v3403 = vpack.c.b16 %v2967, %v2963
        %v3404 = vpack.c.b16 %v2968, %v2964
        %v3405 = vpack.c.b16 %v2969, %v2965
        %v3406 = vpack.c.b16 %v2974, %v2970
        %v3407 = vpack.c.b16 %v2975, %v2971
        %v3408 = vpack.c.b16 %v2976, %v2972
        %v3409 = vpack.c.b16 %v2977, %v2973
        %v3410 = vpack.c.b16 %v2982, %v2978
        %v3411 = vpack.c.b16 %v2983, %v2979
        %v3412 = vpack.c.b16 %v2984, %v2980
        %v3413 = vpack.c.b16 %v2985, %v2981
        %v3414 = vpack.c.b16 %v2990, %v2986
        %v3415 = vpack.c.b16 %v2991, %v2987
        %v3416 = vpack.c.b16 %v2992, %v2988
        %v3417 = vpack.c.b16 %v2993, %v2989
        %v3418 = vpack.c.b16 %v2998, %v2994
        %v3419 = vpack.c.b16 %v2999, %v2995
        %v3420 = vpack.c.b16 %v3000, %v2996
        %v3421 = vpack.c.b16 %v3001, %v2997
        %v3422 = vpack.c.b16 %v3006, %v3002
        %v3423 = vpack.c.b16 %v3007, %v3003
        %v3424 = vpack.c.b16 %v3008, %v3004
        %v3425 = vpack.c.b16 %v3009, %v3005
        %v3426 = vpack.c.b16 %v3014, %v3010
        %v3427 = vpack.c.b16 %v3015, %v3011
        %v3428 = vpack.c.b16 %v3016, %v3012
        %v3429 = vpack.c.b16 %v3017, %v3013
        %v3430 = vpack.c.b16 %v3022, %v3018
        %v3431 = vpack.c.b16 %v3023, %v3019
        %v3432 = vpack.c.b16 %v3024, %v3020
        %v3433 = vpack.c.b16 %v3025, %v3021
        %v3434 = vpack.c.b16 %v3030, %v3026
        %v3435 = vpack.c.b16 %v3031, %v3027
        %v3436 = vpack.c.b16 %v3032, %v3028
        %v3437 = vpack.c.b16 %v3033, %v3029
        %v3438 = vpack.c.b16 %v3038, %v3034
        %v3439 = vpack.c.b16 %v3039, %v3035
        %v3440 = vpack.c.b16 %v3040, %v3036
        %v3441 = vpack.c.b16 %v3041, %v3037
        %v3442 = vpack.c.b16 %v3046, %v3042
        %v3443 = vpack.c.b16 %v3047, %v3043
        %v3444 = vpack.c.b16 %v3048, %v3044
        %v3445 = vpack.c.b16 %v3049, %v3045
        %v3446 = vpack.c.b16 %v3054, %v3050
        %v3447 = vpack.c.b16 %v3055, %v3051
        %v3448 = vpack.c.b16 %v3056, %v3052
        %v3449 = vpack.c.b16 %v3057, %v3053
        %v3450 = vpack.c.b16 %v3062, %v3058
        %v3451 = vpack.c.b16 %v3063, %v3059
        %v3452 = vpack.c.b16 %v3064, %v3060
        %v3453 = vpack.c.b16 %v3065, %v3061
        %v3454 = vpack.c.b16 %v3070, %v3066
        %v3455 = vpack.c.b16 %v3071, %v3067
        %v3456 = vpack.c.b16 %v3072, %v3068
        %v3457 = vpack.c.b16 %v3073, %v3069
        %v3458 = vpack.c.b16 %v3078, %v3074
        %v3459 = vpack.c.b16 %v3079, %v3075
        %v3460 = vpack.c.b16 %v3080, %v3076
        %v3461 = vpack.c.b16 %v3081, %v3077
        %v3462 = vpack.c.b16 %v3086, %v3082
        %v3463 = vpack.c.b16 %v3087, %v3083
        %v3464 = vpack.c.b16 %v3088, %v3084
        %v3465 = vpack.c.b16 %v3089, %v3085
        %v3466 = vpack.c.b16 %v3094, %v3090
        %v3467 = vpack.c.b16 %v3095, %v3091
        %v3468 = vpack.c.b16 %v3096, %v3092
        %v3469 = vpack.c.b16 %v3097, %v3093
        %v3470 = vpack.c.b16 %v3102, %v3098
        %v3471 = vpack.c.b16 %v3103, %v3099
        %v3472 = vpack.c.b16 %v3104, %v3100
        %v3473 = vpack.c.b16 %v3105, %v3101
        %v3474 = vpack.c.b16 %v3110, %v3106
        %v3475 = vpack.c.b16 %v3111, %v3107
        %v3476 = vpack.c.b16 %v3112, %v3108
        %v3477 = vpack.c.b16 %v3113, %v3109
        %v3478 = vpack.c.b16 %v3118, %v3114
        %v3479 = vpack.c.b16 %v3119, %v3115
        %v3480 = vpack.c.b16 %v3120, %v3116
        %v3481 = vpack.c.b16 %v3121, %v3117
        %v3482 = vpack.c.b16 %v3126, %v3122
        %v3483 = vpack.c.b16 %v3127, %v3123
        %v3484 = vpack.c.b16 %v3128, %v3124
        %v3485 = vpack.c.b16 %v3129, %v3125
        %v3486 = vpack.c.b16 %v3134, %v3130
        %v3487 = vpack.c.b16 %v3135, %v3131
        %v3488 = vpack.c.b16 %v3136, %v3132
        %v3489 = vpack.c.b16 %v3137, %v3133
        %v3490 = vpack.c.b16 %v3142, %v3138
        %v3491 = vpack.c.b16 %v3143, %v3139
        %v3492 = vpack.c.b16 %v3144, %v3140
        %v3493 = vpack.c.b16 %v3145, %v3141
        %v3494 = vpack.c.b16 %v3150, %v3146
        %v3495 = vpack.c.b16 %v3151, %v3147
        %v3496 = vpack.c.b16 %v3152, %v3148
        %v3497 = vpack.c.b16 %v3153, %v3149
        %v3498 = vpack.c.b16 %v3158, %v3154
        %v3499 = vpack.c.b16 %v3159, %v3155
        %v3500 = vpack.c.b16 %v3160, %v3156
        %v3501 = vpack.c.b16 %v3161, %v3157
        %v3502 = vpack.c.b16 %v3166, %v3162
        %v3503 = vpack.c.b16 %v3167, %v3163
        %v3504 = vpack.c.b16 %v3168, %v3164
        %v3505 = vpack.c.b16 %v3169, %v3165
        %v3506 = vpack.c.b16 %v3174, %v3170
        %v3507 = vpack.c.b16 %v3175, %v3171
        %v3508 = vpack.c.b16 %v3176, %v3172
        %v3509 = vpack.c.b16 %v3177, %v3173
        %v3510 = vpack.c.b16 %v3182, %v3178
        %v3511 = vpack.c.b16 %v3183, %v3179
        %v3512 = vpack.c.b16 %v3184, %v3180
        %v3513 = vpack.c.b16 %v3185, %v3181
        %v3514 = vpack.c.b16 %v3190, %v3186
        %v3515 = vpack.c.b16 %v3191, %v3187
        %v3516 = vpack.c.b16 %v3192, %v3188
        %v3517 = vpack.c.b16 %v3193, %v3189
        %v3518 = vpack.c.b16 %v3198, %v3194
        %v3519 = vpack.c.b16 %v3199, %v3195
        %v3520 = vpack.c.b16 %v3200, %v3196
        %v3521 = vpack.c.b16 %v3201, %v3197
        %v3522 = vpack.c.b16 %v3206, %v3202
        %v3523 = vpack.c.b16 %v3207, %v3203
        %v3524 = vpack.c.b16 %v3208, %v3204
        %v3525 = vpack.c.b16 %v3209, %v3205
        %v3526 = vpack.c.b16 %v3214, %v3210
        %v3527 = vpack.c.b16 %v3215, %v3211
        %v3528 = vpack.c.b16 %v3216, %v3212
        %v3529 = vpack.c.b16 %v3217, %v3213
        %v3530 = vpack.c.b16 %v3222, %v3218
        %v3531 = vpack.c.b16 %v3223, %v3219
        %v3532 = vpack.c.b16 %v3224, %v3220
        %v3533 = vpack.c.b16 %v3225, %v3221
        %v3534 = vpack.c.b16 %v3230, %v3226
        %v3535 = vpack.c.b16 %v3231, %v3227
        %v3536 = vpack.c.b16 %v3232, %v3228
        %v3537 = vpack.c.b16 %v3233, %v3229
        %v3538 = vpack.c.b16 %v3238, %v3234
        %v3539 = vpack.c.b16 %v3239, %v3235
        %v3540 = vpack.c.b16 %v3240, %v3236
        %v3541 = vpack.c.b16 %v3241, %v3237
        %v3542 = vpack.c.b16 %v3246, %v3242
        %v3543 = vpack.c.b16 %v3247, %v3243
        %v3544 = vpack.c.b16 %v3248, %v3244
        %v3545 = vpack.c.b16 %v3249, %v3245
        %v3546 = vpack.c.b16 %v3254, %v3250
        %v3547 = vpack.c.b16 %v3255, %v3251
        %v3548 = vpack.c.b16 %v3256, %v3252
        %v3549 = vpack.c.b16 %v3257, %v3253
        %v3550 = vpack.c.b16 %v3262, %v3258
        %v3551 = vpack.c.b16 %v3263, %v3259
        %v3552 = vpack.c.b16 %v3264, %v3260
        %v3553 = vpack.c.b16 %v3265, %v3261
        %v3554 = vpack.c.b16 %v3270, %v3266
        %v3555 = vpack.c.b16 %v3271, %v3267
        %v3556 = vpack.c.b16 %v3272, %v3268
        %v3557 = vpack.c.b16 %v3273, %v3269
        %v3558 = vpack.c.b16 %v3278, %v3274
        %v3559 = vpack.c.b16 %v3279, %v3275
        %v3560 = vpack.c.b16 %v3280, %v3276
        %v3561 = vpack.c.b16 %v3281, %v3277
        %v3562 = vpack.c.b16 %v3286, %v3282
        %v3563 = vpack.c.b16 %v3287, %v3283
        %v3564 = vpack.c.b16 %v3288, %v3284
        %v3565 = vpack.c.b16 %v3289, %v3285
        %v3566 = vpack.c.b16 %v3294, %v3290
        %v3567 = vpack.c.b16 %v3295, %v3291
        %v3568 = vpack.c.b16 %v3296, %v3292
        %v3569 = vpack.c.b16 %v3297, %v3293
        %v3570 = vpack.c.b16 %v3302, %v3298
        %v3571 = vpack.c.b16 %v3303, %v3299
        %v3572 = vpack.c.b16 %v3304, %v3300
        %v3573 = vpack.c.b16 %v3305, %v3301
        %v3574 = vpack.c.b16 %v3310, %v3306
        %v3575 = vpack.c.b16 %v3311, %v3307
        %v3576 = vpack.c.b16 %v3312, %v3308
        %v3577 = vpack.c.b16 %v3313, %v3309
        %v3578 = vpack.c.b16 %v3318, %v3314
        %v3579 = vpack.c.b16 %v3319, %v3315
        %v3580 = vpack.c.b16 %v3320, %v3316
        %v3581 = vpack.c.b16 %v3321, %v3317
        %v3582 = vpack.c.b16 %v3326, %v3322
        %v3583 = vpack.c.b16 %v3327, %v3323
        %v3584 = vpack.c.b16 %v3328, %v3324
        %v3585 = vpack.c.b16 %v3329, %v3325
        %3842 = vmatprep.subr.bf16.mxu0 %v3331
        %3843 = vmatpush1.bf16.msra.mxu0 %v3330
        %3844 = vmatprep.subr.bf16.mxu0 %v3335
        %3845 = vmatpush1.bf16.msra.mxu0 %v3334
        %3846 = vmatprep.subr.bf16.mxu0 %v3339
        %3847 = vmatpush1.bf16.msra.mxu0 %v3338
        %3848 = vmatprep.subr.bf16.mxu0 %v3343
        %3849 = vmatpush1.bf16.msra.mxu0 %v3342
        %3850 = vmatprep.subr.bf16.mxu0 %v3347
        %3851 = vmatpush1.bf16.msra.mxu0 %v3346
        %3852 = vmatprep.subr.bf16.mxu0 %v3351
        %3853 = vmatpush1.bf16.msra.mxu0 %v3350
        %3854 = vmatprep.subr.bf16.mxu0 %v3355
        %3855 = vmatpush1.bf16.msra.mxu0 %v3354
        %3856 = vmatprep.subr.bf16.mxu0 %v3359
        %3857 = vmatpush1.bf16.msra.mxu0 %v3358
        %3858 = vmatprep.subr.bf16.mxu0 %v3363
        %3859 = vmatpush1.bf16.msra.mxu0 %v3362
        %3860 = vmatprep.subr.bf16.mxu0 %v3367
        %3861 = vmatpush1.bf16.msra.mxu0 %v3366
        %3862 = vmatprep.subr.bf16.mxu0 %v3371
        %3863 = vmatpush1.bf16.msra.mxu0 %v3370
        %3864 = vmatprep.subr.bf16.mxu0 %v3375
        %3865 = vmatpush1.bf16.msra.mxu0 %v3374
        %3866 = vmatprep.subr.bf16.mxu0 %v3379
        %3867 = vmatpush1.bf16.msra.mxu0 %v3378
        %3868 = vmatprep.subr.bf16.mxu0 %v3383
        %3869 = vmatpush1.bf16.msra.mxu0 %v3382
        %3870 = vmatprep.subr.bf16.mxu0 %v3387
        %3871 = vmatpush1.bf16.msra.mxu0 %v3386
        %3872 = vmatprep.subr.bf16.mxu0 %v3391
        %3873 = vmatpush1.bf16.msra.mxu0 %v3390
        %3874 = vmatprep.mubr.bf16.mxu0 %v2277
        %3875 = vmatmul.mubr.bf16.gmra.mrb[0].mxu0 %v2276
        %v3876 = vpop.f32.mrb[0].mxu0
        %v3877 = vadd.f32 %v2545, %v3876
        %v3878 = vpop.f32.mrb[0].mxu0
        %v3879 = vadd.f32 %v2549, %v3878
        %v3880 = vpop.f32.mrb[0].mxu0
        %v3881 = vpop.f32.mrb[0].mxu0
        %3882 = vdwg.mxu0
        %3883 = vmatprep.subr.bf16.mxu0 %v3395
        %3884 = vmatpush1.bf16.msra.mxu0 %v3394
        %3885 = vmatprep.subr.bf16.mxu0 %v3399
        %3886 = vmatpush1.bf16.msra.mxu0 %v3398
        %3887 = vmatprep.subr.bf16.mxu0 %v3403
        %3888 = vmatpush1.bf16.msra.mxu0 %v3402
        %3889 = vmatprep.subr.bf16.mxu0 %v3407
        %3890 = vmatpush1.bf16.msra.mxu0 %v3406
        %3891 = vmatprep.subr.bf16.mxu0 %v3411
        %3892 = vmatpush1.bf16.msra.mxu0 %v3410
        %3893 = vmatprep.subr.bf16.mxu0 %v3415
        %3894 = vmatpush1.bf16.msra.mxu0 %v3414
        %3895 = vmatprep.subr.bf16.mxu0 %v3419
        %3896 = vmatpush1.bf16.msra.mxu0 %v3418
        %3897 = vmatprep.subr.bf16.mxu0 %v3423
        %3898 = vmatpush1.bf16.msra.mxu0 %v3422
        %3899 = vmatprep.subr.bf16.mxu0 %v3427
        %3900 = vmatpush1.bf16.msra.mxu0 %v3426
        %3901 = vmatprep.subr.bf16.mxu0 %v3431
        %3902 = vmatpush1.bf16.msra.mxu0 %v3430
        %3903 = vmatprep.subr.bf16.mxu0 %v3435
        %3904 = vmatpush1.bf16.msra.mxu0 %v3434
        %3905 = vmatprep.subr.bf16.mxu0 %v3439
        %3906 = vmatpush1.bf16.msra.mxu0 %v3438
        %3907 = vmatprep.subr.bf16.mxu0 %v3443
        %3908 = vmatpush1.bf16.msra.mxu0 %v3442
        %3909 = vmatprep.subr.bf16.mxu0 %v3447
        %3910 = vmatpush1.bf16.msra.mxu0 %v3446
        %3911 = vmatprep.subr.bf16.mxu0 %v3451
        %3912 = vmatpush1.bf16.msra.mxu0 %v3450
        %3913 = vmatprep.subr.bf16.mxu0 %v3455
        %3914 = vmatpush1.bf16.msra.mxu0 %v3454
        %3915 = vmatprep.mubr.bf16.mxu0 %v2279
        %3916 = vmatmul.mubr.bf16.gmra.mrb[0].mxu0 %v2278
        %v3917 = vpop.f32.mrb[0].mxu0
        %v3918 = vadd.f32 %v3877, %v3917
        %v3919 = vpop.f32.mrb[0].mxu0
        %v3920 = vadd.f32 %v3879, %v3919
        %v3921 = vpop.f32.mrb[0].mxu0
        %v3922 = vpop.f32.mrb[0].mxu0
        %3923 = vdwg.mxu0
        %3924 = vmatprep.subr.bf16.mxu0 %v3459
        %3925 = vmatpush1.bf16.msra.mxu0 %v3458
        %3926 = vmatprep.subr.bf16.mxu0 %v3463
        %3927 = vmatpush1.bf16.msra.mxu0 %v3462
        %3928 = vmatprep.subr.bf16.mxu0 %v3467
        %3929 = vmatpush1.bf16.msra.mxu0 %v3466
        %3930 = vmatprep.subr.bf16.mxu0 %v3471
        %3931 = vmatpush1.bf16.msra.mxu0 %v3470
        %3932 = vmatprep.subr.bf16.mxu0 %v3475
        %3933 = vmatpush1.bf16.msra.mxu0 %v3474
        %3934 = vmatprep.subr.bf16.mxu0 %v3479
        %3935 = vmatpush1.bf16.msra.mxu0 %v3478
        %3936 = vmatprep.subr.bf16.mxu0 %v3483
        %3937 = vmatpush1.bf16.msra.mxu0 %v3482
        %3938 = vmatprep.subr.bf16.mxu0 %v3487
        %3939 = vmatpush1.bf16.msra.mxu0 %v3486
        %3940 = vmatprep.subr.bf16.mxu0 %v3491
        %3941 = vmatpush1.bf16.msra.mxu0 %v3490
        %3942 = vmatprep.subr.bf16.mxu0 %v3495
        %3943 = vmatpush1.bf16.msra.mxu0 %v3494
        %3944 = vmatprep.subr.bf16.mxu0 %v3499
        %3945 = vmatpush1.bf16.msra.mxu0 %v3498
        %3946 = vmatprep.subr.bf16.mxu0 %v3503
        %3947 = vmatpush1.bf16.msra.mxu0 %v3502
        %3948 = vmatprep.subr.bf16.mxu0 %v3507
        %3949 = vmatpush1.bf16.msra.mxu0 %v3506
        %3950 = vmatprep.subr.bf16.mxu0 %v3511
        %3951 = vmatpush1.bf16.msra.mxu0 %v3510
        %3952 = vmatprep.subr.bf16.mxu0 %v3515
        %3953 = vmatpush1.bf16.msra.mxu0 %v3514
        %3954 = vmatprep.subr.bf16.mxu0 %v3519
        %3955 = vmatpush1.bf16.msra.mxu0 %v3518
        %3956 = vmatprep.mubr.bf16.mxu0 %v2281
        %3957 = vmatmul.mubr.bf16.gmra.mrb[0].mxu0 %v2280
        %v3958 = vpop.f32.mrb[0].mxu0
        %v3959 = vadd.f32 %v3918, %v3958
        %v3960 = vpop.f32.mrb[0].mxu0
        %v3961 = vadd.f32 %v3920, %v3960
        %v3962 = vpop.f32.mrb[0].mxu0
        %v3963 = vpop.f32.mrb[0].mxu0
        %3964 = vdwg.mxu0
        %3965 = vmatprep.subr.bf16.mxu0 %v3523
        %3966 = vmatpush1.bf16.msra.mxu0 %v3522
        %3967 = vmatprep.subr.bf16.mxu0 %v3527
        %3968 = vmatpush1.bf16.msra.mxu0 %v3526
        %3969 = vmatprep.subr.bf16.mxu0 %v3531
        %3970 = vmatpush1.bf16.msra.mxu0 %v3530
        %3971 = vmatprep.subr.bf16.mxu0 %v3535
        %3972 = vmatpush1.bf16.msra.mxu0 %v3534
        %3973 = vmatprep.subr.bf16.mxu0 %v3539
        %3974 = vmatpush1.bf16.msra.mxu0 %v3538
        %3975 = vmatprep.subr.bf16.mxu0 %v3543
        %3976 = vmatpush1.bf16.msra.mxu0 %v3542
        %3977 = vmatprep.subr.bf16.mxu0 %v3547
        %3978 = vmatpush1.bf16.msra.mxu0 %v3546
        %3979 = vmatprep.subr.bf16.mxu0 %v3551
        %3980 = vmatpush1.bf16.msra.mxu0 %v3550
        %3981 = vmatprep.subr.bf16.mxu0 %v3555
        %3982 = vmatpush1.bf16.msra.mxu0 %v3554
        %3983 = vmatprep.subr.bf16.mxu0 %v3559
        %3984 = vmatpush1.bf16.msra.mxu0 %v3558
        %3985 = vmatprep.subr.bf16.mxu0 %v3563
        %3986 = vmatpush1.bf16.msra.mxu0 %v3562
        %3987 = vmatprep.subr.bf16.mxu0 %v3567
        %3988 = vmatpush1.bf16.msra.mxu0 %v3566
        %3989 = vmatprep.subr.bf16.mxu0 %v3571
        %3990 = vmatpush1.bf16.msra.mxu0 %v3570
        %3991 = vmatprep.subr.bf16.mxu0 %v3575
        %3992 = vmatpush1.bf16.msra.mxu0 %v3574
        %3993 = vmatprep.subr.bf16.mxu0 %v3579
        %3994 = vmatpush1.bf16.msra.mxu0 %v3578
        %3995 = vmatprep.subr.bf16.mxu0 %v3583
        %3996 = vmatpush1.bf16.msra.mxu0 %v3582
        %3997 = vmatprep.mubr.bf16.mxu0 %v2283
        %3998 = vmatmul.mubr.bf16.gmra.mrb[0].mxu0 %v2282
        %v3999 = vpop.f32.mrb[0].mxu0
        %v4000 = vadd.f32 %v3959, %v3999
        %v4001 = vpop.f32.mrb[0].mxu0
        %v4002 = vadd.f32 %v3961, %v4001
        %v4003 = vpop.f32.mrb[0].mxu0
        %v4004 = vpop.f32.mrb[0].mxu0
        %4005 = vdwg.mxu0
        %4006 = vmatprep.subr.bf16.mxu0 %v3333
        %4007 = vmatpush1.bf16.msra.mxu0 %v3332
        %4008 = vmatprep.subr.bf16.mxu0 %v3337
        %4009 = vmatpush1.bf16.msra.mxu0 %v3336
        %4010 = vmatprep.subr.bf16.mxu0 %v3341
        %4011 = vmatpush1.bf16.msra.mxu0 %v3340
        %4012 = vmatprep.subr.bf16.mxu0 %v3345
        %4013 = vmatpush1.bf16.msra.mxu0 %v3344
        %4014 = vmatprep.subr.bf16.mxu0 %v3349
        %4015 = vmatpush1.bf16.msra.mxu0 %v3348
        %4016 = vmatprep.subr.bf16.mxu0 %v3353
        %4017 = vmatpush1.bf16.msra.mxu0 %v3352
        %4018 = vmatprep.subr.bf16.mxu0 %v3357
        %4019 = vmatpush1.bf16.msra.mxu0 %v3356
        %4020 = vmatprep.subr.bf16.mxu0 %v3361
        %4021 = vmatpush1.bf16.msra.mxu0 %v3360
        %4022 = vmatprep.subr.bf16.mxu0 %v3365
        %4023 = vmatpush1.bf16.msra.mxu0 %v3364
        %4024 = vmatprep.subr.bf16.mxu0 %v3369
        %4025 = vmatpush1.bf16.msra.mxu0 %v3368
        %4026 = vmatprep.subr.bf16.mxu0 %v3373
        %4027 = vmatpush1.bf16.msra.mxu0 %v3372
        %4028 = vmatprep.subr.bf16.mxu0 %v3377
        %4029 = vmatpush1.bf16.msra.mxu0 %v3376
        %4030 = vmatprep.subr.bf16.mxu0 %v3381
        %4031 = vmatpush1.bf16.msra.mxu0 %v3380
        %4032 = vmatprep.subr.bf16.mxu0 %v3385
        %4033 = vmatpush1.bf16.msra.mxu0 %v3384
        %4034 = vmatprep.subr.bf16.mxu0 %v3389
        %4035 = vmatpush1.bf16.msra.mxu0 %v3388
        %4036 = vmatprep.subr.bf16.mxu0 %v3393
        %4037 = vmatpush1.bf16.msra.mxu0 %v3392
        %4038 = vmatprep.mubr.bf16.mxu0 %v2277
        %4039 = vmatmul.mubr.bf16.gmra.mrb[0].mxu0 %v2276
        %v4040 = vpop.f32.mrb[0].mxu0
        %v4041 = vadd.f32 %v2553, %v4040
        %v4042 = vpop.f32.mrb[0].mxu0
        %v4043 = vadd.f32 %v2557, %v4042
        %v4044 = vpop.f32.mrb[0].mxu0
        %v4045 = vpop.f32.mrb[0].mxu0
        %4046 = vdwg.mxu0
        %4047 = vmatprep.subr.bf16.mxu0 %v3397
        %4048 = vmatpush1.bf16.msra.mxu0 %v3396
        %4049 = vmatprep.subr.bf16.mxu0 %v3401
        %4050 = vmatpush1.bf16.msra.mxu0 %v3400
        %4051 = vmatprep.subr.bf16.mxu0 %v3405
        %4052 = vmatpush1.bf16.msra.mxu0 %v3404
        %4053 = vmatprep.subr.bf16.mxu0 %v3409
        %4054 = vmatpush1.bf16.msra.mxu0 %v3408
        %4055 = vmatprep.subr.bf16.mxu0 %v3413
        %4056 = vmatpush1.bf16.msra.mxu0 %v3412
        %4057 = vmatprep.subr.bf16.mxu0 %v3417
        %4058 = vmatpush1.bf16.msra.mxu0 %v3416
        %4059 = vmatprep.subr.bf16.mxu0 %v3421
        %4060 = vmatpush1.bf16.msra.mxu0 %v3420
        %4061 = vmatprep.subr.bf16.mxu0 %v3425
        %4062 = vmatpush1.bf16.msra.mxu0 %v3424
        %4063 = vmatprep.subr.bf16.mxu0 %v3429
        %4064 = vmatpush1.bf16.msra.mxu0 %v3428
        %4065 = vmatprep.subr.bf16.mxu0 %v3433
        %4066 = vmatpush1.bf16.msra.mxu0 %v3432
        %4067 = vmatprep.subr.bf16.mxu0 %v3437
        %4068 = vmatpush1.bf16.msra.mxu0 %v3436
        %4069 = vmatprep.subr.bf16.mxu0 %v3441
        %4070 = vmatpush1.bf16.msra.mxu0 %v3440
        %4071 = vmatprep.subr.bf16.mxu0 %v3445
        %4072 = vmatpush1.bf16.msra.mxu0 %v3444
        %4073 = vmatprep.subr.bf16.mxu0 %v3449
        %4074 = vmatpush1.bf16.msra.mxu0 %v3448
        %4075 = vmatprep.subr.bf16.mxu0 %v3453
        %4076 = vmatpush1.bf16.msra.mxu0 %v3452
        %4077 = vmatprep.subr.bf16.mxu0 %v3457
        %4078 = vmatpush1.bf16.msra.mxu0 %v3456
        %4079 = vmatprep.mubr.bf16.mxu0 %v2279
        %4080 = vmatmul.mubr.bf16.gmra.mrb[0].mxu0 %v2278
        %v4081 = vpop.f32.mrb[0].mxu0
        %v4082 = vadd.f32 %v4041, %v4081
        %v4083 = vpop.f32.mrb[0].mxu0
        %v4084 = vadd.f32 %v4043, %v4083
        %v4085 = vpop.f32.mrb[0].mxu0
        %v4086 = vpop.f32.mrb[0].mxu0
        %4087 = vdwg.mxu0
        %4088 = vmatprep.subr.bf16.mxu0 %v3461
        %4089 = vmatpush1.bf16.msra.mxu0 %v3460
        %4090 = vmatprep.subr.bf16.mxu0 %v3465
        %4091 = vmatpush1.bf16.msra.mxu0 %v3464
        %4092 = vmatprep.subr.bf16.mxu0 %v3469
        %4093 = vmatpush1.bf16.msra.mxu0 %v3468
        %4094 = vmatprep.subr.bf16.mxu0 %v3473
        %4095 = vmatpush1.bf16.msra.mxu0 %v3472
        %4096 = vmatprep.subr.bf16.mxu0 %v3477
        %4097 = vmatpush1.bf16.msra.mxu0 %v3476
        %4098 = vmatprep.subr.bf16.mxu0 %v3481
        %4099 = vmatpush1.bf16.msra.mxu0 %v3480
        %4100 = vmatprep.subr.bf16.mxu0 %v3485
        %4101 = vmatpush1.bf16.msra.mxu0 %v3484
        %4102 = vmatprep.subr.bf16.mxu0 %v3489
        %4103 = vmatpush1.bf16.msra.mxu0 %v3488
        %4104 = vmatprep.subr.bf16.mxu0 %v3493
        %4105 = vmatpush1.bf16.msra.mxu0 %v3492
        %4106 = vmatprep.subr.bf16.mxu0 %v3497
        %4107 = vmatpush1.bf16.msra.mxu0 %v3496
        %4108 = vmatprep.subr.bf16.mxu0 %v3501
        %4109 = vmatpush1.bf16.msra.mxu0 %v3500
        %4110 = vmatprep.subr.bf16.mxu0 %v3505
        %4111 = vmatpush1.bf16.msra.mxu0 %v3504
        %4112 = vmatprep.subr.bf16.mxu0 %v3509
        %4113 = vmatpush1.bf16.msra.mxu0 %v3508
        %4114 = vmatprep.subr.bf16.mxu0 %v3513
        %4115 = vmatpush1.bf16.msra.mxu0 %v3512
        %4116 = vmatprep.subr.bf16.mxu0 %v3517
        %4117 = vmatpush1.bf16.msra.mxu0 %v3516
        %4118 = vmatprep.subr.bf16.mxu0 %v3521
        %4119 = vmatpush1.bf16.msra.mxu0 %v3520
        %4120 = vmatprep.mubr.bf16.mxu0 %v2281
        %4121 = vmatmul.mubr.bf16.gmra.mrb[0].mxu0 %v2280
        %v4122 = vpop.f32.mrb[0].mxu0
        %v4123 = vadd.f32 %v4082, %v4122
        %v4124 = vpop.f32.mrb[0].mxu0
        %v4125 = vadd.f32 %v4084, %v4124
        %v4126 = vpop.f32.mrb[0].mxu0
        %v4127 = vpop.f32.mrb[0].mxu0
        %4128 = vdwg.mxu0
        %4129 = vmatprep.subr.bf16.mxu0 %v3525
        %4130 = vmatpush1.bf16.msra.mxu0 %v3524
        %4131 = vmatprep.subr.bf16.mxu0 %v3529
        %4132 = vmatpush1.bf16.msra.mxu0 %v3528
        %4133 = vmatprep.subr.bf16.mxu0 %v3533
        %4134 = vmatpush1.bf16.msra.mxu0 %v3532
        %4135 = vmatprep.subr.bf16.mxu0 %v3537
        %4136 = vmatpush1.bf16.msra.mxu0 %v3536
        %4137 = vmatprep.subr.bf16.mxu0 %v3541
        %4138 = vmatpush1.bf16.msra.mxu0 %v3540
        %4139 = vmatprep.subr.bf16.mxu0 %v3545
        %4140 = vmatpush1.bf16.msra.mxu0 %v3544
        %4141 = vmatprep.subr.bf16.mxu0 %v3549
        %4142 = vmatpush1.bf16.msra.mxu0 %v3548
        %4143 = vmatprep.subr.bf16.mxu0 %v3553
        %4144 = vmatpush1.bf16.msra.mxu0 %v3552
        %4145 = vmatprep.subr.bf16.mxu0 %v3557
        %4146 = vmatpush1.bf16.msra.mxu0 %v3556
        %4147 = vmatprep.subr.bf16.mxu0 %v3561
        %4148 = vmatpush1.bf16.msra.mxu0 %v3560
        %4149 = vmatprep.subr.bf16.mxu0 %v3565
        %4150 = vmatpush1.bf16.msra.mxu0 %v3564
        %4151 = vmatprep.subr.bf16.mxu0 %v3569
        %4152 = vmatpush1.bf16.msra.mxu0 %v3568
        %4153 = vmatprep.subr.bf16.mxu0 %v3573
        %4154 = vmatpush1.bf16.msra.mxu0 %v3572
        %4155 = vmatprep.subr.bf16.mxu0 %v3577
        %4156 = vmatpush1.bf16.msra.mxu0 %v3576
        %4157 = vmatprep.subr.bf16.mxu0 %v3581
        %4158 = vmatpush1.bf16.msra.mxu0 %v3580
        %4159 = vmatprep.subr.bf16.mxu0 %v3585
        %4160 = vmatpush1.bf16.msra.mxu0 %v3584
        %4161 = vmatprep.mubr.bf16.mxu0 %v2283
        %4162 = vmatmul.mubr.bf16.gmra.mrb[0].mxu0 %v2282
        %v4163 = vpop.f32.mrb[0].mxu0
        %v4164 = vadd.f32 %v4123, %v4163
        %v4165 = vpop.f32.mrb[0].mxu0
        %v4166 = vadd.f32 %v4125, %v4165
        %v4167 = vpop.f32.mrb[0].mxu0
        %v4168 = vpop.f32.mrb[0].mxu0
        %4169 = vdwg.mxu0
        %v4170 = vld [vmem:[%s13] sm:$0xf]
        %v4171 = vld [vmem:[%s14] sm:$0xf]
        %vm4172 = vcmask 1041408
        %v4173 = vsel %vm4172, %v4000, 0.0
        %v4174 = vrot.slane %v4173, 4
        %v4175 = vadd.f32 %v4173, %v4174
        %v4176 = vrot.slane %v4175, 2
        %v4177 = vadd.f32 %v4175, %v4176
        %v4178 = vrot.slane %v4177, 1
        %v4179 = vadd.f32 %v4177, %v4178
        %v4180 = vsel %vm4172, %v4002, 0.0
        %v4181 = vrot.slane %v4180, 4
        %v4182 = vadd.f32 %v4180, %v4181
        %v4183 = vrot.slane %v4182, 2
        %v4184 = vadd.f32 %v4182, %v4183
        %v4185 = vrot.slane %v4184, 1
        %v4186 = vadd.f32 %v4184, %v4185
        %v4187 = vsel %vm4172, %v4164, 0.0
        %v4188 = vrot.slane %v4187, 4
        %v4189 = vadd.f32 %v4187, %v4188
        %v4190 = vrot.slane %v4189, 2
        %v4191 = vadd.f32 %v4189, %v4190
        %v4192 = vrot.slane %v4191, 1
        %v4193 = vadd.f32 %v4191, %v4192
        %v4194 = vsel %vm4172, %v4166, 0.0
        %v4195 = vrot.slane %v4194, 4
        %v4196 = vadd.f32 %v4194, %v4195
        %v4197 = vrot.slane %v4196, 2
        %v4198 = vadd.f32 %v4196, %v4197
        %v4199 = vrot.slane %v4198, 1
        %v4200 = vadd.f32 %v4198, %v4199
        %v4201 = vrcp.pop 2.0
        %v4202 = vmul.f32 %v4179, %v4201
        %v4203 = vmul.f32 %v4186, %v4201
        %v4204 = vmul.f32 %v4193, %v4201
        %v4205 = vmul.f32 %v4200, %v4201
        %v4206 = vsub.f32 %v4000, %v4202
        %v4207 = vsub.f32 %v4002, %v4203
        %v4208 = vsub.f32 %v4164, %v4204
        %v4209 = vsub.f32 %v4166, %v4205
        %v4210 = vmul.f32 %v4206, %v4206
        %v4211 = vmul.f32 %v4207, %v4207
        %v4212 = vmul.f32 %v4208, %v4208
        %v4213 = vmul.f32 %v4209, %v4209
        %v4214 = vsel %vm4172, %v4210, 0.0
        %v4215 = vrot.slane %v4214, 4
        %v4216 = vadd.f32 %v4214, %v4215
        %v4217 = vrot.slane %v4216, 2
        %v4218 = vadd.f32 %v4216, %v4217
        %v4219 = vrot.slane %v4218, 1
        %v4220 = vadd.f32 %v4218, %v4219
        %v4221 = vsel %vm4172, %v4211, 0.0
        %v4222 = vrot.slane %v4221, 4
        %v4223 = vadd.f32 %v4221, %v4222
        %v4224 = vrot.slane %v4223, 2
        %v4225 = vadd.f32 %v4223, %v4224
        %v4226 = vrot.slane %v4225, 1
        %v4227 = vadd.f32 %v4225, %v4226
        %v4228 = vsel %vm4172, %v4212, 0.0
        %v4229 = vrot.slane %v4228, 4
        %v4230 = vadd.f32 %v4228, %v4229
        %v4231 = vrot.slane %v4230, 2
        %v4232 = vadd.f32 %v4230, %v4231
        %v4233 = vrot.slane %v4232, 1
        %v4234 = vadd.f32 %v4232, %v4233
        %v4235 = vsel %vm4172, %v4213, 0.0
        %v4236 = vrot.slane %v4235, 4
        %v4237 = vadd.f32 %v4235, %v4236
        %v4238 = vrot.slane %v4237, 2
        %v4239 = vadd.f32 %v4237, %v4238
        %v4240 = vrot.slane %v4239, 1
        %v4241 = vadd.f32 %v4239, %v4240
        %v4242 = vmul.f32 %v4220, %v4201
        %v4243 = vmul.f32 %v4227, %v4201
        %v4244 = vmul.f32 %v4234, %v4201
        %v4245 = vmul.f32 %v4241, %v4201
        %v4246 = vadd.f32 %v4242, 1e-05
        %v4247 = vadd.f32 %v4243, 1e-05
        %v4248 = vadd.f32 %v4244, 1e-05
        %v4249 = vadd.f32 %v4245, 1e-05
        %v4250 = vrsqrt.pop %v4246
        %v4251 = vrsqrt.pop %v4247
        %v4252 = vrsqrt.pop %v4248
        %v4253 = vrsqrt.pop %v4249
        %v4254 = vmul.f32 %v4206, %v4250
        %v4255 = vmul.f32 %v4207, %v4251
        %v4256 = vmul.f32 %v4208, %v4252
        %v4257 = vmul.f32 %v4209, %v4253
        %v4259 = vlaneseq
        %v4260 = vshrl.u32 %v4259, 7
        %v4261 = vsub.s32 0, %v4260
        %v4262 = vrot.slane %v4170, %v4261
        %v4263 = vlaneseq
        %v4264 = vshrl.u32 %v4263, 7
        %v4265 = vsub.s32 1, %v4264
        %v4266 = vrot.slane %v4170, %v4265
        %v4267 = vlaneseq
        %v4268 = vshrl.u32 %v4267, 7
        %v4269 = vsub.s32 2, %v4268
        %v4270 = vrot.slane %v4170, %v4269
        %v4271 = vlaneseq
        %v4272 = vshrl.u32 %v4271, 7
        %v4273 = vsub.s32 3, %v4272
        %v4274 = vrot.slane %v4170, %v4273
        %v4279 = vmul.f32 %v4254, %v4262
        %v4280 = vmul.f32 %v4255, %v4266
        %v4281 = vmul.f32 %v4256, %v4270
        %v4282 = vmul.f32 %v4257, %v4274
        %v4284 = vlaneseq
        %v4285 = vshrl.u32 %v4284, 7
        %v4286 = vsub.s32 0, %v4285
        %v4287 = vrot.slane %v4171, %v4286
        %v4288 = vlaneseq
        %v4289 = vshrl.u32 %v4288, 7
        %v4290 = vsub.s32 1, %v4289
        %v4291 = vrot.slane %v4171, %v4290
        %v4292 = vlaneseq
        %v4293 = vshrl.u32 %v4292, 7
        %v4294 = vsub.s32 2, %v4293
        %v4295 = vrot.slane %v4171, %v4294
        %v4296 = vlaneseq
        %v4297 = vshrl.u32 %v4296, 7
        %v4298 = vsub.s32 3, %v4297
        %v4299 = vrot.slane %v4171, %v4298
        %v4304 = vadd.f32 %v4279, %v4287
        %v4305 = vadd.f32 %v4280, %v4291
        %v4306 = vadd.f32 %v4281, %v4295
        %v4307 = vadd.f32 %v4282, %v4299
        %v4308 = vpack.c.bf16 %v4304, %v4304
        %v4309 = vpack.c.bf16 %v4305, %v4305
        %v4310 = vpack.c.bf16 %v4306, %v4306
        %v4311 = vpack.c.bf16 %v4307, %v4307
        %v4312 = vld [vmem:[%s15] sm:$0xff]
        %v4313 = vld [vmem:[%s15 + $0x8] sm:$0xff]
        %v4314 = vld [vmem:[%s15 + $0x10] sm:$0xff]
        %v4315 = vld [vmem:[%s15 + $0x18] sm:$0xff]
        %v4316 = vld [vmem:[%s15 + $0x20] sm:$0xff]
        %v4317 = vld [vmem:[%s15 + $0x28] sm:$0xff]
        %v4318 = vld [vmem:[%s15 + $0x30] sm:$0xff]
        %v4319 = vld [vmem:[%s15 + $0x38] sm:$0xff]
        %v4320 = vld [vmem:[%s15 + $0x40] sm:$0xff]
        %v4321 = vld [vmem:[%s15 + $0x48] sm:$0xff]
        %v4322 = vld [vmem:[%s15 + $0x50] sm:$0xff]
        %v4323 = vld [vmem:[%s15 + $0x58] sm:$0xff]
        %v4324 = vld [vmem:[%s15 + $0x60] sm:$0xff]
        %v4325 = vld [vmem:[%s15 + $0x68] sm:$0xff]
        %v4326 = vld [vmem:[%s15 + $0x70] sm:$0xff]
        %v4327 = vld [vmem:[%s15 + $0x78] sm:$0xff]
        %v4328 = vld [vmem:[%s15 + $0x80] sm:$0xff]
        %v4329 = vld [vmem:[%s15 + $0x88] sm:$0xff]
        %v4330 = vld [vmem:[%s15 + $0x90] sm:$0xff]
        %v4331 = vld [vmem:[%s15 + $0x98] sm:$0xff]
        %v4332 = vld [vmem:[%s15 + $0xa0] sm:$0xff]
        %v4333 = vld [vmem:[%s15 + $0xa8] sm:$0xff]
        %v4334 = vld [vmem:[%s15 + $0xb0] sm:$0xff]
        %v4335 = vld [vmem:[%s15 + $0xb8] sm:$0xff]
        %v4336 = vld [vmem:[%s15 + $0xc0] sm:$0xff]
        %v4337 = vld [vmem:[%s15 + $0xc8] sm:$0xff]
        %v4338 = vld [vmem:[%s15 + $0xd0] sm:$0xff]
        %v4339 = vld [vmem:[%s15 + $0xd8] sm:$0xff]
        %v4340 = vld [vmem:[%s15 + $0xe0] sm:$0xff]
        %v4341 = vld [vmem:[%s15 + $0xe8] sm:$0xff]
        %v4342 = vld [vmem:[%s15 + $0xf0] sm:$0xff]
        %v4343 = vld [vmem:[%s15 + $0xf8] sm:$0xff]
        %v4344 = vld [vmem:[%s15 + $0x100] sm:$0xff]
        %v4345 = vld [vmem:[%s15 + $0x108] sm:$0xff]
        %v4346 = vld [vmem:[%s15 + $0x110] sm:$0xff]
        %v4347 = vld [vmem:[%s15 + $0x118] sm:$0xff]
        %v4348 = vld [vmem:[%s15 + $0x120] sm:$0xff]
        %v4349 = vld [vmem:[%s15 + $0x128] sm:$0xff]
        %v4350 = vld [vmem:[%s15 + $0x130] sm:$0xff]
        %v4351 = vld [vmem:[%s15 + $0x138] sm:$0xff]
        %v4352 = vld [vmem:[%s15 + $0x140] sm:$0xff]
        %v4353 = vld [vmem:[%s15 + $0x148] sm:$0xff]
        %v4354 = vld [vmem:[%s15 + $0x150] sm:$0xff]
        %v4355 = vld [vmem:[%s15 + $0x158] sm:$0xff]
        %v4356 = vld [vmem:[%s15 + $0x160] sm:$0xff]
        %v4357 = vld [vmem:[%s15 + $0x168] sm:$0xff]
        %v4358 = vld [vmem:[%s15 + $0x170] sm:$0xff]
        %v4359 = vld [vmem:[%s15 + $0x178] sm:$0xff]
        %v4360 = vld [vmem:[%s15 + $0x180] sm:$0xff]
        %v4361 = vld [vmem:[%s15 + $0x188] sm:$0xff]
        %v4362 = vld [vmem:[%s15 + $0x190] sm:$0xff]
        %v4363 = vld [vmem:[%s15 + $0x198] sm:$0xff]
        %v4364 = vld [vmem:[%s15 + $0x1a0] sm:$0xff]
        %v4365 = vld [vmem:[%s15 + $0x1a8] sm:$0xff]
        %v4366 = vld [vmem:[%s15 + $0x1b0] sm:$0xff]
        %v4367 = vld [vmem:[%s15 + $0x1b8] sm:$0xff]
        %v4368 = vld [vmem:[%s15 + $0x1c0] sm:$0xff]
        %v4369 = vld [vmem:[%s15 + $0x1c8] sm:$0xff]
        %v4370 = vld [vmem:[%s15 + $0x1d0] sm:$0xff]
        %v4371 = vld [vmem:[%s15 + $0x1d8] sm:$0xff]
        %v4372 = vld [vmem:[%s15 + $0x1e0] sm:$0xff]
        %v4373 = vld [vmem:[%s15 + $0x1e8] sm:$0xff]
        %v4374 = vld [vmem:[%s15 + $0x1f0] sm:$0xff]
        %v4375 = vld [vmem:[%s15 + $0x1f8] sm:$0xff]
        %v4376 = vld [vmem:[%s16] sm:$0x3]
        %v4378 = vlaneseq
        %v4379 = vshrl.u32 %v4378, 7
        %v4380 = vsub.s32 0, %v4379
        %v4381 = vrot.slane %v4376, %v4380
        %v4382 = vlaneseq
        %v4383 = vshrl.u32 %v4382, 7
        %v4384 = vsub.s32 1, %v4383
        %v4385 = vrot.slane %v4376, %v4384
        %v4452 = vunpack.c.l.b16 %v4312
        %v4453 = vunpack.c.h.b16 %v4312
        %v4454 = vunpack.c.l.b16 %v4313
        %v4455 = vunpack.c.h.b16 %v4313
        %v4456 = vunpack.c.l.b16 %v4314
        %v4457 = vunpack.c.h.b16 %v4314
        %v4458 = vunpack.c.l.b16 %v4315
        %v4459 = vunpack.c.h.b16 %v4315
        %v4460 = vunpack.c.l.b16 %v4316
        %v4461 = vunpack.c.h.b16 %v4316
        %v4462 = vunpack.c.l.b16 %v4317
        %v4463 = vunpack.c.h.b16 %v4317
        %v4464 = vunpack.c.l.b16 %v4318
        %v4465 = vunpack.c.h.b16 %v4318
        %v4466 = vunpack.c.l.b16 %v4319
        %v4467 = vunpack.c.h.b16 %v4319
        %v4468 = vunpack.c.l.b16 %v4320
        %v4469 = vunpack.c.h.b16 %v4320
        %v4470 = vunpack.c.l.b16 %v4321
        %v4471 = vunpack.c.h.b16 %v4321
        %v4472 = vunpack.c.l.b16 %v4322
        %v4473 = vunpack.c.h.b16 %v4322
        %v4474 = vunpack.c.l.b16 %v4323
        %v4475 = vunpack.c.h.b16 %v4323
        %v4476 = vunpack.c.l.b16 %v4324
        %v4477 = vunpack.c.h.b16 %v4324
        %v4478 = vunpack.c.l.b16 %v4325
        %v4479 = vunpack.c.h.b16 %v4325
        %v4480 = vunpack.c.l.b16 %v4326
        %v4481 = vunpack.c.h.b16 %v4326
        %v4482 = vunpack.c.l.b16 %v4327
        %v4483 = vunpack.c.h.b16 %v4327
        %v4484 = vunpack.c.l.b16 %v4328
        %v4485 = vunpack.c.h.b16 %v4328
        %v4486 = vunpack.c.l.b16 %v4329
        %v4487 = vunpack.c.h.b16 %v4329
        %v4488 = vunpack.c.l.b16 %v4330
        %v4489 = vunpack.c.h.b16 %v4330
        %v4490 = vunpack.c.l.b16 %v4331
        %v4491 = vunpack.c.h.b16 %v4331
        %v4492 = vunpack.c.l.b16 %v4332
        %v4493 = vunpack.c.h.b16 %v4332
        %v4494 = vunpack.c.l.b16 %v4333
        %v4495 = vunpack.c.h.b16 %v4333
        %v4496 = vunpack.c.l.b16 %v4334
        %v4497 = vunpack.c.h.b16 %v4334
        %v4498 = vunpack.c.l.b16 %v4335
        %v4499 = vunpack.c.h.b16 %v4335
        %v4500 = vunpack.c.l.b16 %v4336
        %v4501 = vunpack.c.h.b16 %v4336
        %v4502 = vunpack.c.l.b16 %v4337
        %v4503 = vunpack.c.h.b16 %v4337
        %v4504 = vunpack.c.l.b16 %v4338
        %v4505 = vunpack.c.h.b16 %v4338
        %v4506 = vunpack.c.l.b16 %v4339
        %v4507 = vunpack.c.h.b16 %v4339
        %v4508 = vunpack.c.l.b16 %v4340
        %v4509 = vunpack.c.h.b16 %v4340
        %v4510 = vunpack.c.l.b16 %v4341
        %v4511 = vunpack.c.h.b16 %v4341
        %v4512 = vunpack.c.l.b16 %v4342
        %v4513 = vunpack.c.h.b16 %v4342
        %v4514 = vunpack.c.l.b16 %v4343
        %v4515 = vunpack.c.h.b16 %v4343
        %v4516 = vunpack.c.l.b16 %v4344
        %v4517 = vunpack.c.h.b16 %v4344
        %v4518 = vunpack.c.l.b16 %v4345
        %v4519 = vunpack.c.h.b16 %v4345
        %v4520 = vunpack.c.l.b16 %v4346
        %v4521 = vunpack.c.h.b16 %v4346
        %v4522 = vunpack.c.l.b16 %v4347
        %v4523 = vunpack.c.h.b16 %v4347
        %v4524 = vunpack.c.l.b16 %v4348
        %v4525 = vunpack.c.h.b16 %v4348
        %v4526 = vunpack.c.l.b16 %v4349
        %v4527 = vunpack.c.h.b16 %v4349
        %v4528 = vunpack.c.l.b16 %v4350
        %v4529 = vunpack.c.h.b16 %v4350
        %v4530 = vunpack.c.l.b16 %v4351
        %v4531 = vunpack.c.h.b16 %v4351
        %v4532 = vunpack.c.l.b16 %v4352
        %v4533 = vunpack.c.h.b16 %v4352
        %v4534 = vunpack.c.l.b16 %v4353
        %v4535 = vunpack.c.h.b16 %v4353
        %v4536 = vunpack.c.l.b16 %v4354
        %v4537 = vunpack.c.h.b16 %v4354
        %v4538 = vunpack.c.l.b16 %v4355
        %v4539 = vunpack.c.h.b16 %v4355
        %v4540 = vunpack.c.l.b16 %v4356
        %v4541 = vunpack.c.h.b16 %v4356
        %v4542 = vunpack.c.l.b16 %v4357
        %v4543 = vunpack.c.h.b16 %v4357
        %v4544 = vunpack.c.l.b16 %v4358
        %v4545 = vunpack.c.h.b16 %v4358
        %v4546 = vunpack.c.l.b16 %v4359
        %v4547 = vunpack.c.h.b16 %v4359
        %v4548 = vunpack.c.l.b16 %v4360
        %v4549 = vunpack.c.h.b16 %v4360
        %v4550 = vunpack.c.l.b16 %v4361
        %v4551 = vunpack.c.h.b16 %v4361
        %v4552 = vunpack.c.l.b16 %v4362
        %v4553 = vunpack.c.h.b16 %v4362
        %v4554 = vunpack.c.l.b16 %v4363
        %v4555 = vunpack.c.h.b16 %v4363
        %v4556 = vunpack.c.l.b16 %v4364
        %v4557 = vunpack.c.h.b16 %v4364
        %v4558 = vunpack.c.l.b16 %v4365
        %v4559 = vunpack.c.h.b16 %v4365
        %v4560 = vunpack.c.l.b16 %v4366
        %v4561 = vunpack.c.h.b16 %v4366
        %v4562 = vunpack.c.l.b16 %v4367
        %v4563 = vunpack.c.h.b16 %v4367
        %v4564 = vunpack.c.l.b16 %v4368
        %v4565 = vunpack.c.h.b16 %v4368
        %v4566 = vunpack.c.l.b16 %v4369
        %v4567 = vunpack.c.h.b16 %v4369
        %v4568 = vunpack.c.l.b16 %v4370
        %v4569 = vunpack.c.h.b16 %v4370
        %v4570 = vunpack.c.l.b16 %v4371
        %v4571 = vunpack.c.h.b16 %v4371
        %v4572 = vunpack.c.l.b16 %v4372
        %v4573 = vunpack.c.h.b16 %v4372
        %v4574 = vunpack.c.l.b16 %v4373
        %v4575 = vunpack.c.h.b16 %v4373
        %v4576 = vunpack.c.l.b16 %v4374
        %v4577 = vunpack.c.h.b16 %v4374
        %v4578 = vunpack.c.l.b16 %v4375
        %v4579 = vunpack.c.h.b16 %v4375
        %v4580 = vpack.c.b16 %v4454, %v4452
        %v4581 = vpack.c.b16 %v4455, %v4453
        %v4582 = vpack.c.b16 %v4458, %v4456
        %v4583 = vpack.c.b16 %v4459, %v4457
        %v4584 = vpack.c.b16 %v4462, %v4460
        %v4585 = vpack.c.b16 %v4463, %v4461
        %v4586 = vpack.c.b16 %v4466, %v4464
        %v4587 = vpack.c.b16 %v4467, %v4465
        %v4588 = vpack.c.b16 %v4470, %v4468
        %v4589 = vpack.c.b16 %v4471, %v4469
        %v4590 = vpack.c.b16 %v4474, %v4472
        %v4591 = vpack.c.b16 %v4475, %v4473
        %v4592 = vpack.c.b16 %v4478, %v4476
        %v4593 = vpack.c.b16 %v4479, %v4477
        %v4594 = vpack.c.b16 %v4482, %v4480
        %v4595 = vpack.c.b16 %v4483, %v4481
        %v4596 = vpack.c.b16 %v4486, %v4484
        %v4597 = vpack.c.b16 %v4487, %v4485
        %v4598 = vpack.c.b16 %v4490, %v4488
        %v4599 = vpack.c.b16 %v4491, %v4489
        %v4600 = vpack.c.b16 %v4494, %v4492
        %v4601 = vpack.c.b16 %v4495, %v4493
        %v4602 = vpack.c.b16 %v4498, %v4496
        %v4603 = vpack.c.b16 %v4499, %v4497
        %v4604 = vpack.c.b16 %v4502, %v4500
        %v4605 = vpack.c.b16 %v4503, %v4501
        %v4606 = vpack.c.b16 %v4506, %v4504
        %v4607 = vpack.c.b16 %v4507, %v4505
        %v4608 = vpack.c.b16 %v4510, %v4508
        %v4609 = vpack.c.b16 %v4511, %v4509
        %v4610 = vpack.c.b16 %v4514, %v4512
        %v4611 = vpack.c.b16 %v4515, %v4513
        %v4612 = vpack.c.b16 %v4518, %v4516
        %v4613 = vpack.c.b16 %v4519, %v4517
        %v4614 = vpack.c.b16 %v4522, %v4520
        %v4615 = vpack.c.b16 %v4523, %v4521
        %v4616 = vpack.c.b16 %v4526, %v4524
        %v4617 = vpack.c.b16 %v4527, %v4525
        %v4618 = vpack.c.b16 %v4530, %v4528
        %v4619 = vpack.c.b16 %v4531, %v4529
        %v4620 = vpack.c.b16 %v4534, %v4532
        %v4621 = vpack.c.b16 %v4535, %v4533
        %v4622 = vpack.c.b16 %v4538, %v4536
        %v4623 = vpack.c.b16 %v4539, %v4537
        %v4624 = vpack.c.b16 %v4542, %v4540
        %v4625 = vpack.c.b16 %v4543, %v4541
        %v4626 = vpack.c.b16 %v4546, %v4544
        %v4627 = vpack.c.b16 %v4547, %v4545
        %v4628 = vpack.c.b16 %v4550, %v4548
        %v4629 = vpack.c.b16 %v4551, %v4549
        %v4630 = vpack.c.b16 %v4554, %v4552
        %v4631 = vpack.c.b16 %v4555, %v4553
        %v4632 = vpack.c.b16 %v4558, %v4556
        %v4633 = vpack.c.b16 %v4559, %v4557
        %v4634 = vpack.c.b16 %v4562, %v4560
        %v4635 = vpack.c.b16 %v4563, %v4561
        %v4636 = vpack.c.b16 %v4566, %v4564
        %v4637 = vpack.c.b16 %v4567, %v4565
        %v4638 = vpack.c.b16 %v4570, %v4568
        %v4639 = vpack.c.b16 %v4571, %v4569
        %v4640 = vpack.c.b16 %v4574, %v4572
        %v4641 = vpack.c.b16 %v4575, %v4573
        %v4642 = vpack.c.b16 %v4578, %v4576
        %v4643 = vpack.c.b16 %v4579, %v4577
        %4708 = vmatprep.subr.bf16.mxu0 %v4581
        %4709 = vmatpush1.bf16.msra.mxu0 %v4580
        %4710 = vmatprep.subr.bf16.mxu0 %v4583
        %4711 = vmatpush1.bf16.msra.mxu0 %v4582
        %4712 = vmatprep.subr.bf16.mxu0 %v4585
        %4713 = vmatpush1.bf16.msra.mxu0 %v4584
        %4714 = vmatprep.subr.bf16.mxu0 %v4587
        %4715 = vmatpush1.bf16.msra.mxu0 %v4586
        %4716 = vmatprep.subr.bf16.mxu0 %v4589
        %4717 = vmatpush1.bf16.msra.mxu0 %v4588
        %4718 = vmatprep.subr.bf16.mxu0 %v4591
        %4719 = vmatpush1.bf16.msra.mxu0 %v4590
        %4720 = vmatprep.subr.bf16.mxu0 %v4593
        %4721 = vmatpush1.bf16.msra.mxu0 %v4592
        %4722 = vmatprep.subr.bf16.mxu0 %v4595
        %4723 = vmatpush1.bf16.msra.mxu0 %v4594
        %4724 = vmatprep.subr.bf16.mxu0 %v4597
        %4725 = vmatpush1.bf16.msra.mxu0 %v4596
        %4726 = vmatprep.subr.bf16.mxu0 %v4599
        %4727 = vmatpush1.bf16.msra.mxu0 %v4598
        %4728 = vmatprep.subr.bf16.mxu0 %v4601
        %4729 = vmatpush1.bf16.msra.mxu0 %v4600
        %4730 = vmatprep.subr.bf16.mxu0 %v4603
        %4731 = vmatpush1.bf16.msra.mxu0 %v4602
        %4732 = vmatprep.subr.bf16.mxu0 %v4605
        %4733 = vmatpush1.bf16.msra.mxu0 %v4604
        %4734 = vmatprep.subr.bf16.mxu0 %v4607
        %4735 = vmatpush1.bf16.msra.mxu0 %v4606
        %4736 = vmatprep.subr.bf16.mxu0 %v4609
        %4737 = vmatpush1.bf16.msra.mxu0 %v4608
        %4738 = vmatprep.subr.bf16.mxu0 %v4611
        %4739 = vmatpush1.bf16.msra.mxu0 %v4610
        %4740 = vmatprep.mubr.bf16.mxu0 %v4309
        %4741 = vmatmul.mubr.bf16.gmra.mrb[0].mxu0 %v4308
        %v4742 = vpop.f32.mrb[0].mxu0
        %v4743 = vadd.f32 %v4381, %v4742
        %v4744 = vpop.f32.mrb[0].mxu0
        %v4745 = vadd.f32 %v4385, %v4744
        %v4746 = vpop.f32.mrb[0].mxu0
        %v4747 = vpop.f32.mrb[0].mxu0
        %4748 = vdwg.mxu0
        %4749 = vmatprep.subr.bf16.mxu0 %v4613
        %4750 = vmatpush1.bf16.msra.mxu0 %v4612
        %4751 = vmatprep.subr.bf16.mxu0 %v4615
        %4752 = vmatpush1.bf16.msra.mxu0 %v4614
        %4753 = vmatprep.subr.bf16.mxu0 %v4617
        %4754 = vmatpush1.bf16.msra.mxu0 %v4616
        %4755 = vmatprep.subr.bf16.mxu0 %v4619
        %4756 = vmatpush1.bf16.msra.mxu0 %v4618
        %4757 = vmatprep.subr.bf16.mxu0 %v4621
        %4758 = vmatpush1.bf16.msra.mxu0 %v4620
        %4759 = vmatprep.subr.bf16.mxu0 %v4623
        %4760 = vmatpush1.bf16.msra.mxu0 %v4622
        %4761 = vmatprep.subr.bf16.mxu0 %v4625
        %4762 = vmatpush1.bf16.msra.mxu0 %v4624
        %4763 = vmatprep.subr.bf16.mxu0 %v4627
        %4764 = vmatpush1.bf16.msra.mxu0 %v4626
        %4765 = vmatprep.subr.bf16.mxu0 %v4629
        %4766 = vmatpush1.bf16.msra.mxu0 %v4628
        %4767 = vmatprep.subr.bf16.mxu0 %v4631
        %4768 = vmatpush1.bf16.msra.mxu0 %v4630
        %4769 = vmatprep.subr.bf16.mxu0 %v4633
        %4770 = vmatpush1.bf16.msra.mxu0 %v4632
        %4771 = vmatprep.subr.bf16.mxu0 %v4635
        %4772 = vmatpush1.bf16.msra.mxu0 %v4634
        %4773 = vmatprep.subr.bf16.mxu0 %v4637
        %4774 = vmatpush1.bf16.msra.mxu0 %v4636
        %4775 = vmatprep.subr.bf16.mxu0 %v4639
        %4776 = vmatpush1.bf16.msra.mxu0 %v4638
        %4777 = vmatprep.subr.bf16.mxu0 %v4641
        %4778 = vmatpush1.bf16.msra.mxu0 %v4640
        %4779 = vmatprep.subr.bf16.mxu0 %v4643
        %4780 = vmatpush1.bf16.msra.mxu0 %v4642
        %4781 = vmatprep.mubr.bf16.mxu0 %v4311
        %4782 = vmatmul.mubr.bf16.gmra.mrb[0].mxu0 %v4310
        %v4783 = vpop.f32.mrb[0].mxu0
        %v4784 = vadd.f32 %v4743, %v4783
        %v4785 = vpop.f32.mrb[0].mxu0
        %v4786 = vadd.f32 %v4745, %v4785
        %v4787 = vpop.f32.mrb[0].mxu0
        %v4788 = vpop.f32.mrb[0].mxu0
        %4789 = vdwg.mxu0
        %v4790 = vld [vmem:[%s17] sm:$0x3]
        %v4791 = vld [vmem:[%s18] sm:$0x3]
        %v4792 = vsel %vm4172, %v4784, 0.0
        %v4793 = vrot.slane %v4792, 4
        %v4794 = vadd.f32 %v4792, %v4793
        %v4795 = vrot.slane %v4794, 2
        %v4796 = vadd.f32 %v4794, %v4795
        %v4797 = vrot.slane %v4796, 1
        %v4798 = vadd.f32 %v4796, %v4797
        %v4799 = vsel %vm4172, %v4786, 0.0
        %v4800 = vrot.slane %v4799, 4
        %v4801 = vadd.f32 %v4799, %v4800
        %v4802 = vrot.slane %v4801, 2
        %v4803 = vadd.f32 %v4801, %v4802
        %v4804 = vrot.slane %v4803, 1
        %v4805 = vadd.f32 %v4803, %v4804
        %v4806 = vmul.f32 %v4798, %v4201
        %v4807 = vmul.f32 %v4805, %v4201
        %v4808 = vsub.f32 %v4784, %v4806
        %v4809 = vsub.f32 %v4786, %v4807
        %v4810 = vmul.f32 %v4808, %v4808
        %v4811 = vmul.f32 %v4809, %v4809
        %v4812 = vsel %vm4172, %v4810, 0.0
        %v4813 = vrot.slane %v4812, 4
        %v4814 = vadd.f32 %v4812, %v4813
        %v4815 = vrot.slane %v4814, 2
        %v4816 = vadd.f32 %v4814, %v4815
        %v4817 = vrot.slane %v4816, 1
        %v4818 = vadd.f32 %v4816, %v4817
        %v4819 = vsel %vm4172, %v4811, 0.0
        %v4820 = vrot.slane %v4819, 4
        %v4821 = vadd.f32 %v4819, %v4820
        %v4822 = vrot.slane %v4821, 2
        %v4823 = vadd.f32 %v4821, %v4822
        %v4824 = vrot.slane %v4823, 1
        %v4825 = vadd.f32 %v4823, %v4824
        %v4826 = vmul.f32 %v4818, %v4201
        %v4827 = vmul.f32 %v4825, %v4201
        %v4828 = vadd.f32 %v4826, 1e-05
        %v4829 = vadd.f32 %v4827, 1e-05
        %v4830 = vrsqrt.pop %v4828
        %v4831 = vrsqrt.pop %v4829
        %v4832 = vmul.f32 %v4808, %v4830
        %v4833 = vmul.f32 %v4809, %v4831
        %v4835 = vlaneseq
        %v4836 = vshrl.u32 %v4835, 7
        %v4837 = vsub.s32 0, %v4836
        %v4838 = vrot.slane %v4790, %v4837
        %v4839 = vlaneseq
        %v4840 = vshrl.u32 %v4839, 7
        %v4841 = vsub.s32 1, %v4840
        %v4842 = vrot.slane %v4790, %v4841
        %v4845 = vmul.f32 %v4832, %v4838
        %v4846 = vmul.f32 %v4833, %v4842
        %v4848 = vlaneseq
        %v4849 = vshrl.u32 %v4848, 7
        %v4850 = vsub.s32 0, %v4849
        %v4851 = vrot.slane %v4791, %v4850
        %v4852 = vlaneseq
        %v4853 = vshrl.u32 %v4852, 7
        %v4854 = vsub.s32 1, %v4853
        %v4855 = vrot.slane %v4791, %v4854
        %v4858 = vadd.f32 %v4845, %v4851
        %v4859 = vadd.f32 %v4846, %v4855
        %v4860 = vld [vmem:[%s19] sm:$0xff]
        %v4861 = vld [vmem:[%s19 + $0x8] sm:$0xff]
        %v4862 = vld [vmem:[%s19 + $0x10] sm:$0xff]
        %v4863 = vld [vmem:[%s19 + $0x18] sm:$0xff]
        %v4864 = vld [vmem:[%s19 + $0x20] sm:$0xff]
        %v4865 = vld [vmem:[%s19 + $0x28] sm:$0xff]
        %v4866 = vld [vmem:[%s19 + $0x30] sm:$0xff]
        %v4867 = vld [vmem:[%s19 + $0x38] sm:$0xff]
        %v4868 = vld [vmem:[%s19 + $0x40] sm:$0xff]
        %v4869 = vld [vmem:[%s19 + $0x48] sm:$0xff]
        %v4870 = vld [vmem:[%s19 + $0x50] sm:$0xff]
        %v4871 = vld [vmem:[%s19 + $0x58] sm:$0xff]
        %v4872 = vld [vmem:[%s19 + $0x60] sm:$0xff]
        %v4873 = vld [vmem:[%s19 + $0x68] sm:$0xff]
        %v4874 = vld [vmem:[%s19 + $0x70] sm:$0xff]
        %v4875 = vld [vmem:[%s19 + $0x78] sm:$0xff]
        %v4876 = vld [vmem:[%s19 + $0x80] sm:$0xff]
        %v4877 = vld [vmem:[%s19 + $0x88] sm:$0xff]
        %v4878 = vld [vmem:[%s19 + $0x90] sm:$0xff]
        %v4879 = vld [vmem:[%s19 + $0x98] sm:$0xff]
        %v4880 = vld [vmem:[%s19 + $0xa0] sm:$0xff]
        %v4881 = vld [vmem:[%s19 + $0xa8] sm:$0xff]
        %v4882 = vld [vmem:[%s19 + $0xb0] sm:$0xff]
        %v4883 = vld [vmem:[%s19 + $0xb8] sm:$0xff]
        %v4884 = vld [vmem:[%s19 + $0xc0] sm:$0xff]
        %v4885 = vld [vmem:[%s19 + $0xc8] sm:$0xff]
        %v4886 = vld [vmem:[%s19 + $0xd0] sm:$0xff]
        %v4887 = vld [vmem:[%s19 + $0xd8] sm:$0xff]
        %v4888 = vld [vmem:[%s19 + $0xe0] sm:$0xff]
        %v4889 = vld [vmem:[%s19 + $0xe8] sm:$0xff]
        %v4890 = vld [vmem:[%s19 + $0xf0] sm:$0xff]
        %v4891 = vld [vmem:[%s19 + $0xf8] sm:$0xff]
        %v4892 = vld [vmem:[%s20] sm:$0x1]
        %v4894 = vlaneseq
        %v4895 = vshrl.u32 %v4894, 7
        %v4896 = vsub.s32 0, %v4895
        %v4897 = vrot.slane %v4892, %v4896
        %4899 = vmatprep.subr.mxu0 0.0
        %4900 = vmatpush1.msra.mxu0 %v4860
        %4901 = vmatprep.subr.mxu0 0.0
        %4902 = vmatpush1.msra.mxu0 %v4861
        %4903 = vmatprep.subr.mxu0 0.0
        %4904 = vmatpush1.msra.mxu0 %v4862
        %4905 = vmatprep.subr.mxu0 0.0
        %4906 = vmatpush1.msra.mxu0 %v4863
        %4907 = vmatprep.subr.mxu0 0.0
        %4908 = vmatpush1.msra.mxu0 %v4864
        %4909 = vmatprep.subr.mxu0 0.0
        %4910 = vmatpush1.msra.mxu0 %v4865
        %4911 = vmatprep.subr.mxu0 0.0
        %4912 = vmatpush1.msra.mxu0 %v4866
        %4913 = vmatprep.subr.mxu0 0.0
        %4914 = vmatpush1.msra.mxu0 %v4867
        %4915 = vmatprep.subr.mxu0 0.0
        %4916 = vmatpush1.msra.mxu0 %v4868
        %4917 = vmatprep.subr.mxu0 0.0
        %4918 = vmatpush1.msra.mxu0 %v4869
        %4919 = vmatprep.subr.mxu0 0.0
        %4920 = vmatpush1.msra.mxu0 %v4870
        %4921 = vmatprep.subr.mxu0 0.0
        %4922 = vmatpush1.msra.mxu0 %v4871
        %4923 = vmatprep.subr.mxu0 0.0
        %4924 = vmatpush1.msra.mxu0 %v4872
        %4925 = vmatprep.subr.mxu0 0.0
        %4926 = vmatpush1.msra.mxu0 %v4873
        %4927 = vmatprep.subr.mxu0 0.0
        %4928 = vmatpush1.msra.mxu0 %v4874
        %4929 = vmatprep.subr.mxu0 0.0
        %4930 = vmatpush1.msra.mxu0 %v4875
        %4931 = vmatprep.subr.mxu0 0.0
        %4932 = vmatpush1.msra.mxu0 %v4876
        %4933 = vmatprep.subr.mxu0 0.0
        %4934 = vmatpush1.msra.mxu0 %v4877
        %4935 = vmatprep.subr.mxu0 0.0
        %4936 = vmatpush1.msra.mxu0 %v4878
        %4937 = vmatprep.subr.mxu0 0.0
        %4938 = vmatpush1.msra.mxu0 %v4879
        %4939 = vmatprep.subr.mxu0 0.0
        %4940 = vmatpush1.msra.mxu0 %v4880
        %4941 = vmatprep.subr.mxu0 0.0
        %4942 = vmatpush1.msra.mxu0 %v4881
        %4943 = vmatprep.subr.mxu0 0.0
        %4944 = vmatpush1.msra.mxu0 %v4882
        %4945 = vmatprep.subr.mxu0 0.0
        %4946 = vmatpush1.msra.mxu0 %v4883
        %4947 = vmatprep.subr.mxu0 0.0
        %4948 = vmatpush1.msra.mxu0 %v4884
        %4949 = vmatprep.subr.mxu0 0.0
        %4950 = vmatpush1.msra.mxu0 %v4885
        %4951 = vmatprep.subr.mxu0 0.0
        %4952 = vmatpush1.msra.mxu0 %v4886
        %4953 = vmatprep.subr.mxu0 0.0
        %4954 = vmatpush1.msra.mxu0 %v4887
        %4955 = vmatprep.subr.mxu0 0.0
        %4956 = vmatpush1.msra.mxu0 %v4888
        %4957 = vmatprep.subr.mxu0 0.0
        %4958 = vmatpush1.msra.mxu0 %v4889
        %4959 = vmatprep.subr.mxu0 0.0
        %4960 = vmatpush1.msra.mxu0 %v4890
        %4961 = vmatprep.subr.mxu0 0.0
        %4962 = vmatpush1.msra.mxu0 %v4891
        %4963 = vmatprep.mubr.f32.mxu0 %v4859
        %4964 = vmatmul.mubr.f32.gmra.mrb[0].mxu0 %v4858
        %v4965 = vpop.f32.mrb[0].mxu0
        %v4966 = vadd.f32 %v4897, %v4965
        %v4967 = vpop.f32.mrb[0].mxu0
        %4968 = vdwg.mxu0
        %4969 = vst [vmem:[%s21] sm:$0x3] %v4966
      $region124: #{input_transform_net_alt_forward.1} parent=103 // pred_fallthru
        _
      // Predicated region
      $region125: #{input_transform_net_alt_forward.1} parent=103 // pred_check
        %p4970 = pneg %p512
      $region126: #{input_transform_net_alt_forward.1} parent=103 // pred_check_branch
        %4972 = sbr.rel (%p4970) target = $region128
      $region127: #{input_transform_net_alt_forward.1} parent=103 // pred_region
        _
      $region128: #{input_transform_net_alt_forward.1} parent=103 // pred_fallthru
        _
      // Predicated region
      $region129: #{input_transform_net_alt_forward.1} parent=103 // pred_check
        %p4973 = pneg %p512
      $region130: #{input_transform_net_alt_forward.1} parent=103 // pred_check_branch
        %4975 = sbr.rel (%p4973) target = $region132
      $region131: #{input_transform_net_alt_forward.1} parent=103 // pred_region
        _
      $region132: #{input_transform_net_alt_forward.1} parent=103 // pred_fallthru
        _
    $region104: #{input_transform_net_alt_forward.1} parent=5 // pred_fallthru
      _
    %p4976 = scmp.le.s32.totalorder 2, %s27
    // Predicated region
    $region133: #{input_transform_net_alt_forward.1} parent=5 // pred_check
      %p4977 = pneg %p4976
    $region134: #{input_transform_net_alt_forward.1} parent=5 // pred_check_branch
      %4979 = sbr.rel (%p4977) target = $region136
    $region135: #{input_transform_net_alt_forward.1} parent=5 // pred_region
      %s4980 = ssub.s32 %s27, 2
    $region136: #{input_transform_net_alt_forward.1} parent=5 // pred_fallthru
      _
  $region6: #{input_transform_net_alt_forward.1} parent=0 // loop_footer
    %s31 = sadd.s32 1, %s27
  $region7: #{input_transform_net_alt_forward.1} parent=0 // loop_footer_branch
    %26 = sbr.rel target = $region3
  $region8: #{input_transform_net_alt_forward.1} parent=0 // loop_exit
    _

</llo_original>
